<compile_context>
chip_gen: v7x
topology: tpu7x:2x2x1
jax: 0.10.0
libtpu: 0.0.40
codegen_flags: <defaults>
</compile_context>

<pallas_src>
import functools

import jax
import jax.numpy as jnp
from jax.experimental import pallas as pl
from jax.experimental.pallas import tpu as pltpu


def _round_up(x, m):
    return (x + m - 1) // m * m


def update_block_kernel(
    s_ref, v_ref,
    wu_ref, wv_ref,
    w1_ref, b1_ref,
    w2vv_ref, w2sv_ref, w2ss_ref,
    b2vv_ref, b2sv_ref, b2ss_ref,
    o_ref,
):
    tn, F = s_ref.shape

    s = s_ref[...].astype(jnp.float32)                        # (tn, F)

    # Flatten (3, tn, F) -> (3*tn, F): leading-dim collapse, no relayout since
    # tn is a multiple of 8.  U/V become two matmuls with M = 3*tn.
    vf = v_ref[...].astype(jnp.float32).reshape(3 * tn, F)    # (3tn, F)

    wu = wu_ref[...].astype(jnp.float32)
    wv = wv_ref[...].astype(jnp.float32)
    U = jnp.dot(vf, wu, preferred_element_type=jnp.float32)   # (3tn, F)
    V = jnp.dot(vf, wv, preferred_element_type=jnp.float32)   # (3tn, F)

    # Reductions over the 3 vector components via static sublane slices.
    VV = V * V
    UV = U * V
    vnorm_sq = VV[0:tn] + VV[tn:2 * tn] + VV[2 * tn:3 * tn]   # (tn, F)
    uv_dot = UV[0:tn] + UV[tn:2 * tn] + UV[2 * tn:3 * tn]     # (tn, F)
    vnorm = jnp.sqrt(vnorm_sq)                                # ||V_v||

    # mlp_a layer 1: one K = 2F matmul on cat(s, ||V_v||) (lane concat).
    x1 = jnp.concatenate([s, vnorm], axis=-1)                 # (tn, 2F)
    h = (jnp.dot(x1, w1_ref[...].astype(jnp.float32),
                 preferred_element_type=jnp.float32)
         + b1_ref[...].astype(jnp.float32))
    h = h * jax.nn.sigmoid(h)                                 # SiLU

    # mlp_a layer 2, split per gate (F is not a multiple of 128, so a fused
    # (tn, 3F) result would need lane-unaligned slicing).
    a_vv = (jnp.dot(h, w2vv_ref[...].astype(jnp.float32),
                    preferred_element_type=jnp.float32)
            + b2vv_ref[...].astype(jnp.float32))
    a_sv = (jnp.dot(h, w2sv_ref[...].astype(jnp.float32),
                    preferred_element_type=jnp.float32)
            + b2sv_ref[...].astype(jnp.float32))
    a_ss = (jnp.dot(h, w2ss_ref[...].astype(jnp.float32),
                    preferred_element_type=jnp.float32)
            + b2ss_ref[...].astype(jnp.float32))

    s_new = s + a_ss + a_sv * uv_dot                          # (tn, F)
    v_new = [vf[c * tn:(c + 1) * tn] + a_vv * U[c * tn:(c + 1) * tn]
             for c in range(3)]                               # 3 x (tn, F)

    # Lane-dense packed output: one (tn, 4F) slab -> unmasked 128-lane stores.
    o_ref[...] = jnp.concatenate([s_new] + v_new, axis=-1).astype(o_ref.dtype)


def update_block(s, v, params, *, tile_n=128):
    """s: (N, 1, F), v: (N, 3, F)  (PyTorch axis convention)."""
    N, one, F = s.shape
    assert one == 1 and v.shape == (N, 3, F)

    # Keep >= 2 grid steps when possible (both v7x TensorCores busy), rows in
    # multiples of 8 sublanes.  N is padded to a multiple of tile_n.
    tile_n = max(8, min(tile_n, _round_up(max(N // 2, 1), 8)))
    n_pad = _round_up(N, tile_n)

    s2 = s[:, 0, :]                                           # (N, F)
    # TODO(synk): in a full model, keep v in (3, N, F) layout end-to-end so this
    # one HBM round trip of v (the transpose) disappears from the graph.
    v2 = jnp.transpose(v, (1, 0, 2))                          # (3, N, F)
    if n_pad != N:
        s2 = jnp.pad(s2, ((0, n_pad - N), (0, 0)))
        v2 = jnp.pad(v2, ((0, 0), (0, n_pad - N), (0, 0)))

    grid = (n_pad // tile_n,)

    def const_spec(shape):
        n = len(shape)
        return pl.BlockSpec(shape, lambda i, _n=n: (0,) * _n)

    in_specs = [
        pl.BlockSpec((tile_n, F), lambda i: (i, 0)),          # s
        pl.BlockSpec((3, tile_n, F), lambda i: (0, i, 0)),    # v
        const_spec((F, F)),                                   # wu
        const_spec((F, F)),                                   # wv
        const_spec((2 * F, F)),                               # w1 (fused layer 1)
        const_spec((1, F)),                                   # b1
        const_spec((F, F)),                                   # w2vv
        const_spec((F, F)),                                   # w2sv
        const_spec((F, F)),                                   # w2ss
        const_spec((1, F)),                                   # b2vv
        const_spec((1, F)),                                   # b2sv
        const_spec((1, F)),                                   # b2ss
    ]
    out_specs = pl.BlockSpec((tile_n, 4 * F), lambda i: (i, 0))
    out_shape = jax.ShapeDtypeStruct((n_pad, 4 * F), s.dtype)

    packed = pl.pallas_call(
        update_block_kernel,
        grid=grid,
        in_specs=in_specs,
        out_specs=out_specs,
        out_shape=out_shape,
        compiler_params=pltpu.CompilerParams(
            dimension_semantics=("parallel",)),
    )(
        s2, v2,
        params["wu"], params["wv"],
        params["w1"], params["b1"],
        params["w2vv"], params["w2sv"], params["w2ss"],
        params["b2vv"], params["b2sv"], params["b2ss"],
    )

    packed = packed[:N]                                       # drop padding
    s_out = packed[:, :F].reshape(N, 1, F)
    v_out = packed[:, F:].reshape(N, 3, F)                    # comp-major packing
    return s_out, v_out


def update_block_ref(s, v, params):
    """Plain-JAX reference matching the PyTorch module exactly."""
    F = s.shape[-1]
    p = {k: w.astype(jnp.float32) for k, w in params.items()}

    W_UV = jnp.concatenate([p["wu"], p["wv"]], axis=1)        # (F, 2F)
    UV = v @ W_UV                                             # (N, 3, 2F)
    U_v, V_v = UV[..., :F], UV[..., F:]
    vnorm = jnp.sqrt(jnp.sum(V_v * V_v, axis=-2, keepdims=True))  # (N, 1, F)

    x = jnp.concatenate([s, vnorm], axis=-1)                  # (N, 1, 2F)
    h = x @ p["w1"] + p["b1"]
    h = h * jax.nn.sigmoid(h)                                 # SiLU

    W2 = jnp.concatenate([p["w2vv"], p["w2sv"], p["w2ss"]], axis=1)   # (F, 3F)
    b2 = jnp.concatenate([p["b2vv"], p["b2sv"], p["b2ss"]], axis=1)   # (1, 3F)
    a = h @ W2 + b2                                           # (N, 1, 3F)
    a_vv, a_sv, a_ss = a[..., :F], a[..., F:2 * F], a[..., 2 * F:]

    dv = a_vv * U_v
    ds = a_ss + a_sv * jnp.sum(U_v * V_v, axis=-2, keepdims=True)
    return s + ds, v + dv


def make_params(key, F, dtype=jnp.bfloat16):
    ks = jax.random.split(key, 10)
    su = 1.0 / jnp.sqrt(F)
    s1 = 1.0 / jnp.sqrt(2.0 * F)
    s2 = 1.0 / jnp.sqrt(F)
    p = {
        "wu":   jax.random.normal(ks[0], (F, F), jnp.float32) * su,
        "wv":   jax.random.normal(ks[1], (F, F), jnp.float32) * su,
        "w1":   jax.random.normal(ks[2], (2 * F, F), jnp.float32) * s1,
        "b1":   jax.random.normal(ks[3], (1, F), jnp.float32) * 0.1,
        "w2vv": jax.random.normal(ks[4], (F, F), jnp.float32) * s2,
        "w2sv": jax.random.normal(ks[5], (F, F), jnp.float32) * s2,
        "w2ss": jax.random.normal(ks[6], (F, F), jnp.float32) * s2,
        "b2vv": jax.random.normal(ks[7], (1, F), jnp.float32) * 0.1,
        "b2sv": jax.random.normal(ks[8], (1, F), jnp.float32) * 0.1,
        "b2ss": jax.random.normal(ks[9], (1, F), jnp.float32) * 0.1,
    }
    return {k: w.astype(dtype) for k, w in p.items()}


if __name__ == "__main__":
    # num_features = 32; N chosen not a multiple of tile_n to exercise padding
    # (pads to 512 -> 4 parallel grid steps of tile_n = 128).
    N, F = 500, 32
    key = jax.random.PRNGKey(0)
    k_s, k_v, k_p = jax.random.split(key, 3)

    s = jax.random.normal(k_s, (N, 1, F), jnp.float32)
    v = jax.random.normal(k_v, (N, 3, F), jnp.float32)
    params = make_params(k_p, F, dtype=jnp.bfloat16)   # bf16-resident weights

    run = jax.jit(functools.partial(update_block, tile_n=128))
    s_out, v_out = run(s, v, params)
    jax.block_until_ready((s_out, v_out))

    s_ref, v_ref = update_block_ref(s, v, params)
    assert s_out.shape == (N, 1, F) and v_out.shape == (N, 3, F)
    assert jnp.allclose(s_out, s_ref, rtol=1e-3, atol=1e-3), \
        float(jnp.max(jnp.abs(s_out - s_ref)))
    assert jnp.allclose(v_out, v_ref, rtol=1e-3, atol=1e-3), \
        float(jnp.max(jnp.abs(v_out - v_ref)))

    print("KERNEL_OK")
</pallas_src>

<mosaic_0001>
module attributes {stable_mosaic.version = 11 : i64} {
  func.func @update_block_kernel(%arg0: i32, %arg1: memref<128x32xf32, #tpu.memory_space<vmem>>, %arg2: memref<3x128x32xf32, #tpu.memory_space<vmem>>, %arg3: memref<32x32xbf16, #tpu.memory_space<vmem>>, %arg4: memref<32x32xbf16, #tpu.memory_space<vmem>>, %arg5: memref<64x32xbf16, #tpu.memory_space<vmem>>, %arg6: memref<1x32xbf16, #tpu.memory_space<vmem>>, %arg7: memref<32x32xbf16, #tpu.memory_space<vmem>>, %arg8: memref<32x32xbf16, #tpu.memory_space<vmem>>, %arg9: memref<32x32xbf16, #tpu.memory_space<vmem>>, %arg10: memref<1x32xbf16, #tpu.memory_space<vmem>>, %arg11: memref<1x32xbf16, #tpu.memory_space<vmem>>, %arg12: memref<1x32xbf16, #tpu.memory_space<vmem>>, %arg13: memref<128x128xf32, #tpu.memory_space<vmem>>) attributes {dimension_semantics = [#tpu.dimension_semantics<parallel>], iteration_bounds = array<i64: 4>, scalar_prefetch = 0 : i64, scratch_operands = 0 : i64, tpu.core_type = #tpu.core_type<tc>, window_params = [{transform_indices = @transform_0, window_bounds = array<i64: 128, 32>}, {transform_indices = @transform_1, window_bounds = array<i64: 3, 128, 32>}, {pipeline_mode = #tpu.pipeline_mode<synchronous>, transform_indices = @transform_2, window_bounds = array<i64: 32, 32>}, {pipeline_mode = #tpu.pipeline_mode<synchronous>, transform_indices = @transform_3, window_bounds = array<i64: 32, 32>}, {pipeline_mode = #tpu.pipeline_mode<synchronous>, transform_indices = @transform_4, window_bounds = array<i64: 64, 32>}, {pipeline_mode = #tpu.pipeline_mode<synchronous>, transform_indices = @transform_5, window_bounds = array<i64: 1, 32>}, {pipeline_mode = #tpu.pipeline_mode<synchronous>, transform_indices = @transform_6, window_bounds = array<i64: 32, 32>}, {pipeline_mode = #tpu.pipeline_mode<synchronous>, transform_indices = @transform_7, window_bounds = array<i64: 32, 32>}, {pipeline_mode = #tpu.pipeline_mode<synchronous>, transform_indices = @transform_8, window_bounds = array<i64: 32, 32>}, {pipeline_mode = #tpu.pipeline_mode<synchronous>, transform_indices = @transform_9, window_bounds = array<i64: 1, 32>}, {pipeline_mode = #tpu.pipeline_mode<synchronous>, transform_indices = @transform_10, window_bounds = array<i64: 1, 32>}, {pipeline_mode = #tpu.pipeline_mode<synchronous>, transform_indices = @transform_11, window_bounds = array<i64: 1, 32>}, {transform_indices = @transform_12, window_bounds = array<i64: 128, 128>}]} {
    %c0 = arith.constant 0 : index
    %c0_0 = arith.constant 0 : index
    %0 = vector.load %arg1[%c0, %c0_0] : memref<128x32xf32, #tpu.memory_space<vmem>>, vector<128x32xf32>
    %c0_1 = arith.constant 0 : index
    %c0_2 = arith.constant 0 : index
    %c0_3 = arith.constant 0 : index
    %1 = vector.load %arg2[%c0_1, %c0_2, %c0_3] : memref<3x128x32xf32, #tpu.memory_space<vmem>>, vector<3x128x32xf32>
    %2 = vector.shape_cast %1 : vector<3x128x32xf32> to vector<384x32xf32>
    %c0_4 = arith.constant 0 : index
    %c0_5 = arith.constant 0 : index
    %3 = vector.load %arg3[%c0_4, %c0_5] : memref<32x32xbf16, #tpu.memory_space<vmem>>, vector<32x32xbf16>
    %4 = arith.extf %3 : vector<32x32xbf16> to vector<32x32xf32>
    %c0_6 = arith.constant 0 : index
    %c0_7 = arith.constant 0 : index
    %5 = vector.load %arg4[%c0_6, %c0_7] : memref<32x32xbf16, #tpu.memory_space<vmem>>, vector<32x32xbf16>
    %6 = arith.extf %5 : vector<32x32xbf16> to vector<32x32xf32>
    %cst = arith.constant dense<0.000000e+00> : vector<384x32xf32>
    %7 = tpu.matmul %2, %4, %cst {dimension_numbers = #tpu.dot_dimension_numbers<[1], [0], [0], [1], [0, 0, 1, 1], [], []>} : vector<384x32xf32>, vector<32x32xf32>, vector<384x32xf32> -> vector<384x32xf32>
    %cst_8 = arith.constant dense<0.000000e+00> : vector<384x32xf32>
    %8 = tpu.matmul %2, %6, %cst_8 {dimension_numbers = #tpu.dot_dimension_numbers<[1], [0], [0], [1], [0, 0, 1, 1], [], []>} : vector<384x32xf32>, vector<32x32xf32>, vector<384x32xf32> -> vector<384x32xf32>
    %9 = arith.mulf %8, %8 : vector<384x32xf32>
    %10 = arith.mulf %7, %8 : vector<384x32xf32>
    %11 = vector.extract_strided_slice %9 {offsets = [0, 0], sizes = [128, 32], strides = [1, 1]} : vector<384x32xf32> to vector<128x32xf32>
    %12 = vector.extract_strided_slice %9 {offsets = [128, 0], sizes = [128, 32], strides = [1, 1]} : vector<384x32xf32> to vector<128x32xf32>
    %13 = arith.addf %11, %12 : vector<128x32xf32>
    %14 = vector.extract_strided_slice %9 {offsets = [256, 0], sizes = [128, 32], strides = [1, 1]} : vector<384x32xf32> to vector<128x32xf32>
    %15 = arith.addf %13, %14 : vector<128x32xf32>
    %16 = vector.extract_strided_slice %10 {offsets = [0, 0], sizes = [128, 32], strides = [1, 1]} : vector<384x32xf32> to vector<128x32xf32>
    %17 = vector.extract_strided_slice %10 {offsets = [128, 0], sizes = [128, 32], strides = [1, 1]} : vector<384x32xf32> to vector<128x32xf32>
    %18 = arith.addf %16, %17 : vector<128x32xf32>
    %19 = vector.extract_strided_slice %10 {offsets = [256, 0], sizes = [128, 32], strides = [1, 1]} : vector<384x32xf32> to vector<128x32xf32>
    %20 = arith.addf %18, %19 : vector<128x32xf32>
    %21 = math.sqrt %15 : vector<128x32xf32>
    %22 = tpu.concatenate %0, %21 in 1 : vector<128x32xf32>, vector<128x32xf32> -> vector<128x64xf32>
    %c0_9 = arith.constant 0 : index
    %c0_10 = arith.constant 0 : index
    %23 = vector.load %arg5[%c0_9, %c0_10] : memref<64x32xbf16, #tpu.memory_space<vmem>>, vector<64x32xbf16>
    %24 = arith.extf %23 : vector<64x32xbf16> to vector<64x32xf32>
    %cst_11 = arith.constant dense<0.000000e+00> : vector<128x32xf32>
    %25 = tpu.matmul %22, %24, %cst_11 {dimension_numbers = #tpu.dot_dimension_numbers<[1], [0], [0], [1], [0, 0, 1, 1], [], []>} : vector<128x64xf32>, vector<64x32xf32>, vector<128x32xf32> -> vector<128x32xf32>
    %c0_12 = arith.constant 0 : index
    %c0_13 = arith.constant 0 : index
    %26 = vector.load %arg6[%c0_12, %c0_13] : memref<1x32xbf16, #tpu.memory_space<vmem>>, vector<1x32xbf16>
    %27 = arith.extf %26 : vector<1x32xbf16> to vector<1x32xf32>
    %28 = vector.broadcast %27 : vector<1x32xf32> to vector<128x32xf32>
    %29 = arith.addf %25, %28 : vector<128x32xf32>
    %30 = arith.negf %29 : vector<128x32xf32>
    %31 = math.exp %30 : vector<128x32xf32>
    %cst_14 = arith.constant 1.000000e+00 : f32
    %32 = vector.broadcast %cst_14 : f32 to vector<128x32xf32>
    %33 = arith.addf %32, %31 : vector<128x32xf32>
    %34 = arith.divf %32, %33 : vector<128x32xf32>
    %35 = arith.mulf %29, %34 : vector<128x32xf32>
    %c0_15 = arith.constant 0 : index
    %c0_16 = arith.constant 0 : index
    %36 = vector.load %arg7[%c0_15, %c0_16] : memref<32x32xbf16, #tpu.memory_space<vmem>>, vector<32x32xbf16>
    %37 = arith.extf %36 : vector<32x32xbf16> to vector<32x32xf32>
    %cst_17 = arith.constant dense<0.000000e+00> : vector<128x32xf32>
    %38 = tpu.matmul %35, %37, %cst_17 {dimension_numbers = #tpu.dot_dimension_numbers<[1], [0], [0], [1], [0, 0, 1, 1], [], []>} : vector<128x32xf32>, vector<32x32xf32>, vector<128x32xf32> -> vector<128x32xf32>
    %c0_18 = arith.constant 0 : index
    %c0_19 = arith.constant 0 : index
    %39 = vector.load %arg10[%c0_18, %c0_19] : memref<1x32xbf16, #tpu.memory_space<vmem>>, vector<1x32xbf16>
    %40 = arith.extf %39 : vector<1x32xbf16> to vector<1x32xf32>
    %41 = vector.broadcast %40 : vector<1x32xf32> to vector<128x32xf32>
    %42 = arith.addf %38, %41 : vector<128x32xf32>
    %c0_20 = arith.constant 0 : index
    %c0_21 = arith.constant 0 : index
    %43 = vector.load %arg8[%c0_20, %c0_21] : memref<32x32xbf16, #tpu.memory_space<vmem>>, vector<32x32xbf16>
    %44 = arith.extf %43 : vector<32x32xbf16> to vector<32x32xf32>
    %cst_22 = arith.constant dense<0.000000e+00> : vector<128x32xf32>
    %45 = tpu.matmul %35, %44, %cst_22 {dimension_numbers = #tpu.dot_dimension_numbers<[1], [0], [0], [1], [0, 0, 1, 1], [], []>} : vector<128x32xf32>, vector<32x32xf32>, vector<128x32xf32> -> vector<128x32xf32>
    %c0_23 = arith.constant 0 : index
    %c0_24 = arith.constant 0 : index
    %46 = vector.load %arg11[%c0_23, %c0_24] : memref<1x32xbf16, #tpu.memory_space<vmem>>, vector<1x32xbf16>
    %47 = arith.extf %46 : vector<1x32xbf16> to vector<1x32xf32>
    %48 = vector.broadcast %47 : vector<1x32xf32> to vector<128x32xf32>
    %49 = arith.addf %45, %48 : vector<128x32xf32>
    %c0_25 = arith.constant 0 : index
    %c0_26 = arith.constant 0 : index
    %50 = vector.load %arg9[%c0_25, %c0_26] : memref<32x32xbf16, #tpu.memory_space<vmem>>, vector<32x32xbf16>
    %51 = arith.extf %50 : vector<32x32xbf16> to vector<32x32xf32>
    %cst_27 = arith.constant dense<0.000000e+00> : vector<128x32xf32>
    %52 = tpu.matmul %35, %51, %cst_27 {dimension_numbers = #tpu.dot_dimension_numbers<[1], [0], [0], [1], [0, 0, 1, 1], [], []>} : vector<128x32xf32>, vector<32x32xf32>, vector<128x32xf32> -> vector<128x32xf32>
    %c0_28 = arith.constant 0 : index
    %c0_29 = arith.constant 0 : index
    %53 = vector.load %arg12[%c0_28, %c0_29] : memref<1x32xbf16, #tpu.memory_space<vmem>>, vector<1x32xbf16>
    %54 = arith.extf %53 : vector<1x32xbf16> to vector<1x32xf32>
    %55 = vector.broadcast %54 : vector<1x32xf32> to vector<128x32xf32>
    %56 = arith.addf %52, %55 : vector<128x32xf32>
    %57 = arith.addf %0, %56 : vector<128x32xf32>
    %58 = arith.mulf %49, %20 : vector<128x32xf32>
    %59 = arith.addf %57, %58 : vector<128x32xf32>
    %60 = vector.extract_strided_slice %2 {offsets = [0, 0], sizes = [128, 32], strides = [1, 1]} : vector<384x32xf32> to vector<128x32xf32>
    %61 = vector.extract_strided_slice %7 {offsets = [0, 0], sizes = [128, 32], strides = [1, 1]} : vector<384x32xf32> to vector<128x32xf32>
    %62 = arith.mulf %42, %61 : vector<128x32xf32>
    %63 = arith.addf %60, %62 : vector<128x32xf32>
    %64 = vector.extract_strided_slice %2 {offsets = [128, 0], sizes = [128, 32], strides = [1, 1]} : vector<384x32xf32> to vector<128x32xf32>
    %65 = vector.extract_strided_slice %7 {offsets = [128, 0], sizes = [128, 32], strides = [1, 1]} : vector<384x32xf32> to vector<128x32xf32>
    %66 = arith.mulf %42, %65 : vector<128x32xf32>
    %67 = arith.addf %64, %66 : vector<128x32xf32>
    %68 = vector.extract_strided_slice %2 {offsets = [256, 0], sizes = [128, 32], strides = [1, 1]} : vector<384x32xf32> to vector<128x32xf32>
    %69 = vector.extract_strided_slice %7 {offsets = [256, 0], sizes = [128, 32], strides = [1, 1]} : vector<384x32xf32> to vector<128x32xf32>
    %70 = arith.mulf %42, %69 : vector<128x32xf32>
    %71 = arith.addf %68, %70 : vector<128x32xf32>
    %72 = tpu.concatenate %59, %63, %67, %71 in 1 : vector<128x32xf32>, vector<128x32xf32>, vector<128x32xf32>, vector<128x32xf32> -> vector<128x128xf32>
    %c0_30 = arith.constant 0 : index
    %c0_31 = arith.constant 0 : index
    %73 = vector.load %arg13[%c0_30, %c0_31] : memref<128x128xf32, #tpu.memory_space<vmem>>, vector<128x128xf32>
    tpu.vector_store %arg13[%c0_30, %c0_31], %72 {strides = array<i32>} : memref<128x128xf32, #tpu.memory_space<vmem>>, vector<128x128xf32>,
    return
  }
  func.func @transform_0(%arg0: i32) -> (i32, i32) {
    %c0_i32 = arith.constant 0 : i32
    %c0_i32_0 = arith.constant 0 : i32
    return %arg0, %c0_i32 : i32, i32
  }
  func.func @transform_1(%arg0: i32) -> (i32, i32, i32) {
    %c0_i32 = arith.constant 0 : i32
    %c0_i32_0 = arith.constant 0 : i32
    %c0_i32_1 = arith.constant 0 : i32
    return %c0_i32, %arg0, %c0_i32_0 : i32, i32, i32
  }
  func.func @transform_2(%arg0: i32) -> (i32, i32) {
    %c0_i32 = arith.constant 0 : i32
    %c0_i32_0 = arith.constant 0 : i32
    %c0_i32_1 = arith.constant 0 : i32
    return %c0_i32, %c0_i32_0 : i32, i32
  }
  func.func @transform_3(%arg0: i32) -> (i32, i32) {
    %c0_i32 = arith.constant 0 : i32
    %c0_i32_0 = arith.constant 0 : i32
    %c0_i32_1 = arith.constant 0 : i32
    return %c0_i32, %c0_i32_0 : i32, i32
  }
  func.func @transform_4(%arg0: i32) -> (i32, i32) {
    %c0_i32 = arith.constant 0 : i32
    %c0_i32_0 = arith.constant 0 : i32
    %c0_i32_1 = arith.constant 0 : i32
    return %c0_i32, %c0_i32_0 : i32, i32
  }
  func.func @transform_5(%arg0: i32) -> (i32, i32) {
    %c0_i32 = arith.constant 0 : i32
    %c0_i32_0 = arith.constant 0 : i32
    %c0_i32_1 = arith.constant 0 : i32
    return %c0_i32, %c0_i32_0 : i32, i32
  }
  func.func @transform_6(%arg0: i32) -> (i32, i32) {
    %c0_i32 = arith.constant 0 : i32
    %c0_i32_0 = arith.constant 0 : i32
    %c0_i32_1 = arith.constant 0 : i32
    return %c0_i32, %c0_i32_0 : i32, i32
  }
  func.func @transform_7(%arg0: i32) -> (i32, i32) {
    %c0_i32 = arith.constant 0 : i32
    %c0_i32_0 = arith.constant 0 : i32
    %c0_i32_1 = arith.constant 0 : i32
    return %c0_i32, %c0_i32_0 : i32, i32
  }
  func.func @transform_8(%arg0: i32) -> (i32, i32) {
    %c0_i32 = arith.constant 0 : i32
    %c0_i32_0 = arith.constant 0 : i32
    %c0_i32_1 = arith.constant 0 : i32
    return %c0_i32, %c0_i32_0 : i32, i32
  }
  func.func @transform_9(%arg0: i32) -> (i32, i32) {
    %c0_i32 = arith.constant 0 : i32
    %c0_i32_0 = arith.constant 0 : i32
    %c0_i32_1 = arith.constant 0 : i32
    return %c0_i32, %c0_i32_0 : i32, i32
  }
  func.func @transform_10(%arg0: i32) -> (i32, i32) {
    %c0_i32 = arith.constant 0 : i32
    %c0_i32_0 = arith.constant 0 : i32
    %c0_i32_1 = arith.constant 0 : i32
    return %c0_i32, %c0_i32_0 : i32, i32
  }
  func.func @transform_11(%arg0: i32) -> (i32, i32) {
    %c0_i32 = arith.constant 0 : i32
    %c0_i32_0 = arith.constant 0 : i32
    %c0_i32_1 = arith.constant 0 : i32
    return %c0_i32, %c0_i32_0 : i32, i32
  }
  func.func @transform_12(%arg0: i32) -> (i32, i32) {
    %c0_i32 = arith.constant 0 : i32
    %c0_i32_0 = arith.constant 0 : i32
    return %arg0, %c0_i32 : i32, i32
  }
}

</mosaic_0001>

<llo_original>
// kernel: update_block.1
$region0: #{update_block.1}
  #allocation0 [shape = 'u32[]', space=smem, size = 0x4, offset = 0x4, fixed_abs, tag = 'smem constant byte address 0x4 - core index']
  #allocation1 [shape = 'u32[144,128]{1,0:T(1,128)}', space=vmem, size = 0x12000, scoped, tag = 'internal scratch']
  %s0 = inlined_call_operand.vmem [shape: f32[512,32], index: 0, kind: input, shape index: {}]
  %s1 = inlined_call_operand.vmem [shape: f32[3,512,32], index: 1, kind: input, shape index: {}]
  %s2 = inlined_call_operand.vmem [shape: bf16[32,32], index: 2, kind: input, shape index: {}]
  %s3 = inlined_call_operand.vmem [shape: bf16[32,32], index: 3, kind: input, shape index: {}]
  %s4 = inlined_call_operand.vmem [shape: bf16[64,32], index: 4, kind: input, shape index: {}]
  %s5 = inlined_call_operand.vmem [shape: bf16[1,32], index: 5, kind: input, shape index: {}]
  %s6 = inlined_call_operand.vmem [shape: bf16[32,32], index: 6, kind: input, shape index: {}]
  %s7 = inlined_call_operand.vmem [shape: bf16[32,32], index: 7, kind: input, shape index: {}]
  %s8 = inlined_call_operand.vmem [shape: bf16[32,32], index: 8, kind: input, shape index: {}]
  %s9 = inlined_call_operand.vmem [shape: bf16[1,32], index: 9, kind: input, shape index: {}]
  %s10 = inlined_call_operand.vmem [shape: bf16[1,32], index: 10, kind: input, shape index: {}]
  %s11 = inlined_call_operand.vmem [shape: bf16[1,32], index: 11, kind: input, shape index: {}]
  %s12 = inlined_call_operand.vmem [shape: f32[512,128], index: 12, kind: output, shape index: {}]
  %s13 = sld [smem:[#allocation0]]
  $region119: #{update_block.1} parent=0
    _
  %s15 = ssub.s32 1, %s13
  %s16 = scalar_select 0, %s15, %s13
  $region1: #{update_block.1} parent=0
    #allocation2 [shape = 'u8[393216]{0}', space=vmem, size = 0x60000, scoped, tag = 'input window, operand 1']
    loop: start=0, step=1, limit=6
    $region2: #{update_block.1} parent=1 // loop_pre_header
      _
    $region3: #{update_block.1} parent=1 // loop_header
      %s18 = sphi 0, %s22
      %p19 = scmp.ge.s32.totalorder %s18, 6
      %s28 = sphi 0, %s30
      %s31 = sphi 0, %s28
      %s32 = sphi 0, %s31
      %s48 = sphi 0, %s32
      %s54 = sphi 0, %s56
      %s57 = sphi 0, %s54
      %s58 = sphi 0, %s57
      %s74 = sphi 0, %s58
      %s78 = sphi 0, %s78
      %s80 = sphi 0, %s78
      %s81 = sphi 0, %s80
      %s95 = sphi 0, %s81
      %s99 = sphi 0, %s99
      %s101 = sphi 0, %s99
      %s102 = sphi 0, %s101
      %s116 = sphi 0, %s102
      %s120 = sphi 0, %s120
      %s122 = sphi 0, %s120
      %s123 = sphi 0, %s122
      %s137 = sphi 0, %s123
      %s141 = sphi 0, %s141
      %s143 = sphi 0, %s141
      %s144 = sphi 0, %s143
      %s158 = sphi 0, %s144
      %s162 = sphi 0, %s162
      %s164 = sphi 0, %s162
      %s165 = sphi 0, %s164
      %s179 = sphi 0, %s165
      %s183 = sphi 0, %s183
      %s185 = sphi 0, %s183
      %s186 = sphi 0, %s185
      %s200 = sphi 0, %s186
      %s204 = sphi 0, %s204
      %s206 = sphi 0, %s204
      %s207 = sphi 0, %s206
      %s221 = sphi 0, %s207
      %s225 = sphi 0, %s225
      %s227 = sphi 0, %s225
      %s228 = sphi 0, %s227
      %s242 = sphi 0, %s228
      %s246 = sphi 0, %s246
      %s248 = sphi 0, %s246
      %s249 = sphi 0, %s248
      %s263 = sphi 0, %s249
      %s267 = sphi 0, %s267
      %s269 = sphi 0, %s267
      %s270 = sphi 0, %s269
      %s284 = sphi 0, %s270
      %s290 = sphi 0, %s292
      %s293 = sphi 0, %s290
      %s294 = sphi 0, %s293
      %s310 = sphi 0, %s294
    $region4: #{update_block.1} parent=1 // loop_header_branch
      %21 = sbr.rel (%p19) target = $region8
    $region5: #{update_block.1} parent=1 // loop_body
      %s23 = ssub.s32 %s18, 1
      %s24 = ssub.s32 %s18, 2
      %s25 = sadd.s32 %s18, 1
      %s26 = ssub.s32 %s18, %s25
      %p27 = scmp.eq.s32.totalorder %s26, 0
      %s29 = sadd.s32 %s28, 1
      %s30 = scalar_select %p27, %s28, %s29
      %p33 = pneg %p27
      %p34 = scmp.eq.s32.totalorder %s18, 3
      %p35 = por %p33, %p34
      %p36 = scmp.ne.s32.totalorder %s28, %s31
      %p37 = scmp.eq.s32.totalorder %s18, 0
      %p38 = por %p36, %p37
      %p39 = scmp.ne.s32.totalorder %s28, %s31
      %p40 = scmp.eq.s32.totalorder %s23, 3
      %p41 = por %p39, %p40
      %p42 = scmp.ne.s32.totalorder %s31, %s32
      %p43 = scmp.eq.s32.totalorder %s23, 0
      %p44 = por %p42, %p43
      %p45 = scmp.ne.s32.totalorder %s31, %s32
      %p46 = scmp.eq.s32.totalorder %s24, 3
      %p47 = por %p45, %p46
      %p49 = scmp.ne.s32.totalorder %s32, %s48
      %p50 = scmp.eq.s32.totalorder %s24, 0
      %p51 = por %p49, %p50
      %s52 = ssub.s32 %s18, %s25
      %p53 = scmp.eq.s32.totalorder %s52, 0
      %s55 = sadd.s32 %s54, 1
      %s56 = scalar_select %p53, %s54, %s55
      %p59 = pneg %p53
      %p60 = scmp.eq.s32.totalorder %s18, 3
      %p61 = por %p59, %p60
      %p62 = scmp.ne.s32.totalorder %s54, %s57
      %p63 = scmp.eq.s32.totalorder %s18, 0
      %p64 = por %p62, %p63
      %p65 = scmp.ne.s32.totalorder %s54, %s57
      %p66 = scmp.eq.s32.totalorder %s23, 3
      %p67 = por %p65, %p66
      %p68 = scmp.ne.s32.totalorder %s57, %s58
      %p69 = scmp.eq.s32.totalorder %s23, 0
      %p70 = por %p68, %p69
      %p71 = scmp.ne.s32.totalorder %s57, %s58
      %p72 = scmp.eq.s32.totalorder %s24, 3
      %p73 = por %p71, %p72
      %p75 = scmp.ne.s32.totalorder %s58, %s74
      %p76 = scmp.eq.s32.totalorder %s24, 0
      %p77 = por %p75, %p76
      %s79 = sadd.s32 %s78, 1
      %p82 = scmp.eq.s32.totalorder %s18, 3
      %p83 = scmp.ne.s32.totalorder %s78, %s80
      %p84 = scmp.eq.s32.totalorder %s18, 0
      %p85 = por %p83, %p84
      %p86 = scmp.ne.s32.totalorder %s78, %s80
      %p87 = scmp.eq.s32.totalorder %s23, 3
      %p88 = por %p86, %p87
      %p89 = scmp.ne.s32.totalorder %s80, %s81
      %p90 = scmp.eq.s32.totalorder %s23, 0
      %p91 = por %p89, %p90
      %p92 = scmp.ne.s32.totalorder %s80, %s81
      %p93 = scmp.eq.s32.totalorder %s24, 3
      %p94 = por %p92, %p93
      %p96 = scmp.ne.s32.totalorder %s81, %s95
      %p97 = scmp.eq.s32.totalorder %s24, 0
      %p98 = por %p96, %p97
      %s100 = sadd.s32 %s99, 1
      %p103 = scmp.eq.s32.totalorder %s18, 3
      %p104 = scmp.ne.s32.totalorder %s99, %s101
      %p105 = scmp.eq.s32.totalorder %s18, 0
      %p106 = por %p104, %p105
      %p107 = scmp.ne.s32.totalorder %s99, %s101
      %p108 = scmp.eq.s32.totalorder %s23, 3
      %p109 = por %p107, %p108
      %p110 = scmp.ne.s32.totalorder %s101, %s102
      %p111 = scmp.eq.s32.totalorder %s23, 0
      %p112 = por %p110, %p111
      %p113 = scmp.ne.s32.totalorder %s101, %s102
      %p114 = scmp.eq.s32.totalorder %s24, 3
      %p115 = por %p113, %p114
      %p117 = scmp.ne.s32.totalorder %s102, %s116
      %p118 = scmp.eq.s32.totalorder %s24, 0
      %p119 = por %p117, %p118
      %s121 = sadd.s32 %s120, 1
      %p124 = scmp.eq.s32.totalorder %s18, 3
      %p125 = scmp.ne.s32.totalorder %s120, %s122
      %p126 = scmp.eq.s32.totalorder %s18, 0
      %p127 = por %p125, %p126
      %p128 = scmp.ne.s32.totalorder %s120, %s122
      %p129 = scmp.eq.s32.totalorder %s23, 3
      %p130 = por %p128, %p129
      %p131 = scmp.ne.s32.totalorder %s122, %s123
      %p132 = scmp.eq.s32.totalorder %s23, 0
      %p133 = por %p131, %p132
      %p134 = scmp.ne.s32.totalorder %s122, %s123
      %p135 = scmp.eq.s32.totalorder %s24, 3
      %p136 = por %p134, %p135
      %p138 = scmp.ne.s32.totalorder %s123, %s137
      %p139 = scmp.eq.s32.totalorder %s24, 0
      %p140 = por %p138, %p139
      %s142 = sadd.s32 %s141, 1
      %p145 = scmp.eq.s32.totalorder %s18, 3
      %p146 = scmp.ne.s32.totalorder %s141, %s143
      %p147 = scmp.eq.s32.totalorder %s18, 0
      %p148 = por %p146, %p147
      %p149 = scmp.ne.s32.totalorder %s141, %s143
      %p150 = scmp.eq.s32.totalorder %s23, 3
      %p151 = por %p149, %p150
      %p152 = scmp.ne.s32.totalorder %s143, %s144
      %p153 = scmp.eq.s32.totalorder %s23, 0
      %p154 = por %p152, %p153
      %p155 = scmp.ne.s32.totalorder %s143, %s144
      %p156 = scmp.eq.s32.totalorder %s24, 3
      %p157 = por %p155, %p156
      %p159 = scmp.ne.s32.totalorder %s144, %s158
      %p160 = scmp.eq.s32.totalorder %s24, 0
      %p161 = por %p159, %p160
      %s163 = sadd.s32 %s162, 1
      %p166 = scmp.eq.s32.totalorder %s18, 3
      %p167 = scmp.ne.s32.totalorder %s162, %s164
      %p168 = scmp.eq.s32.totalorder %s18, 0
      %p169 = por %p167, %p168
      %p170 = scmp.ne.s32.totalorder %s162, %s164
      %p171 = scmp.eq.s32.totalorder %s23, 3
      %p172 = por %p170, %p171
      %p173 = scmp.ne.s32.totalorder %s164, %s165
      %p174 = scmp.eq.s32.totalorder %s23, 0
      %p175 = por %p173, %p174
      %p176 = scmp.ne.s32.totalorder %s164, %s165
      %p177 = scmp.eq.s32.totalorder %s24, 3
      %p178 = por %p176, %p177
      %p180 = scmp.ne.s32.totalorder %s165, %s179
      %p181 = scmp.eq.s32.totalorder %s24, 0
      %p182 = por %p180, %p181
      %s184 = sadd.s32 %s183, 1
      %p187 = scmp.eq.s32.totalorder %s18, 3
      %p188 = scmp.ne.s32.totalorder %s183, %s185
      %p189 = scmp.eq.s32.totalorder %s18, 0
      %p190 = por %p188, %p189
      %p191 = scmp.ne.s32.totalorder %s183, %s185
      %p192 = scmp.eq.s32.totalorder %s23, 3
      %p193 = por %p191, %p192
      %p194 = scmp.ne.s32.totalorder %s185, %s186
      %p195 = scmp.eq.s32.totalorder %s23, 0
      %p196 = por %p194, %p195
      %p197 = scmp.ne.s32.totalorder %s185, %s186
      %p198 = scmp.eq.s32.totalorder %s24, 3
      %p199 = por %p197, %p198
      %p201 = scmp.ne.s32.totalorder %s186, %s200
      %p202 = scmp.eq.s32.totalorder %s24, 0
      %p203 = por %p201, %p202
      %s205 = sadd.s32 %s204, 1
      %p208 = scmp.eq.s32.totalorder %s18, 3
      %p209 = scmp.ne.s32.totalorder %s204, %s206
      %p210 = scmp.eq.s32.totalorder %s18, 0
      %p211 = por %p209, %p210
      %p212 = scmp.ne.s32.totalorder %s204, %s206
      %p213 = scmp.eq.s32.totalorder %s23, 3
      %p214 = por %p212, %p213
      %p215 = scmp.ne.s32.totalorder %s206, %s207
      %p216 = scmp.eq.s32.totalorder %s23, 0
      %p217 = por %p215, %p216
      %p218 = scmp.ne.s32.totalorder %s206, %s207
      %p219 = scmp.eq.s32.totalorder %s24, 3
      %p220 = por %p218, %p219
      %p222 = scmp.ne.s32.totalorder %s207, %s221
      %p223 = scmp.eq.s32.totalorder %s24, 0
      %p224 = por %p222, %p223
      %s226 = sadd.s32 %s225, 1
      %p229 = scmp.eq.s32.totalorder %s18, 3
      %p230 = scmp.ne.s32.totalorder %s225, %s227
      %p231 = scmp.eq.s32.totalorder %s18, 0
      %p232 = por %p230, %p231
      %p233 = scmp.ne.s32.totalorder %s225, %s227
      %p234 = scmp.eq.s32.totalorder %s23, 3
      %p235 = por %p233, %p234
      %p236 = scmp.ne.s32.totalorder %s227, %s228
      %p237 = scmp.eq.s32.totalorder %s23, 0
      %p238 = por %p236, %p237
      %p239 = scmp.ne.s32.totalorder %s227, %s228
      %p240 = scmp.eq.s32.totalorder %s24, 3
      %p241 = por %p239, %p240
      %p243 = scmp.ne.s32.totalorder %s228, %s242
      %p244 = scmp.eq.s32.totalorder %s24, 0
      %p245 = por %p243, %p244
      %s247 = sadd.s32 %s246, 1
      %p250 = scmp.eq.s32.totalorder %s18, 3
      %p251 = scmp.ne.s32.totalorder %s246, %s248
      %p252 = scmp.eq.s32.totalorder %s18, 0
      %p253 = por %p251, %p252
      %p254 = scmp.ne.s32.totalorder %s246, %s248
      %p255 = scmp.eq.s32.totalorder %s23, 3
      %p256 = por %p254, %p255
      %p257 = scmp.ne.s32.totalorder %s248, %s249
      %p258 = scmp.eq.s32.totalorder %s23, 0
      %p259 = por %p257, %p258
      %p260 = scmp.ne.s32.totalorder %s248, %s249
      %p261 = scmp.eq.s32.totalorder %s24, 3
      %p262 = por %p260, %p261
      %p264 = scmp.ne.s32.totalorder %s249, %s263
      %p265 = scmp.eq.s32.totalorder %s24, 0
      %p266 = por %p264, %p265
      %s268 = sadd.s32 %s267, 1
      %p271 = scmp.eq.s32.totalorder %s18, 3
      %p272 = scmp.ne.s32.totalorder %s267, %s269
      %p273 = scmp.eq.s32.totalorder %s18, 0
      %p274 = por %p272, %p273
      %p275 = scmp.ne.s32.totalorder %s267, %s269
      %p276 = scmp.eq.s32.totalorder %s23, 3
      %p277 = por %p275, %p276
      %p278 = scmp.ne.s32.totalorder %s269, %s270
      %p279 = scmp.eq.s32.totalorder %s23, 0
      %p280 = por %p278, %p279
      %p281 = scmp.ne.s32.totalorder %s269, %s270
      %p282 = scmp.eq.s32.totalorder %s24, 3
      %p283 = por %p281, %p282
      %p285 = scmp.ne.s32.totalorder %s270, %s284
      %p286 = scmp.eq.s32.totalorder %s24, 0
      %p287 = por %p285, %p286
      %s288 = ssub.s32 %s18, %s25
      %p289 = scmp.eq.s32.totalorder %s288, 0
      %s291 = sadd.s32 %s290, 1
      %s292 = scalar_select %p289, %s290, %s291
      %p295 = pneg %p289
      %p296 = scmp.eq.s32.totalorder %s18, 3
      %p297 = por %p295, %p296
      %p298 = scmp.ne.s32.totalorder %s290, %s293
      %p299 = scmp.eq.s32.totalorder %s18, 0
      %p300 = por %p298, %p299
      %p301 = scmp.ne.s32.totalorder %s290, %s293
      %p302 = scmp.eq.s32.totalorder %s23, 3
      %p303 = por %p301, %p302
      %p304 = scmp.ne.s32.totalorder %s293, %s294
      %p305 = scmp.eq.s32.totalorder %s23, 0
      %p306 = por %p304, %p305
      %p307 = scmp.ne.s32.totalorder %s293, %s294
      %p308 = scmp.eq.s32.totalorder %s24, 3
      %p309 = por %p307, %p308
      %p311 = scmp.ne.s32.totalorder %s294, %s310
      %p312 = scmp.eq.s32.totalorder %s24, 0
      %p313 = por %p311, %p312
      %p314 = scmp.le.s32.totalorder 1, %s18
      %p315 = scmp.lt.s32.totalorder %s18, 5
      %p316 = pnand %p314, %p315
      %p317 = pneg %p316
      // Predicated region
      $region9: #{update_block.1} parent=5 // pred_check
        _
      $region10: #{update_block.1} parent=5 // pred_check_branch
        %319 = sbr.rel (%p316) target = $region12
      $region11: #{update_block.1} parent=5 // pred_region
        %s320 = ssub.s32 %s18, 1
        // Predicated region
        $region13: #{update_block.1} parent=11 // pred_check
          %p321 = pneg %p91
        $region14: #{update_block.1} parent=11 // pred_check_branch
          %323 = sbr.rel (%p321) target = $region16
        $region15: #{update_block.1} parent=11 // pred_region
          _
        $region16: #{update_block.1} parent=11 // pred_fallthru
          _
        // Predicated region
        $region17: #{update_block.1} parent=11 // pred_check
          %p324 = pneg %p112
        $region18: #{update_block.1} parent=11 // pred_check_branch
          %326 = sbr.rel (%p324) target = $region20
        $region19: #{update_block.1} parent=11 // pred_region
          _
        $region20: #{update_block.1} parent=11 // pred_fallthru
          _
        // Predicated region
        $region21: #{update_block.1} parent=11 // pred_check
          %p327 = pneg %p133
        $region22: #{update_block.1} parent=11 // pred_check_branch
          %329 = sbr.rel (%p327) target = $region24
        $region23: #{update_block.1} parent=11 // pred_region
          _
        $region24: #{update_block.1} parent=11 // pred_fallthru
          _
        // Predicated region
        $region25: #{update_block.1} parent=11 // pred_check
          %p330 = pneg %p154
        $region26: #{update_block.1} parent=11 // pred_check_branch
          %332 = sbr.rel (%p330) target = $region28
        $region27: #{update_block.1} parent=11 // pred_region
          _
        $region28: #{update_block.1} parent=11 // pred_fallthru
          _
        // Predicated region
        $region29: #{update_block.1} parent=11 // pred_check
          %p333 = pneg %p175
        $region30: #{update_block.1} parent=11 // pred_check_branch
          %335 = sbr.rel (%p333) target = $region32
        $region31: #{update_block.1} parent=11 // pred_region
          _
        $region32: #{update_block.1} parent=11 // pred_fallthru
          _
        // Predicated region
        $region33: #{update_block.1} parent=11 // pred_check
          %p336 = pneg %p196
        $region34: #{update_block.1} parent=11 // pred_check_branch
          %338 = sbr.rel (%p336) target = $region36
        $region35: #{update_block.1} parent=11 // pred_region
          _
        $region36: #{update_block.1} parent=11 // pred_fallthru
          _
        // Predicated region
        $region37: #{update_block.1} parent=11 // pred_check
          %p339 = pneg %p217
        $region38: #{update_block.1} parent=11 // pred_check_branch
          %341 = sbr.rel (%p339) target = $region40
        $region39: #{update_block.1} parent=11 // pred_region
          _
        $region40: #{update_block.1} parent=11 // pred_fallthru
          _
        // Predicated region
        $region41: #{update_block.1} parent=11 // pred_check
          %p342 = pneg %p238
        $region42: #{update_block.1} parent=11 // pred_check_branch
          %344 = sbr.rel (%p342) target = $region44
        $region43: #{update_block.1} parent=11 // pred_region
          _
        $region44: #{update_block.1} parent=11 // pred_fallthru
          _
        // Predicated region
        $region45: #{update_block.1} parent=11 // pred_check
          %p345 = pneg %p259
        $region46: #{update_block.1} parent=11 // pred_check_branch
          %347 = sbr.rel (%p345) target = $region48
        $region47: #{update_block.1} parent=11 // pred_region
          _
        $region48: #{update_block.1} parent=11 // pred_fallthru
          _
        // Predicated region
        $region49: #{update_block.1} parent=11 // pred_check
          %p348 = pneg %p280
        $region50: #{update_block.1} parent=11 // pred_check_branch
          %350 = sbr.rel (%p348) target = $region52
        $region51: #{update_block.1} parent=11 // pred_region
          _
        $region52: #{update_block.1} parent=11 // pred_fallthru
          _
      $region12: #{update_block.1} parent=5 // pred_fallthru
        _
      %p351 = scmp.lt.s32.totalorder %s18, 4
      // Predicated region
      $region53: #{update_block.1} parent=5 // pred_check
        %p352 = pneg %p351
      $region54: #{update_block.1} parent=5 // pred_check_branch
        %354 = sbr.rel (%p352) target = $region56
      $region55: #{update_block.1} parent=5 // pred_region
        // Predicated region
        $region57: #{update_block.1} parent=55 // pred_check
          %p355 = pneg %p38
        $region58: #{update_block.1} parent=55 // pred_check_branch
          %357 = sbr.rel (%p355) target = $region60
        $region59: #{update_block.1} parent=55 // pred_region
          %s358 = smul.u32 16, %s18
          %p359 = scmp.lt.s32.totalorder %s358, 63
          %s360 = scalar_select %p359, %s358, 63
          %s361 = smul.addr %s360, 8
          %s362 = scalar_lea.vmem %s0, %s361
          %s363 = smul.u32 16, %s18
        $region60: #{update_block.1} parent=55 // pred_fallthru
          _
        // Predicated region
        $region61: #{update_block.1} parent=55 // pred_check
          %p364 = pneg %p64
        $region62: #{update_block.1} parent=55 // pred_check_branch
          %366 = sbr.rel (%p364) target = $region64
        $region63: #{update_block.1} parent=55 // pred_region
          %s367 = sand.u32 %s54, 1
          %s368 = sand.u32 %s54, 1
          %s369 = smul.addr %s368, 384
          %s370 = scalar_lea.vmem [#allocation2], %s369
          %s371 = smul.u32 16, %s18
          %s372 = smul.addr %s371, 8
          %s373 = scalar_lea.vmem %s1, %s372
          // Predicated region
          $region65: #{update_block.1} parent=63 // pred_check
            _
          $region66: #{update_block.1} parent=63 // pred_check_branch
            %375 = sbr.rel (0) target = $region68
          $region67: #{update_block.1} parent=63 // pred_region
            // Predicated region
            $region69: #{update_block.1} parent=67 // pred_check
              _
            $region70: #{update_block.1} parent=67 // pred_check_branch
              %377 = sbr.rel (0) target = $region72
            $region71: #{update_block.1} parent=67 // pred_region
              // Predicated region
              $region84: #{update_block.1} parent=71 // pred_check
                _
              $region85: #{update_block.1} parent=71 // pred_check_branch
                %486 = sbr.rel (0) target = $region87
              $region86: #{update_block.1} parent=71 // pred_region
                loop: start=0, step=1, limit=1
                $region88: #{update_block.1} parent=86 // loop_pre_header
                  _
                $region89: #{update_block.1} parent=86 // loop_header
                  %s488 = sphi 0, %s492
                  %p489 = scmp.ge.s32.totalorder %s488, 1
                  %s493 = sphi %s373, %s373
                  %s494 = sphi %s370, %s370
                $region90: #{update_block.1} parent=86 // loop_header_branch
                  %491 = sbr.rel (%p489) target = $region94
                $region91: #{update_block.1} parent=86 // loop_body
                  %v495 = vld [vmem:[%s493] sm:$0xff]
                  %496 = vst [vmem:[%s494] sm:$0xff] %v495
                  %v497 = vld [vmem:[%s493 + $0x8] sm:$0xff]
                  %498 = vst [vmem:[%s494 + $0x8] sm:$0xff] %v497
                  %v499 = vld [vmem:[%s493 + $0x10] sm:$0xff]
                  %500 = vst [vmem:[%s494 + $0x10] sm:$0xff] %v499
                  %v501 = vld [vmem:[%s493 + $0x18] sm:$0xff]
                  %502 = vst [vmem:[%s494 + $0x18] sm:$0xff] %v501
                  %v503 = vld [vmem:[%s493 + $0x20] sm:$0xff]
                  %504 = vst [vmem:[%s494 + $0x20] sm:$0xff] %v503
                  %v505 = vld [vmem:[%s493 + $0x28] sm:$0xff]
                  %506 = vst [vmem:[%s494 + $0x28] sm:$0xff] %v505
                  %v507 = vld [vmem:[%s493 + $0x30] sm:$0xff]
                  %508 = vst [vmem:[%s494 + $0x30] sm:$0xff] %v507
                  %v509 = vld [vmem:[%s493 + $0x38] sm:$0xff]
                  %510 = vst [vmem:[%s494 + $0x38] sm:$0xff] %v509
                  %v511 = vld [vmem:[%s493 + $0x40] sm:$0xff]
                  %512 = vst [vmem:[%s494 + $0x40] sm:$0xff] %v511
                  %v513 = vld [vmem:[%s493 + $0x48] sm:$0xff]
                  %514 = vst [vmem:[%s494 + $0x48] sm:$0xff] %v513
                  %v515 = vld [vmem:[%s493 + $0x50] sm:$0xff]
                  %516 = vst [vmem:[%s494 + $0x50] sm:$0xff] %v515
                  %v517 = vld [vmem:[%s493 + $0x58] sm:$0xff]
                  %518 = vst [vmem:[%s494 + $0x58] sm:$0xff] %v517
                  %v519 = vld [vmem:[%s493 + $0x60] sm:$0xff]
                  %520 = vst [vmem:[%s494 + $0x60] sm:$0xff] %v519
                  %v521 = vld [vmem:[%s493 + $0x68] sm:$0xff]
                  %522 = vst [vmem:[%s494 + $0x68] sm:$0xff] %v521
                  %v523 = vld [vmem:[%s493 + $0x70] sm:$0xff]
                  %524 = vst [vmem:[%s494 + $0x70] sm:$0xff] %v523
                  %v525 = vld [vmem:[%s493 + $0x78] sm:$0xff]
                  %526 = vst [vmem:[%s494 + $0x78] sm:$0xff] %v525
                  %v527 = vld [vmem:[%s493 + $0x200] sm:$0xff]
                  %528 = vst [vmem:[%s494 + $0x80] sm:$0xff] %v527
                  %v529 = vld [vmem:[%s493 + $0x208] sm:$0xff]
                  %530 = vst [vmem:[%s494 + $0x88] sm:$0xff] %v529
                  %v531 = vld [vmem:[%s493 + $0x210] sm:$0xff]
                  %532 = vst [vmem:[%s494 + $0x90] sm:$0xff] %v531
                  %v533 = vld [vmem:[%s493 + $0x218] sm:$0xff]
                  %534 = vst [vmem:[%s494 + $0x98] sm:$0xff] %v533
                  %v535 = vld [vmem:[%s493 + $0x220] sm:$0xff]
                  %536 = vst [vmem:[%s494 + $0xa0] sm:$0xff] %v535
                  %v537 = vld [vmem:[%s493 + $0x228] sm:$0xff]
                  %538 = vst [vmem:[%s494 + $0xa8] sm:$0xff] %v537
                  %v539 = vld [vmem:[%s493 + $0x230] sm:$0xff]
                  %540 = vst [vmem:[%s494 + $0xb0] sm:$0xff] %v539
                  %v541 = vld [vmem:[%s493 + $0x238] sm:$0xff]
                  %542 = vst [vmem:[%s494 + $0xb8] sm:$0xff] %v541
                  %v543 = vld [vmem:[%s493 + $0x240] sm:$0xff]
                  %544 = vst [vmem:[%s494 + $0xc0] sm:$0xff] %v543
                  %v545 = vld [vmem:[%s493 + $0x248] sm:$0xff]
                  %546 = vst [vmem:[%s494 + $0xc8] sm:$0xff] %v545
                  %v547 = vld [vmem:[%s493 + $0x250] sm:$0xff]
                  %548 = vst [vmem:[%s494 + $0xd0] sm:$0xff] %v547
                  %v549 = vld [vmem:[%s493 + $0x258] sm:$0xff]
                  %550 = vst [vmem:[%s494 + $0xd8] sm:$0xff] %v549
                  %v551 = vld [vmem:[%s493 + $0x260] sm:$0xff]
                  %552 = vst [vmem:[%s494 + $0xe0] sm:$0xff] %v551
                  %v553 = vld [vmem:[%s493 + $0x268] sm:$0xff]
                  %554 = vst [vmem:[%s494 + $0xe8] sm:$0xff] %v553
                  %v555 = vld [vmem:[%s493 + $0x270] sm:$0xff]
                  %556 = vst [vmem:[%s494 + $0xf0] sm:$0xff] %v555
                  %v557 = vld [vmem:[%s493 + $0x278] sm:$0xff]
                  %558 = vst [vmem:[%s494 + $0xf8] sm:$0xff] %v557
                  %v559 = vld [vmem:[%s493 + $0x400] sm:$0xff]
                  %560 = vst [vmem:[%s494 + $0x100] sm:$0xff] %v559
                  %v561 = vld [vmem:[%s493 + $0x408] sm:$0xff]
                  %562 = vst [vmem:[%s494 + $0x108] sm:$0xff] %v561
                  %v563 = vld [vmem:[%s493 + $0x410] sm:$0xff]
                  %564 = vst [vmem:[%s494 + $0x110] sm:$0xff] %v563
                  %v565 = vld [vmem:[%s493 + $0x418] sm:$0xff]
                  %566 = vst [vmem:[%s494 + $0x118] sm:$0xff] %v565
                  %v567 = vld [vmem:[%s493 + $0x420] sm:$0xff]
                  %568 = vst [vmem:[%s494 + $0x120] sm:$0xff] %v567
                  %v569 = vld [vmem:[%s493 + $0x428] sm:$0xff]
                  %570 = vst [vmem:[%s494 + $0x128] sm:$0xff] %v569
                  %v571 = vld [vmem:[%s493 + $0x430] sm:$0xff]
                  %572 = vst [vmem:[%s494 + $0x130] sm:$0xff] %v571
                  %v573 = vld [vmem:[%s493 + $0x438] sm:$0xff]
                  %574 = vst [vmem:[%s494 + $0x138] sm:$0xff] %v573
                  %v575 = vld [vmem:[%s493 + $0x440] sm:$0xff]
                  %576 = vst [vmem:[%s494 + $0x140] sm:$0xff] %v575
                  %v577 = vld [vmem:[%s493 + $0x448] sm:$0xff]
                  %578 = vst [vmem:[%s494 + $0x148] sm:$0xff] %v577
                  %v579 = vld [vmem:[%s493 + $0x450] sm:$0xff]
                  %580 = vst [vmem:[%s494 + $0x150] sm:$0xff] %v579
                  %v581 = vld [vmem:[%s493 + $0x458] sm:$0xff]
                  %582 = vst [vmem:[%s494 + $0x158] sm:$0xff] %v581
                  %v583 = vld [vmem:[%s493 + $0x460] sm:$0xff]
                  %584 = vst [vmem:[%s494 + $0x160] sm:$0xff] %v583
                  %v585 = vld [vmem:[%s493 + $0x468] sm:$0xff]
                  %586 = vst [vmem:[%s494 + $0x168] sm:$0xff] %v585
                  %v587 = vld [vmem:[%s493 + $0x470] sm:$0xff]
                  %588 = vst [vmem:[%s494 + $0x170] sm:$0xff] %v587
                  %v589 = vld [vmem:[%s493 + $0x478] sm:$0xff]
                  %590 = vst [vmem:[%s494 + $0x178] sm:$0xff] %v589
                $region92: #{update_block.1} parent=86 // loop_footer
                  %s492 = sadd.s32 1, %s488
                $region93: #{update_block.1} parent=86 // loop_footer_branch
                  %487 = sbr.rel target = $region89
                $region94: #{update_block.1} parent=86 // loop_exit
                  _
              $region87: #{update_block.1} parent=71 // pred_fallthru
                _
              // Predicated region
              $region95: #{update_block.1} parent=71 // pred_check
                _
              $region96: #{update_block.1} parent=71 // pred_check_branch
                %592 = sbr.rel target = $region98
              $region97: #{update_block.1} parent=71 // pred_region
                _
              $region98: #{update_block.1} parent=71 // pred_fallthru
                _
            $region72: #{update_block.1} parent=67 // pred_fallthru
              _
            // Predicated region
            $region73: #{update_block.1} parent=67 // pred_check
              _
            $region74: #{update_block.1} parent=67 // pred_check_branch
              %379 = sbr.rel target = $region76
            $region75: #{update_block.1} parent=67 // pred_region
              loop: start=0, step=1, limit=1
              $region77: #{update_block.1} parent=75 // loop_pre_header
                _
              $region78: #{update_block.1} parent=75 // loop_header
                %s382 = sphi 0, %s386
                %p383 = scmp.ge.s32.totalorder %s382, 1
                %s387 = sphi %s373, %s373
                %s388 = sphi %s370, %s370
              $region79: #{update_block.1} parent=75 // loop_header_branch
                %385 = sbr.rel (%p383) target = $region83
              $region80: #{update_block.1} parent=75 // loop_body
                %v389 = vld [vmem:[%s387] sm:$0xff]
                %390 = vst [vmem:[%s388] sm:$0xff] %v389
                %v391 = vld [vmem:[%s387 + $0x8] sm:$0xff]
                %392 = vst [vmem:[%s388 + $0x8] sm:$0xff] %v391
                %v393 = vld [vmem:[%s387 + $0x10] sm:$0xff]
                %394 = vst [vmem:[%s388 + $0x10] sm:$0xff] %v393
                %v395 = vld [vmem:[%s387 + $0x18] sm:$0xff]
                %396 = vst [vmem:[%s388 + $0x18] sm:$0xff] %v395
                %v397 = vld [vmem:[%s387 + $0x20] sm:$0xff]
                %398 = vst [vmem:[%s388 + $0x20] sm:$0xff] %v397
                %v399 = vld [vmem:[%s387 + $0x28] sm:$0xff]
                %400 = vst [vmem:[%s388 + $0x28] sm:$0xff] %v399
                %v401 = vld [vmem:[%s387 + $0x30] sm:$0xff]
                %402 = vst [vmem:[%s388 + $0x30] sm:$0xff] %v401
                %v403 = vld [vmem:[%s387 + $0x38] sm:$0xff]
                %404 = vst [vmem:[%s388 + $0x38] sm:$0xff] %v403
                %v405 = vld [vmem:[%s387 + $0x40] sm:$0xff]
                %406 = vst [vmem:[%s388 + $0x40] sm:$0xff] %v405
                %v407 = vld [vmem:[%s387 + $0x48] sm:$0xff]
                %408 = vst [vmem:[%s388 + $0x48] sm:$0xff] %v407
                %v409 = vld [vmem:[%s387 + $0x50] sm:$0xff]
                %410 = vst [vmem:[%s388 + $0x50] sm:$0xff] %v409
                %v411 = vld [vmem:[%s387 + $0x58] sm:$0xff]
                %412 = vst [vmem:[%s388 + $0x58] sm:$0xff] %v411
                %v413 = vld [vmem:[%s387 + $0x60] sm:$0xff]
                %414 = vst [vmem:[%s388 + $0x60] sm:$0xff] %v413
                %v415 = vld [vmem:[%s387 + $0x68] sm:$0xff]
                %416 = vst [vmem:[%s388 + $0x68] sm:$0xff] %v415
                %v417 = vld [vmem:[%s387 + $0x70] sm:$0xff]
                %418 = vst [vmem:[%s388 + $0x70] sm:$0xff] %v417
                %v419 = vld [vmem:[%s387 + $0x78] sm:$0xff]
                %420 = vst [vmem:[%s388 + $0x78] sm:$0xff] %v419
                %v421 = vld [vmem:[%s387 + $0x200] sm:$0xff]
                %422 = vst [vmem:[%s388 + $0x80] sm:$0xff] %v421
                %v423 = vld [vmem:[%s387 + $0x208] sm:$0xff]
                %424 = vst [vmem:[%s388 + $0x88] sm:$0xff] %v423
                %v425 = vld [vmem:[%s387 + $0x210] sm:$0xff]
                %426 = vst [vmem:[%s388 + $0x90] sm:$0xff] %v425
                %v427 = vld [vmem:[%s387 + $0x218] sm:$0xff]
                %428 = vst [vmem:[%s388 + $0x98] sm:$0xff] %v427
                %v429 = vld [vmem:[%s387 + $0x220] sm:$0xff]
                %430 = vst [vmem:[%s388 + $0xa0] sm:$0xff] %v429
                %v431 = vld [vmem:[%s387 + $0x228] sm:$0xff]
                %432 = vst [vmem:[%s388 + $0xa8] sm:$0xff] %v431
                %v433 = vld [vmem:[%s387 + $0x230] sm:$0xff]
                %434 = vst [vmem:[%s388 + $0xb0] sm:$0xff] %v433
                %v435 = vld [vmem:[%s387 + $0x238] sm:$0xff]
                %436 = vst [vmem:[%s388 + $0xb8] sm:$0xff] %v435
                %v437 = vld [vmem:[%s387 + $0x240] sm:$0xff]
                %438 = vst [vmem:[%s388 + $0xc0] sm:$0xff] %v437
                %v439 = vld [vmem:[%s387 + $0x248] sm:$0xff]
                %440 = vst [vmem:[%s388 + $0xc8] sm:$0xff] %v439
                %v441 = vld [vmem:[%s387 + $0x250] sm:$0xff]
                %442 = vst [vmem:[%s388 + $0xd0] sm:$0xff] %v441
                %v443 = vld [vmem:[%s387 + $0x258] sm:$0xff]
                %444 = vst [vmem:[%s388 + $0xd8] sm:$0xff] %v443
                %v445 = vld [vmem:[%s387 + $0x260] sm:$0xff]
                %446 = vst [vmem:[%s388 + $0xe0] sm:$0xff] %v445
                %v447 = vld [vmem:[%s387 + $0x268] sm:$0xff]
                %448 = vst [vmem:[%s388 + $0xe8] sm:$0xff] %v447
                %v449 = vld [vmem:[%s387 + $0x270] sm:$0xff]
                %450 = vst [vmem:[%s388 + $0xf0] sm:$0xff] %v449
                %v451 = vld [vmem:[%s387 + $0x278] sm:$0xff]
                %452 = vst [vmem:[%s388 + $0xf8] sm:$0xff] %v451
                %v453 = vld [vmem:[%s387 + $0x400] sm:$0xff]
                %454 = vst [vmem:[%s388 + $0x100] sm:$0xff] %v453
                %v455 = vld [vmem:[%s387 + $0x408] sm:$0xff]
                %456 = vst [vmem:[%s388 + $0x108] sm:$0xff] %v455
                %v457 = vld [vmem:[%s387 + $0x410] sm:$0xff]
                %458 = vst [vmem:[%s388 + $0x110] sm:$0xff] %v457
                %v459 = vld [vmem:[%s387 + $0x418] sm:$0xff]
                %460 = vst [vmem:[%s388 + $0x118] sm:$0xff] %v459
                %v461 = vld [vmem:[%s387 + $0x420] sm:$0xff]
                %462 = vst [vmem:[%s388 + $0x120] sm:$0xff] %v461
                %v463 = vld [vmem:[%s387 + $0x428] sm:$0xff]
                %464 = vst [vmem:[%s388 + $0x128] sm:$0xff] %v463
                %v465 = vld [vmem:[%s387 + $0x430] sm:$0xff]
                %466 = vst [vmem:[%s388 + $0x130] sm:$0xff] %v465
                %v467 = vld [vmem:[%s387 + $0x438] sm:$0xff]
                %468 = vst [vmem:[%s388 + $0x138] sm:$0xff] %v467
                %v469 = vld [vmem:[%s387 + $0x440] sm:$0xff]
                %470 = vst [vmem:[%s388 + $0x140] sm:$0xff] %v469
                %v471 = vld [vmem:[%s387 + $0x448] sm:$0xff]
                %472 = vst [vmem:[%s388 + $0x148] sm:$0xff] %v471
                %v473 = vld [vmem:[%s387 + $0x450] sm:$0xff]
                %474 = vst [vmem:[%s388 + $0x150] sm:$0xff] %v473
                %v475 = vld [vmem:[%s387 + $0x458] sm:$0xff]
                %476 = vst [vmem:[%s388 + $0x158] sm:$0xff] %v475
                %v477 = vld [vmem:[%s387 + $0x460] sm:$0xff]
                %478 = vst [vmem:[%s388 + $0x160] sm:$0xff] %v477
                %v479 = vld [vmem:[%s387 + $0x468] sm:$0xff]
                %480 = vst [vmem:[%s388 + $0x168] sm:$0xff] %v479
                %v481 = vld [vmem:[%s387 + $0x470] sm:$0xff]
                %482 = vst [vmem:[%s388 + $0x170] sm:$0xff] %v481
                %v483 = vld [vmem:[%s387 + $0x478] sm:$0xff]
                %484 = vst [vmem:[%s388 + $0x178] sm:$0xff] %v483
              $region81: #{update_block.1} parent=75 // loop_footer
                %s386 = sadd.s32 1, %s382
              $region82: #{update_block.1} parent=75 // loop_footer_branch
                %381 = sbr.rel target = $region78
              $region83: #{update_block.1} parent=75 // loop_exit
                _
            $region76: #{update_block.1} parent=67 // pred_fallthru
              _
          $region68: #{update_block.1} parent=63 // pred_fallthru
            _
          %593 = vnop
        $region64: #{update_block.1} parent=55 // pred_fallthru
          _
      $region56: #{update_block.1} parent=5 // pred_fallthru
        _
      %p594 = scmp.le.s32.totalorder 1, %s18
      %p595 = scmp.lt.s32.totalorder %s18, 5
      %p596 = pnand %p594, %p595
      %p597 = pneg %p596
      // Predicated region
      $region99: #{update_block.1} parent=5 // pred_check
        _
      $region100: #{update_block.1} parent=5 // pred_check_branch
        %599 = sbr.rel (%p596) target = $region102
      $region101: #{update_block.1} parent=5 // pred_region
        %s600 = ssub.s32 %s18, 1
        %s601 = sand.u32 %s57, 1
        %s602 = sand.u32 %s57, 1
        %s603 = smul.addr %s602, 384
        %s604 = scalar_lea.vmem [#allocation2], %s603
        // Predicated region
        $region103: #{update_block.1} parent=101 // pred_check
          %p605 = pneg %p70
        $region104: #{update_block.1} parent=101 // pred_check_branch
          %607 = sbr.rel (%p605) target = $region106
        $region105: #{update_block.1} parent=101 // pred_region
          _
        $region106: #{update_block.1} parent=101 // pred_fallthru
          _
        %s608 = smul.u32 16, %s23
        %p609 = scmp.lt.s32.totalorder %s608, 63
        %s610 = scalar_select %p609, %s608, 63
        %s611 = smul.addr %s610, 8
        %s612 = scalar_lea.vmem %s0, %s611
        %p613 = pneg %p44
        %p614 = pneg %p41
        %s615 = sand.u32 %s57, 1
        %s616 = sand.u32 %s57, 1
        %s617 = smul.addr %s616, 384
        %s618 = scalar_lea.vmem [#allocation2], %s617
        %p619 = pneg %p70
        %p620 = pneg %p67
        %p621 = pneg %p91
        %p622 = pneg %p88
        %p623 = pneg %p112
        %p624 = pneg %p109
        %p625 = pneg %p133
        %p626 = pneg %p130
        %p627 = pneg %p154
        %p628 = pneg %p151
        %p629 = pneg %p175
        %p630 = pneg %p172
        %p631 = pneg %p196
        %p632 = pneg %p193
        %p633 = pneg %p217
        %p634 = pneg %p214
        %p635 = pneg %p238
        %p636 = pneg %p235
        %p637 = pneg %p259
        %p638 = pneg %p256
        %p639 = pneg %p280
        %p640 = pneg %p277
        %p641 = pneg %p306
        %p642 = pneg %p303
        %s643 = smul.u32 16, %s23
        %p644 = scmp.lt.s32.totalorder %s643, 63
        %s645 = scalar_select %p644, %s643, 63
        %s646 = smul.addr %s645, 8
        %s647 = scalar_lea.vmem %s12, %s646
        %s648 = smul.u32 16, %s23
        %p649 = scmp.lt.s32.totalorder %s648, 63
        %s650 = scalar_select %p649, %s648, 63
        %s651 = smul.addr %s650, 8
        %s652 = scalar_lea.vmem %s0, %s651
        %s653 = smul.u32 16, %s23
        %s654 = smul.u32 16, %s23
        %s655 = smul.u32 16, %s23
        %p656 = scmp.lt.s32.totalorder %s655, 63
        %s657 = scalar_select %p656, %s655, 63
        %s658 = smul.addr %s657, 8
        %s659 = scalar_lea.vmem %s12, %s658
        %s660 = smul.u32 16, %s23
        %v661 = vld [vmem:[%s652] sm:$0xff]
        %v662 = vld [vmem:[%s652 + $0x8] sm:$0xff]
        %v663 = vld [vmem:[%s652 + $0x10] sm:$0xff]
        %v664 = vld [vmem:[%s652 + $0x18] sm:$0xff]
        %v665 = vld [vmem:[%s652 + $0x20] sm:$0xff]
        %v666 = vld [vmem:[%s652 + $0x28] sm:$0xff]
        %v667 = vld [vmem:[%s652 + $0x30] sm:$0xff]
        %v668 = vld [vmem:[%s652 + $0x38] sm:$0xff]
        %v669 = vld [vmem:[%s652 + $0x40] sm:$0xff]
        %v670 = vld [vmem:[%s652 + $0x48] sm:$0xff]
        %v671 = vld [vmem:[%s652 + $0x50] sm:$0xff]
        %v672 = vld [vmem:[%s652 + $0x58] sm:$0xff]
        %v673 = vld [vmem:[%s652 + $0x60] sm:$0xff]
        %v674 = vld [vmem:[%s652 + $0x68] sm:$0xff]
        %v675 = vld [vmem:[%s652 + $0x70] sm:$0xff]
        %v676 = vld [vmem:[%s652 + $0x78] sm:$0xff]
        %v677 = vld [vmem:[%s604] sm:$0xff]
        %v678 = vld [vmem:[%s604 + $0x8] sm:$0xff]
        %v679 = vld [vmem:[%s604 + $0x10] sm:$0xff]
        %v680 = vld [vmem:[%s604 + $0x18] sm:$0xff]
        %v681 = vld [vmem:[%s604 + $0x20] sm:$0xff]
        %v682 = vld [vmem:[%s604 + $0x28] sm:$0xff]
        %v683 = vld [vmem:[%s604 + $0x30] sm:$0xff]
        %v684 = vld [vmem:[%s604 + $0x38] sm:$0xff]
        %v685 = vld [vmem:[%s604 + $0x40] sm:$0xff]
        %v686 = vld [vmem:[%s604 + $0x48] sm:$0xff]
        %v687 = vld [vmem:[%s604 + $0x50] sm:$0xff]
        %v688 = vld [vmem:[%s604 + $0x58] sm:$0xff]
        %v689 = vld [vmem:[%s604 + $0x60] sm:$0xff]
        %v690 = vld [vmem:[%s604 + $0x68] sm:$0xff]
        %v691 = vld [vmem:[%s604 + $0x70] sm:$0xff]
        %v692 = vld [vmem:[%s604 + $0x78] sm:$0xff]
        %v693 = vld [vmem:[%s604 + $0x80] sm:$0xff]
        %v694 = vld [vmem:[%s604 + $0x88] sm:$0xff]
        %v695 = vld [vmem:[%s604 + $0x90] sm:$0xff]
        %v696 = vld [vmem:[%s604 + $0x98] sm:$0xff]
        %v697 = vld [vmem:[%s604 + $0xa0] sm:$0xff]
        %v698 = vld [vmem:[%s604 + $0xa8] sm:$0xff]
        %v699 = vld [vmem:[%s604 + $0xb0] sm:$0xff]
        %v700 = vld [vmem:[%s604 + $0xb8] sm:$0xff]
        %v701 = vld [vmem:[%s604 + $0xc0] sm:$0xff]
        %v702 = vld [vmem:[%s604 + $0xc8] sm:$0xff]
        %v703 = vld [vmem:[%s604 + $0xd0] sm:$0xff]
        %v704 = vld [vmem:[%s604 + $0xd8] sm:$0xff]
        %v705 = vld [vmem:[%s604 + $0xe0] sm:$0xff]
        %v706 = vld [vmem:[%s604 + $0xe8] sm:$0xff]
        %v707 = vld [vmem:[%s604 + $0xf0] sm:$0xff]
        %v708 = vld [vmem:[%s604 + $0xf8] sm:$0xff]
        %v709 = vld [vmem:[%s604 + $0x100] sm:$0xff]
        %v710 = vld [vmem:[%s604 + $0x108] sm:$0xff]
        %v711 = vld [vmem:[%s604 + $0x110] sm:$0xff]
        %v712 = vld [vmem:[%s604 + $0x118] sm:$0xff]
        %v713 = vld [vmem:[%s604 + $0x120] sm:$0xff]
        %v714 = vld [vmem:[%s604 + $0x128] sm:$0xff]
        %v715 = vld [vmem:[%s604 + $0x130] sm:$0xff]
        %v716 = vld [vmem:[%s604 + $0x138] sm:$0xff]
        %v717 = vld [vmem:[%s604 + $0x140] sm:$0xff]
        %v718 = vld [vmem:[%s604 + $0x148] sm:$0xff]
        %v719 = vld [vmem:[%s604 + $0x150] sm:$0xff]
        %v720 = vld [vmem:[%s604 + $0x158] sm:$0xff]
        %v721 = vld [vmem:[%s604 + $0x160] sm:$0xff]
        %v722 = vld [vmem:[%s604 + $0x168] sm:$0xff]
        %v723 = vld [vmem:[%s604 + $0x170] sm:$0xff]
        %v724 = vld [vmem:[%s604 + $0x178] sm:$0xff]
        %v725 = vld [vmem:[%s2] sm:$0xf]
        %v726 = vld [vmem:[%s2 + $0x4] sm:$0xf]
        %v727 = vld [vmem:[%s2 + $0x8] sm:$0xf]
        %v728 = vld [vmem:[%s2 + $0xc] sm:$0xf]
        %v729 = vunpack.c.l.bf16 %v725
        %v730 = vunpack.c.l.bf16 %v726
        %v731 = vunpack.c.l.bf16 %v727
        %v732 = vunpack.c.l.bf16 %v728
        %v733 = vld [vmem:[%s3] sm:$0xf]
        %v734 = vld [vmem:[%s3 + $0x4] sm:$0xf]
        %v735 = vld [vmem:[%s3 + $0x8] sm:$0xf]
        %v736 = vld [vmem:[%s3 + $0xc] sm:$0xf]
        %v737 = vunpack.c.l.bf16 %v733
        %v738 = vunpack.c.l.bf16 %v734
        %v739 = vunpack.c.l.bf16 %v735
        %v740 = vunpack.c.l.bf16 %v736
        %vm741 = vcmask 261120
        %v743 = vsel %vm741, %v677, 0
        %v746 = vsel %vm741, %v678, 0
        %v749 = vsel %vm741, %v679, 0
        %v752 = vsel %vm741, %v680, 0
        %v755 = vsel %vm741, %v681, 0
        %v758 = vsel %vm741, %v682, 0
        %v761 = vsel %vm741, %v683, 0
        %v764 = vsel %vm741, %v684, 0
        %v767 = vsel %vm741, %v685, 0
        %v770 = vsel %vm741, %v686, 0
        %v773 = vsel %vm741, %v687, 0
        %v776 = vsel %vm741, %v688, 0
        %v779 = vsel %vm741, %v689, 0
        %v782 = vsel %vm741, %v690, 0
        %v785 = vsel %vm741, %v691, 0
        %v788 = vsel %vm741, %v692, 0
        %v791 = vsel %vm741, %v693, 0
        %v794 = vsel %vm741, %v694, 0
        %v797 = vsel %vm741, %v695, 0
        %v800 = vsel %vm741, %v696, 0
        %v803 = vsel %vm741, %v697, 0
        %v806 = vsel %vm741, %v698, 0
        %v809 = vsel %vm741, %v699, 0
        %v812 = vsel %vm741, %v700, 0
        %v815 = vsel %vm741, %v701, 0
        %v818 = vsel %vm741, %v702, 0
        %v821 = vsel %vm741, %v703, 0
        %v824 = vsel %vm741, %v704, 0
        %v827 = vsel %vm741, %v705, 0
        %v830 = vsel %vm741, %v706, 0
        %v833 = vsel %vm741, %v707, 0
        %v836 = vsel %vm741, %v708, 0
        %v839 = vsel %vm741, %v709, 0
        %v842 = vsel %vm741, %v710, 0
        %v845 = vsel %vm741, %v711, 0
        %v848 = vsel %vm741, %v712, 0
        %v851 = vsel %vm741, %v713, 0
        %v854 = vsel %vm741, %v714, 0
        %v857 = vsel %vm741, %v715, 0
        %v860 = vsel %vm741, %v716, 0
        %v863 = vsel %vm741, %v717, 0
        %v866 = vsel %vm741, %v718, 0
        %v869 = vsel %vm741, %v719, 0
        %v872 = vsel %vm741, %v720, 0
        %v875 = vsel %vm741, %v721, 0
        %v878 = vsel %vm741, %v722, 0
        %v881 = vsel %vm741, %v723, 0
        %v884 = vsel %vm741, %v724, 0
        %886 = vmatprep.subr.mxu0 0.0
        %887 = vmatpush1.msra.mxu0 %v729
        %888 = vmatprep.subr.mxu0 0.0
        %889 = vmatpush1.msra.mxu0 %v730
        %890 = vmatprep.subr.mxu0 0.0
        %891 = vmatpush1.msra.mxu0 %v731
        %892 = vmatprep.subr.mxu0 0.0
        %893 = vmatpush1.msra.mxu0 %v732
        %894 = vmatprep.subr.mxu0 0.0
        %895 = vmatpush1.msra.mxu0 0.0
        %896 = vmatprep.subr.mxu0 0.0
        %897 = vmatpush1.msra.mxu0 0.0
        %898 = vmatprep.subr.mxu0 0.0
        %899 = vmatpush1.msra.mxu0 0.0
        %900 = vmatprep.subr.mxu0 0.0
        %901 = vmatpush1.msra.mxu0 0.0
        %902 = vmatprep.subr.mxu0 0.0
        %903 = vmatpush1.msra.mxu0 0.0
        %904 = vmatprep.subr.mxu0 0.0
        %905 = vmatpush1.msra.mxu0 0.0
        %906 = vmatprep.subr.mxu0 0.0
        %907 = vmatpush1.msra.mxu0 0.0
        %908 = vmatprep.subr.mxu0 0.0
        %909 = vmatpush1.msra.mxu0 0.0
        %910 = vmatprep.subr.mxu0 0.0
        %911 = vmatpush1.msra.mxu0 0.0
        %912 = vmatprep.subr.mxu0 0.0
        %913 = vmatpush1.msra.mxu0 0.0
        %914 = vmatprep.subr.mxu0 0.0
        %915 = vmatpush1.msra.mxu0 0.0
        %916 = vmatprep.subr.mxu0 0.0
        %917 = vmatpush1.msra.mxu0 0.0
        %918 = vmatprep.subr.mxu0 0.0
        %919 = vmatpush1.msra.mxu0 0.0
        %920 = vmatprep.subr.mxu0 0.0
        %921 = vmatpush1.msra.mxu0 0.0
        %922 = vmatprep.subr.mxu0 0.0
        %923 = vmatpush1.msra.mxu0 0.0
        %924 = vmatprep.subr.mxu0 0.0
        %925 = vmatpush1.msra.mxu0 0.0
        %926 = vmatprep.subr.mxu0 0.0
        %927 = vmatpush1.msra.mxu0 0.0
        %928 = vmatprep.subr.mxu0 0.0
        %929 = vmatpush1.msra.mxu0 0.0
        %930 = vmatprep.subr.mxu0 0.0
        %931 = vmatpush1.msra.mxu0 0.0
        %932 = vmatprep.subr.mxu0 0.0
        %933 = vmatpush1.msra.mxu0 0.0
        %934 = vmatprep.subr.mxu0 0.0
        %935 = vmatpush1.msra.mxu0 0.0
        %936 = vmatprep.subr.mxu0 0.0
        %937 = vmatpush1.msra.mxu0 0.0
        %938 = vmatprep.subr.mxu0 0.0
        %939 = vmatpush1.msra.mxu0 0.0
        %940 = vmatprep.subr.mxu0 0.0
        %941 = vmatpush1.msra.mxu0 0.0
        %942 = vmatprep.subr.mxu0 0.0
        %943 = vmatpush1.msra.mxu0 0.0
        %944 = vmatprep.subr.mxu0 0.0
        %945 = vmatpush1.msra.mxu0 0.0
        %946 = vmatprep.subr.mxu0 0.0
        %947 = vmatpush1.msra.mxu0 0.0
        %948 = vmatprep.subr.mxu0 0.0
        %949 = vmatpush1.msra.mxu0 0.0
        %950 = vmatprep.mubr.f32.mxu0 0.0
        %951 = vmatmul.mubr.f32.gmra.mrb[0].mxu0 %v743
        %v952 = vpop.f32.mrb[0].mxu0
        %v953 = vadd.f32 0.0, %v952
        %v954 = vpop.f32.mrb[0].mxu0
        %955 = vmatprep.mubr.f32.mxu0 0.0
        %956 = vmatmul.mubr.f32.gmra.mrb[0].mxu0 %v746
        %v957 = vpop.f32.mrb[0].mxu0
        %v958 = vadd.f32 0.0, %v957
        %v959 = vpop.f32.mrb[0].mxu0
        %960 = vmatprep.mubr.f32.mxu0 0.0
        %961 = vmatmul.mubr.f32.gmra.mrb[0].mxu0 %v749
        %v962 = vpop.f32.mrb[0].mxu0
        %v963 = vadd.f32 0.0, %v962
        %v964 = vpop.f32.mrb[0].mxu0
        %965 = vmatprep.mubr.f32.mxu0 0.0
        %966 = vmatmul.mubr.f32.gmra.mrb[0].mxu0 %v752
        %v967 = vpop.f32.mrb[0].mxu0
        %v968 = vadd.f32 0.0, %v967
        %v969 = vpop.f32.mrb[0].mxu0
        %970 = vmatprep.mubr.f32.mxu0 0.0
        %971 = vmatmul.mubr.f32.gmra.mrb[0].mxu0 %v755
        %v972 = vpop.f32.mrb[0].mxu0
        %v973 = vadd.f32 0.0, %v972
        %v974 = vpop.f32.mrb[0].mxu0
        %975 = vmatprep.mubr.f32.mxu0 0.0
        %976 = vmatmul.mubr.f32.gmra.mrb[0].mxu0 %v758
        %v977 = vpop.f32.mrb[0].mxu0
        %v978 = vadd.f32 0.0, %v977
        %v979 = vpop.f32.mrb[0].mxu0
        %980 = vmatprep.mubr.f32.mxu0 0.0
        %981 = vmatmul.mubr.f32.gmra.mrb[0].mxu0 %v761
        %v982 = vpop.f32.mrb[0].mxu0
        %v983 = vadd.f32 0.0, %v982
        %v984 = vpop.f32.mrb[0].mxu0
        %985 = vmatprep.mubr.f32.mxu0 0.0
        %986 = vmatmul.mubr.f32.gmra.mrb[0].mxu0 %v764
        %v987 = vpop.f32.mrb[0].mxu0
        %v988 = vadd.f32 0.0, %v987
        %v989 = vpop.f32.mrb[0].mxu0
        %990 = vmatprep.mubr.f32.mxu0 0.0
        %991 = vmatmul.mubr.f32.gmra.mrb[0].mxu0 %v767
        %v992 = vpop.f32.mrb[0].mxu0
        %v993 = vadd.f32 0.0, %v992
        %v994 = vpop.f32.mrb[0].mxu0
        %995 = vmatprep.mubr.f32.mxu0 0.0
        %996 = vmatmul.mubr.f32.gmra.mrb[0].mxu0 %v770
        %v997 = vpop.f32.mrb[0].mxu0
        %v998 = vadd.f32 0.0, %v997
        %v999 = vpop.f32.mrb[0].mxu0
        %1000 = vmatprep.mubr.f32.mxu0 0.0
        %1001 = vmatmul.mubr.f32.gmra.mrb[0].mxu0 %v773
        %v1002 = vpop.f32.mrb[0].mxu0
        %v1003 = vadd.f32 0.0, %v1002
        %v1004 = vpop.f32.mrb[0].mxu0
        %1005 = vmatprep.mubr.f32.mxu0 0.0
        %1006 = vmatmul.mubr.f32.gmra.mrb[0].mxu0 %v776
        %v1007 = vpop.f32.mrb[0].mxu0
        %v1008 = vadd.f32 0.0, %v1007
        %v1009 = vpop.f32.mrb[0].mxu0
        %1010 = vmatprep.mubr.f32.mxu0 0.0
        %1011 = vmatmul.mubr.f32.gmra.mrb[0].mxu0 %v779
        %v1012 = vpop.f32.mrb[0].mxu0
        %v1013 = vadd.f32 0.0, %v1012
        %v1014 = vpop.f32.mrb[0].mxu0
        %1015 = vmatprep.mubr.f32.mxu0 0.0
        %1016 = vmatmul.mubr.f32.gmra.mrb[0].mxu0 %v782
        %v1017 = vpop.f32.mrb[0].mxu0
        %v1018 = vadd.f32 0.0, %v1017
        %v1019 = vpop.f32.mrb[0].mxu0
        %1020 = vmatprep.mubr.f32.mxu0 0.0
        %1021 = vmatmul.mubr.f32.gmra.mrb[0].mxu0 %v785
        %v1022 = vpop.f32.mrb[0].mxu0
        %v1023 = vadd.f32 0.0, %v1022
        %v1024 = vpop.f32.mrb[0].mxu0
        %1025 = vmatprep.mubr.f32.mxu0 0.0
        %1026 = vmatmul.mubr.f32.gmra.mrb[0].mxu0 %v788
        %v1027 = vpop.f32.mrb[0].mxu0
        %v1028 = vadd.f32 0.0, %v1027
        %v1029 = vpop.f32.mrb[0].mxu0
        %1030 = vmatprep.mubr.f32.mxu0 0.0
        %1031 = vmatmul.mubr.f32.gmra.mrb[0].mxu0 %v791
        %v1032 = vpop.f32.mrb[0].mxu0
        %v1033 = vadd.f32 0.0, %v1032
        %v1034 = vpop.f32.mrb[0].mxu0
        %1035 = vmatprep.mubr.f32.mxu0 0.0
        %1036 = vmatmul.mubr.f32.gmra.mrb[0].mxu0 %v794
        %v1037 = vpop.f32.mrb[0].mxu0
        %v1038 = vadd.f32 0.0, %v1037
        %v1039 = vpop.f32.mrb[0].mxu0
        %1040 = vmatprep.mubr.f32.mxu0 0.0
        %1041 = vmatmul.mubr.f32.gmra.mrb[0].mxu0 %v797
        %v1042 = vpop.f32.mrb[0].mxu0
        %v1043 = vadd.f32 0.0, %v1042
        %v1044 = vpop.f32.mrb[0].mxu0
        %1045 = vmatprep.mubr.f32.mxu0 0.0
        %1046 = vmatmul.mubr.f32.gmra.mrb[0].mxu0 %v800
        %v1047 = vpop.f32.mrb[0].mxu0
        %v1048 = vadd.f32 0.0, %v1047
        %v1049 = vpop.f32.mrb[0].mxu0
        %1050 = vmatprep.mubr.f32.mxu0 0.0
        %1051 = vmatmul.mubr.f32.gmra.mrb[0].mxu0 %v803
        %v1052 = vpop.f32.mrb[0].mxu0
        %v1053 = vadd.f32 0.0, %v1052
        %v1054 = vpop.f32.mrb[0].mxu0
        %1055 = vmatprep.mubr.f32.mxu0 0.0
        %1056 = vmatmul.mubr.f32.gmra.mrb[0].mxu0 %v806
        %v1057 = vpop.f32.mrb[0].mxu0
        %v1058 = vadd.f32 0.0, %v1057
        %v1059 = vpop.f32.mrb[0].mxu0
        %1060 = vmatprep.mubr.f32.mxu0 0.0
        %1061 = vmatmul.mubr.f32.gmra.mrb[0].mxu0 %v809
        %v1062 = vpop.f32.mrb[0].mxu0
        %v1063 = vadd.f32 0.0, %v1062
        %v1064 = vpop.f32.mrb[0].mxu0
        %1065 = vmatprep.mubr.f32.mxu0 0.0
        %1066 = vmatmul.mubr.f32.gmra.mrb[0].mxu0 %v812
        %v1067 = vpop.f32.mrb[0].mxu0
        %v1068 = vadd.f32 0.0, %v1067
        %v1069 = vpop.f32.mrb[0].mxu0
        %1070 = vmatprep.mubr.f32.mxu0 0.0
        %1071 = vmatmul.mubr.f32.gmra.mrb[0].mxu0 %v815
        %v1072 = vpop.f32.mrb[0].mxu0
        %v1073 = vadd.f32 0.0, %v1072
        %v1074 = vpop.f32.mrb[0].mxu0
        %1075 = vmatprep.mubr.f32.mxu0 0.0
        %1076 = vmatmul.mubr.f32.gmra.mrb[0].mxu0 %v818
        %v1077 = vpop.f32.mrb[0].mxu0
        %v1078 = vadd.f32 0.0, %v1077
        %v1079 = vpop.f32.mrb[0].mxu0
        %1080 = vmatprep.mubr.f32.mxu0 0.0
        %1081 = vmatmul.mubr.f32.gmra.mrb[0].mxu0 %v821
        %v1082 = vpop.f32.mrb[0].mxu0
        %v1083 = vadd.f32 0.0, %v1082
        %v1084 = vpop.f32.mrb[0].mxu0
        %1085 = vmatprep.mubr.f32.mxu0 0.0
        %1086 = vmatmul.mubr.f32.gmra.mrb[0].mxu0 %v824
        %v1087 = vpop.f32.mrb[0].mxu0
        %v1088 = vadd.f32 0.0, %v1087
        %v1089 = vpop.f32.mrb[0].mxu0
        %1090 = vmatprep.mubr.f32.mxu0 0.0
        %1091 = vmatmul.mubr.f32.gmra.mrb[0].mxu0 %v827
        %v1092 = vpop.f32.mrb[0].mxu0
        %v1093 = vadd.f32 0.0, %v1092
        %v1094 = vpop.f32.mrb[0].mxu0
        %1095 = vmatprep.mubr.f32.mxu0 0.0
        %1096 = vmatmul.mubr.f32.gmra.mrb[0].mxu0 %v830
        %v1097 = vpop.f32.mrb[0].mxu0
        %v1098 = vadd.f32 0.0, %v1097
        %v1099 = vpop.f32.mrb[0].mxu0
        %1100 = vmatprep.mubr.f32.mxu0 0.0
        %1101 = vmatmul.mubr.f32.gmra.mrb[0].mxu0 %v833
        %v1102 = vpop.f32.mrb[0].mxu0
        %v1103 = vadd.f32 0.0, %v1102
        %v1104 = vpop.f32.mrb[0].mxu0
        %1105 = vmatprep.mubr.f32.mxu0 0.0
        %1106 = vmatmul.mubr.f32.gmra.mrb[0].mxu0 %v836
        %v1107 = vpop.f32.mrb[0].mxu0
        %v1108 = vadd.f32 0.0, %v1107
        %v1109 = vpop.f32.mrb[0].mxu0
        %1110 = vmatprep.mubr.f32.mxu0 0.0
        %1111 = vmatmul.mubr.f32.gmra.mrb[0].mxu0 %v839
        %v1112 = vpop.f32.mrb[0].mxu0
        %v1113 = vadd.f32 0.0, %v1112
        %v1114 = vpop.f32.mrb[0].mxu0
        %1115 = vmatprep.mubr.f32.mxu0 0.0
        %1116 = vmatmul.mubr.f32.gmra.mrb[0].mxu0 %v842
        %v1117 = vpop.f32.mrb[0].mxu0
        %v1118 = vadd.f32 0.0, %v1117
        %v1119 = vpop.f32.mrb[0].mxu0
        %1120 = vmatprep.mubr.f32.mxu0 0.0
        %1121 = vmatmul.mubr.f32.gmra.mrb[0].mxu0 %v845
        %v1122 = vpop.f32.mrb[0].mxu0
        %v1123 = vadd.f32 0.0, %v1122
        %v1124 = vpop.f32.mrb[0].mxu0
        %1125 = vmatprep.mubr.f32.mxu0 0.0
        %1126 = vmatmul.mubr.f32.gmra.mrb[0].mxu0 %v848
        %v1127 = vpop.f32.mrb[0].mxu0
        %v1128 = vadd.f32 0.0, %v1127
        %v1129 = vpop.f32.mrb[0].mxu0
        %1130 = vmatprep.mubr.f32.mxu0 0.0
        %1131 = vmatmul.mubr.f32.gmra.mrb[0].mxu0 %v851
        %v1132 = vpop.f32.mrb[0].mxu0
        %v1133 = vadd.f32 0.0, %v1132
        %v1134 = vpop.f32.mrb[0].mxu0
        %1135 = vmatprep.mubr.f32.mxu0 0.0
        %1136 = vmatmul.mubr.f32.gmra.mrb[0].mxu0 %v854
        %v1137 = vpop.f32.mrb[0].mxu0
        %v1138 = vadd.f32 0.0, %v1137
        %v1139 = vpop.f32.mrb[0].mxu0
        %1140 = vmatprep.mubr.f32.mxu0 0.0
        %1141 = vmatmul.mubr.f32.gmra.mrb[0].mxu0 %v857
        %v1142 = vpop.f32.mrb[0].mxu0
        %v1143 = vadd.f32 0.0, %v1142
        %v1144 = vpop.f32.mrb[0].mxu0
        %1145 = vmatprep.mubr.f32.mxu0 0.0
        %1146 = vmatmul.mubr.f32.gmra.mrb[0].mxu0 %v860
        %v1147 = vpop.f32.mrb[0].mxu0
        %v1148 = vadd.f32 0.0, %v1147
        %v1149 = vpop.f32.mrb[0].mxu0
        %1150 = vmatprep.mubr.f32.mxu0 0.0
        %1151 = vmatmul.mubr.f32.gmra.mrb[0].mxu0 %v863
        %v1152 = vpop.f32.mrb[0].mxu0
        %v1153 = vadd.f32 0.0, %v1152
        %v1154 = vpop.f32.mrb[0].mxu0
        %1155 = vmatprep.mubr.f32.mxu0 0.0
        %1156 = vmatmul.mubr.f32.gmra.mrb[0].mxu0 %v866
        %v1157 = vpop.f32.mrb[0].mxu0
        %v1158 = vadd.f32 0.0, %v1157
        %v1159 = vpop.f32.mrb[0].mxu0
        %1160 = vmatprep.mubr.f32.mxu0 0.0
        %1161 = vmatmul.mubr.f32.gmra.mrb[0].mxu0 %v869
        %v1162 = vpop.f32.mrb[0].mxu0
        %v1163 = vadd.f32 0.0, %v1162
        %v1164 = vpop.f32.mrb[0].mxu0
        %1165 = vmatprep.mubr.f32.mxu0 0.0
        %1166 = vmatmul.mubr.f32.gmra.mrb[0].mxu0 %v872
        %v1167 = vpop.f32.mrb[0].mxu0
        %v1168 = vadd.f32 0.0, %v1167
        %v1169 = vpop.f32.mrb[0].mxu0
        %1170 = vmatprep.mubr.f32.mxu0 0.0
        %1171 = vmatmul.mubr.f32.gmra.mrb[0].mxu0 %v875
        %v1172 = vpop.f32.mrb[0].mxu0
        %v1173 = vadd.f32 0.0, %v1172
        %v1174 = vpop.f32.mrb[0].mxu0
        %1175 = vmatprep.mubr.f32.mxu0 0.0
        %1176 = vmatmul.mubr.f32.gmra.mrb[0].mxu0 %v878
        %v1177 = vpop.f32.mrb[0].mxu0
        %v1178 = vadd.f32 0.0, %v1177
        %v1179 = vpop.f32.mrb[0].mxu0
        %1180 = vmatprep.mubr.f32.mxu0 0.0
        %1181 = vmatmul.mubr.f32.gmra.mrb[0].mxu0 %v881
        %v1182 = vpop.f32.mrb[0].mxu0
        %v1183 = vadd.f32 0.0, %v1182
        %v1184 = vpop.f32.mrb[0].mxu0
        %1185 = vmatprep.mubr.f32.mxu0 0.0
        %1186 = vmatmul.mubr.f32.gmra.mrb[0].mxu0 %v884
        %v1187 = vpop.f32.mrb[0].mxu0
        %v1188 = vadd.f32 0.0, %v1187
        %v1189 = vpop.f32.mrb[0].mxu0
        %1190 = vdwg.mxu0
        %1191 = vmatprep.subr.mxu0 0.0
        %1192 = vmatpush1.msra.mxu0 %v737
        %1193 = vmatprep.subr.mxu0 0.0
        %1194 = vmatpush1.msra.mxu0 %v738
        %1195 = vmatprep.subr.mxu0 0.0
        %1196 = vmatpush1.msra.mxu0 %v739
        %1197 = vmatprep.subr.mxu0 0.0
        %1198 = vmatpush1.msra.mxu0 %v740
        %1199 = vmatprep.subr.mxu0 0.0
        %1200 = vmatpush1.msra.mxu0 0.0
        %1201 = vmatprep.subr.mxu0 0.0
        %1202 = vmatpush1.msra.mxu0 0.0
        %1203 = vmatprep.subr.mxu0 0.0
        %1204 = vmatpush1.msra.mxu0 0.0
        %1205 = vmatprep.subr.mxu0 0.0
        %1206 = vmatpush1.msra.mxu0 0.0
        %1207 = vmatprep.subr.mxu0 0.0
        %1208 = vmatpush1.msra.mxu0 0.0
        %1209 = vmatprep.subr.mxu0 0.0
        %1210 = vmatpush1.msra.mxu0 0.0
        %1211 = vmatprep.subr.mxu0 0.0
        %1212 = vmatpush1.msra.mxu0 0.0
        %1213 = vmatprep.subr.mxu0 0.0
        %1214 = vmatpush1.msra.mxu0 0.0
        %1215 = vmatprep.subr.mxu0 0.0
        %1216 = vmatpush1.msra.mxu0 0.0
        %1217 = vmatprep.subr.mxu0 0.0
        %1218 = vmatpush1.msra.mxu0 0.0
        %1219 = vmatprep.subr.mxu0 0.0
        %1220 = vmatpush1.msra.mxu0 0.0
        %1221 = vmatprep.subr.mxu0 0.0
        %1222 = vmatpush1.msra.mxu0 0.0
        %1223 = vmatprep.subr.mxu0 0.0
        %1224 = vmatpush1.msra.mxu0 0.0
        %1225 = vmatprep.subr.mxu0 0.0
        %1226 = vmatpush1.msra.mxu0 0.0
        %1227 = vmatprep.subr.mxu0 0.0
        %1228 = vmatpush1.msra.mxu0 0.0
        %1229 = vmatprep.subr.mxu0 0.0
        %1230 = vmatpush1.msra.mxu0 0.0
        %1231 = vmatprep.subr.mxu0 0.0
        %1232 = vmatpush1.msra.mxu0 0.0
        %1233 = vmatprep.subr.mxu0 0.0
        %1234 = vmatpush1.msra.mxu0 0.0
        %1235 = vmatprep.subr.mxu0 0.0
        %1236 = vmatpush1.msra.mxu0 0.0
        %1237 = vmatprep.subr.mxu0 0.0
        %1238 = vmatpush1.msra.mxu0 0.0
        %1239 = vmatprep.subr.mxu0 0.0
        %1240 = vmatpush1.msra.mxu0 0.0
        %1241 = vmatprep.subr.mxu0 0.0
        %1242 = vmatpush1.msra.mxu0 0.0
        %1243 = vmatprep.subr.mxu0 0.0
        %1244 = vmatpush1.msra.mxu0 0.0
        %1245 = vmatprep.subr.mxu0 0.0
        %1246 = vmatpush1.msra.mxu0 0.0
        %1247 = vmatprep.subr.mxu0 0.0
        %1248 = vmatpush1.msra.mxu0 0.0
        %1249 = vmatprep.subr.mxu0 0.0
        %1250 = vmatpush1.msra.mxu0 0.0
        %1251 = vmatprep.subr.mxu0 0.0
        %1252 = vmatpush1.msra.mxu0 0.0
        %1253 = vmatprep.subr.mxu0 0.0
        %1254 = vmatpush1.msra.mxu0 0.0
        %1255 = vmatprep.mubr.f32.mxu0 0.0
        %1256 = vmatmul.mubr.f32.gmra.mrb[0].mxu0 %v743
        %v1257 = vpop.f32.mrb[0].mxu0
        %v1258 = vadd.f32 0.0, %v1257
        %v1259 = vpop.f32.mrb[0].mxu0
        %1260 = vmatprep.mubr.f32.mxu0 0.0
        %1261 = vmatmul.mubr.f32.gmra.mrb[0].mxu0 %v746
        %v1262 = vpop.f32.mrb[0].mxu0
        %v1263 = vadd.f32 0.0, %v1262
        %v1264 = vpop.f32.mrb[0].mxu0
        %1265 = vmatprep.mubr.f32.mxu0 0.0
        %1266 = vmatmul.mubr.f32.gmra.mrb[0].mxu0 %v749
        %v1267 = vpop.f32.mrb[0].mxu0
        %v1268 = vadd.f32 0.0, %v1267
        %v1269 = vpop.f32.mrb[0].mxu0
        %1270 = vmatprep.mubr.f32.mxu0 0.0
        %1271 = vmatmul.mubr.f32.gmra.mrb[0].mxu0 %v752
        %v1272 = vpop.f32.mrb[0].mxu0
        %v1273 = vadd.f32 0.0, %v1272
        %v1274 = vpop.f32.mrb[0].mxu0
        %1275 = vmatprep.mubr.f32.mxu0 0.0
        %1276 = vmatmul.mubr.f32.gmra.mrb[0].mxu0 %v755
        %v1277 = vpop.f32.mrb[0].mxu0
        %v1278 = vadd.f32 0.0, %v1277
        %v1279 = vpop.f32.mrb[0].mxu0
        %1280 = vmatprep.mubr.f32.mxu0 0.0
        %1281 = vmatmul.mubr.f32.gmra.mrb[0].mxu0 %v758
        %v1282 = vpop.f32.mrb[0].mxu0
        %v1283 = vadd.f32 0.0, %v1282
        %v1284 = vpop.f32.mrb[0].mxu0
        %1285 = vmatprep.mubr.f32.mxu0 0.0
        %1286 = vmatmul.mubr.f32.gmra.mrb[0].mxu0 %v761
        %v1287 = vpop.f32.mrb[0].mxu0
        %v1288 = vadd.f32 0.0, %v1287
        %v1289 = vpop.f32.mrb[0].mxu0
        %1290 = vmatprep.mubr.f32.mxu0 0.0
        %1291 = vmatmul.mubr.f32.gmra.mrb[0].mxu0 %v764
        %v1292 = vpop.f32.mrb[0].mxu0
        %v1293 = vadd.f32 0.0, %v1292
        %v1294 = vpop.f32.mrb[0].mxu0
        %1295 = vmatprep.mubr.f32.mxu0 0.0
        %1296 = vmatmul.mubr.f32.gmra.mrb[0].mxu0 %v767
        %v1297 = vpop.f32.mrb[0].mxu0
        %v1298 = vadd.f32 0.0, %v1297
        %v1299 = vpop.f32.mrb[0].mxu0
        %1300 = vmatprep.mubr.f32.mxu0 0.0
        %1301 = vmatmul.mubr.f32.gmra.mrb[0].mxu0 %v770
        %v1302 = vpop.f32.mrb[0].mxu0
        %v1303 = vadd.f32 0.0, %v1302
        %v1304 = vpop.f32.mrb[0].mxu0
        %1305 = vmatprep.mubr.f32.mxu0 0.0
        %1306 = vmatmul.mubr.f32.gmra.mrb[0].mxu0 %v773
        %v1307 = vpop.f32.mrb[0].mxu0
        %v1308 = vadd.f32 0.0, %v1307
        %v1309 = vpop.f32.mrb[0].mxu0
        %1310 = vmatprep.mubr.f32.mxu0 0.0
        %1311 = vmatmul.mubr.f32.gmra.mrb[0].mxu0 %v776
        %v1312 = vpop.f32.mrb[0].mxu0
        %v1313 = vadd.f32 0.0, %v1312
        %v1314 = vpop.f32.mrb[0].mxu0
        %1315 = vmatprep.mubr.f32.mxu0 0.0
        %1316 = vmatmul.mubr.f32.gmra.mrb[0].mxu0 %v779
        %v1317 = vpop.f32.mrb[0].mxu0
        %v1318 = vadd.f32 0.0, %v1317
        %v1319 = vpop.f32.mrb[0].mxu0
        %1320 = vmatprep.mubr.f32.mxu0 0.0
        %1321 = vmatmul.mubr.f32.gmra.mrb[0].mxu0 %v782
        %v1322 = vpop.f32.mrb[0].mxu0
        %v1323 = vadd.f32 0.0, %v1322
        %v1324 = vpop.f32.mrb[0].mxu0
        %1325 = vmatprep.mubr.f32.mxu0 0.0
        %1326 = vmatmul.mubr.f32.gmra.mrb[0].mxu0 %v785
        %v1327 = vpop.f32.mrb[0].mxu0
        %v1328 = vadd.f32 0.0, %v1327
        %v1329 = vpop.f32.mrb[0].mxu0
        %1330 = vmatprep.mubr.f32.mxu0 0.0
        %1331 = vmatmul.mubr.f32.gmra.mrb[0].mxu0 %v788
        %v1332 = vpop.f32.mrb[0].mxu0
        %v1333 = vadd.f32 0.0, %v1332
        %v1334 = vpop.f32.mrb[0].mxu0
        %1335 = vmatprep.mubr.f32.mxu0 0.0
        %1336 = vmatmul.mubr.f32.gmra.mrb[0].mxu0 %v791
        %v1337 = vpop.f32.mrb[0].mxu0
        %v1338 = vadd.f32 0.0, %v1337
        %v1339 = vpop.f32.mrb[0].mxu0
        %1340 = vmatprep.mubr.f32.mxu0 0.0
        %1341 = vmatmul.mubr.f32.gmra.mrb[0].mxu0 %v794
        %v1342 = vpop.f32.mrb[0].mxu0
        %v1343 = vadd.f32 0.0, %v1342
        %v1344 = vpop.f32.mrb[0].mxu0
        %1345 = vmatprep.mubr.f32.mxu0 0.0
        %1346 = vmatmul.mubr.f32.gmra.mrb[0].mxu0 %v797
        %v1347 = vpop.f32.mrb[0].mxu0
        %v1348 = vadd.f32 0.0, %v1347
        %v1349 = vpop.f32.mrb[0].mxu0
        %1350 = vmatprep.mubr.f32.mxu0 0.0
        %1351 = vmatmul.mubr.f32.gmra.mrb[0].mxu0 %v800
        %v1352 = vpop.f32.mrb[0].mxu0
        %v1353 = vadd.f32 0.0, %v1352
        %v1354 = vpop.f32.mrb[0].mxu0
        %1355 = vmatprep.mubr.f32.mxu0 0.0
        %1356 = vmatmul.mubr.f32.gmra.mrb[0].mxu0 %v803
        %v1357 = vpop.f32.mrb[0].mxu0
        %v1358 = vadd.f32 0.0, %v1357
        %v1359 = vpop.f32.mrb[0].mxu0
        %1360 = vmatprep.mubr.f32.mxu0 0.0
        %1361 = vmatmul.mubr.f32.gmra.mrb[0].mxu0 %v806
        %v1362 = vpop.f32.mrb[0].mxu0
        %v1363 = vadd.f32 0.0, %v1362
        %v1364 = vpop.f32.mrb[0].mxu0
        %1365 = vmatprep.mubr.f32.mxu0 0.0
        %1366 = vmatmul.mubr.f32.gmra.mrb[0].mxu0 %v809
        %v1367 = vpop.f32.mrb[0].mxu0
        %v1368 = vadd.f32 0.0, %v1367
        %v1369 = vpop.f32.mrb[0].mxu0
        %1370 = vmatprep.mubr.f32.mxu0 0.0
        %1371 = vmatmul.mubr.f32.gmra.mrb[0].mxu0 %v812
        %v1372 = vpop.f32.mrb[0].mxu0
        %v1373 = vadd.f32 0.0, %v1372
        %v1374 = vpop.f32.mrb[0].mxu0
        %1375 = vmatprep.mubr.f32.mxu0 0.0
        %1376 = vmatmul.mubr.f32.gmra.mrb[0].mxu0 %v815
        %v1377 = vpop.f32.mrb[0].mxu0
        %v1378 = vadd.f32 0.0, %v1377
        %v1379 = vpop.f32.mrb[0].mxu0
        %1380 = vmatprep.mubr.f32.mxu0 0.0
        %1381 = vmatmul.mubr.f32.gmra.mrb[0].mxu0 %v818
        %v1382 = vpop.f32.mrb[0].mxu0
        %v1383 = vadd.f32 0.0, %v1382
        %v1384 = vpop.f32.mrb[0].mxu0
        %1385 = vmatprep.mubr.f32.mxu0 0.0
        %1386 = vmatmul.mubr.f32.gmra.mrb[0].mxu0 %v821
        %v1387 = vpop.f32.mrb[0].mxu0
        %v1388 = vadd.f32 0.0, %v1387
        %v1389 = vpop.f32.mrb[0].mxu0
        %1390 = vmatprep.mubr.f32.mxu0 0.0
        %1391 = vmatmul.mubr.f32.gmra.mrb[0].mxu0 %v824
        %v1392 = vpop.f32.mrb[0].mxu0
        %v1393 = vadd.f32 0.0, %v1392
        %v1394 = vpop.f32.mrb[0].mxu0
        %1395 = vmatprep.mubr.f32.mxu0 0.0
        %1396 = vmatmul.mubr.f32.gmra.mrb[0].mxu0 %v827
        %v1397 = vpop.f32.mrb[0].mxu0
        %v1398 = vadd.f32 0.0, %v1397
        %v1399 = vpop.f32.mrb[0].mxu0
        %1400 = vmatprep.mubr.f32.mxu0 0.0
        %1401 = vmatmul.mubr.f32.gmra.mrb[0].mxu0 %v830
        %v1402 = vpop.f32.mrb[0].mxu0
        %v1403 = vadd.f32 0.0, %v1402
        %v1404 = vpop.f32.mrb[0].mxu0
        %1405 = vmatprep.mubr.f32.mxu0 0.0
        %1406 = vmatmul.mubr.f32.gmra.mrb[0].mxu0 %v833
        %v1407 = vpop.f32.mrb[0].mxu0
        %v1408 = vadd.f32 0.0, %v1407
        %v1409 = vpop.f32.mrb[0].mxu0
        %1410 = vmatprep.mubr.f32.mxu0 0.0
        %1411 = vmatmul.mubr.f32.gmra.mrb[0].mxu0 %v836
        %v1412 = vpop.f32.mrb[0].mxu0
        %v1413 = vadd.f32 0.0, %v1412
        %v1414 = vpop.f32.mrb[0].mxu0
        %1415 = vmatprep.mubr.f32.mxu0 0.0
        %1416 = vmatmul.mubr.f32.gmra.mrb[0].mxu0 %v839
        %v1417 = vpop.f32.mrb[0].mxu0
        %v1418 = vadd.f32 0.0, %v1417
        %v1419 = vpop.f32.mrb[0].mxu0
        %1420 = vmatprep.mubr.f32.mxu0 0.0
        %1421 = vmatmul.mubr.f32.gmra.mrb[0].mxu0 %v842
        %v1422 = vpop.f32.mrb[0].mxu0
        %v1423 = vadd.f32 0.0, %v1422
        %v1424 = vpop.f32.mrb[0].mxu0
        %1425 = vmatprep.mubr.f32.mxu0 0.0
        %1426 = vmatmul.mubr.f32.gmra.mrb[0].mxu0 %v845
        %v1427 = vpop.f32.mrb[0].mxu0
        %v1428 = vadd.f32 0.0, %v1427
        %v1429 = vpop.f32.mrb[0].mxu0
        %1430 = vmatprep.mubr.f32.mxu0 0.0
        %1431 = vmatmul.mubr.f32.gmra.mrb[0].mxu0 %v848
        %v1432 = vpop.f32.mrb[0].mxu0
        %v1433 = vadd.f32 0.0, %v1432
        %v1434 = vpop.f32.mrb[0].mxu0
        %1435 = vmatprep.mubr.f32.mxu0 0.0
        %1436 = vmatmul.mubr.f32.gmra.mrb[0].mxu0 %v851
        %v1437 = vpop.f32.mrb[0].mxu0
        %v1438 = vadd.f32 0.0, %v1437
        %v1439 = vpop.f32.mrb[0].mxu0
        %1440 = vmatprep.mubr.f32.mxu0 0.0
        %1441 = vmatmul.mubr.f32.gmra.mrb[0].mxu0 %v854
        %v1442 = vpop.f32.mrb[0].mxu0
        %v1443 = vadd.f32 0.0, %v1442
        %v1444 = vpop.f32.mrb[0].mxu0
        %1445 = vmatprep.mubr.f32.mxu0 0.0
        %1446 = vmatmul.mubr.f32.gmra.mrb[0].mxu0 %v857
        %v1447 = vpop.f32.mrb[0].mxu0
        %v1448 = vadd.f32 0.0, %v1447
        %v1449 = vpop.f32.mrb[0].mxu0
        %1450 = vmatprep.mubr.f32.mxu0 0.0
        %1451 = vmatmul.mubr.f32.gmra.mrb[0].mxu0 %v860
        %v1452 = vpop.f32.mrb[0].mxu0
        %v1453 = vadd.f32 0.0, %v1452
        %v1454 = vpop.f32.mrb[0].mxu0
        %1455 = vmatprep.mubr.f32.mxu0 0.0
        %1456 = vmatmul.mubr.f32.gmra.mrb[0].mxu0 %v863
        %v1457 = vpop.f32.mrb[0].mxu0
        %v1458 = vadd.f32 0.0, %v1457
        %v1459 = vpop.f32.mrb[0].mxu0
        %1460 = vmatprep.mubr.f32.mxu0 0.0
        %1461 = vmatmul.mubr.f32.gmra.mrb[0].mxu0 %v866
        %v1462 = vpop.f32.mrb[0].mxu0
        %v1463 = vadd.f32 0.0, %v1462
        %v1464 = vpop.f32.mrb[0].mxu0
        %1465 = vmatprep.mubr.f32.mxu0 0.0
        %1466 = vmatmul.mubr.f32.gmra.mrb[0].mxu0 %v869
        %v1467 = vpop.f32.mrb[0].mxu0
        %v1468 = vadd.f32 0.0, %v1467
        %v1469 = vpop.f32.mrb[0].mxu0
        %1470 = vmatprep.mubr.f32.mxu0 0.0
        %1471 = vmatmul.mubr.f32.gmra.mrb[0].mxu0 %v872
        %v1472 = vpop.f32.mrb[0].mxu0
        %v1473 = vadd.f32 0.0, %v1472
        %v1474 = vpop.f32.mrb[0].mxu0
        %1475 = vmatprep.mubr.f32.mxu0 0.0
        %1476 = vmatmul.mubr.f32.gmra.mrb[0].mxu0 %v875
        %v1477 = vpop.f32.mrb[0].mxu0
        %v1478 = vadd.f32 0.0, %v1477
        %v1479 = vpop.f32.mrb[0].mxu0
        %1480 = vmatprep.mubr.f32.mxu0 0.0
        %1481 = vmatmul.mubr.f32.gmra.mrb[0].mxu0 %v878
        %v1482 = vpop.f32.mrb[0].mxu0
        %v1483 = vadd.f32 0.0, %v1482
        %v1484 = vpop.f32.mrb[0].mxu0
        %1485 = vmatprep.mubr.f32.mxu0 0.0
        %1486 = vmatmul.mubr.f32.gmra.mrb[0].mxu0 %v881
        %v1487 = vpop.f32.mrb[0].mxu0
        %v1488 = vadd.f32 0.0, %v1487
        %v1489 = vpop.f32.mrb[0].mxu0
        %1490 = vmatprep.mubr.f32.mxu0 0.0
        %1491 = vmatmul.mubr.f32.gmra.mrb[0].mxu0 %v884
        %v1492 = vpop.f32.mrb[0].mxu0
        %v1493 = vadd.f32 0.0, %v1492
        %v1494 = vpop.f32.mrb[0].mxu0
        %1495 = vdwg.mxu0
        %v1496 = vmul.f32 %v1258, %v1258
        %v1497 = vmul.f32 %v1263, %v1263
        %v1498 = vmul.f32 %v1268, %v1268
        %v1499 = vmul.f32 %v1273, %v1273
        %v1500 = vmul.f32 %v1278, %v1278
        %v1501 = vmul.f32 %v1283, %v1283
        %v1502 = vmul.f32 %v1288, %v1288
        %v1503 = vmul.f32 %v1293, %v1293
        %v1504 = vmul.f32 %v1298, %v1298
        %v1505 = vmul.f32 %v1303, %v1303
        %v1506 = vmul.f32 %v1308, %v1308
        %v1507 = vmul.f32 %v1313, %v1313
        %v1508 = vmul.f32 %v1318, %v1318
        %v1509 = vmul.f32 %v1323, %v1323
        %v1510 = vmul.f32 %v1328, %v1328
        %v1511 = vmul.f32 %v1333, %v1333
        %v1512 = vmul.f32 %v1338, %v1338
        %v1513 = vmul.f32 %v1343, %v1343
        %v1514 = vmul.f32 %v1348, %v1348
        %v1515 = vmul.f32 %v1353, %v1353
        %v1516 = vmul.f32 %v1358, %v1358
        %v1517 = vmul.f32 %v1363, %v1363
        %v1518 = vmul.f32 %v1368, %v1368
        %v1519 = vmul.f32 %v1373, %v1373
        %v1520 = vmul.f32 %v1378, %v1378
        %v1521 = vmul.f32 %v1383, %v1383
        %v1522 = vmul.f32 %v1388, %v1388
        %v1523 = vmul.f32 %v1393, %v1393
        %v1524 = vmul.f32 %v1398, %v1398
        %v1525 = vmul.f32 %v1403, %v1403
        %v1526 = vmul.f32 %v1408, %v1408
        %v1527 = vmul.f32 %v1413, %v1413
        %v1528 = vmul.f32 %v1418, %v1418
        %v1529 = vmul.f32 %v1423, %v1423
        %v1530 = vmul.f32 %v1428, %v1428
        %v1531 = vmul.f32 %v1433, %v1433
        %v1532 = vmul.f32 %v1438, %v1438
        %v1533 = vmul.f32 %v1443, %v1443
        %v1534 = vmul.f32 %v1448, %v1448
        %v1535 = vmul.f32 %v1453, %v1453
        %v1536 = vmul.f32 %v1458, %v1458
        %v1537 = vmul.f32 %v1463, %v1463
        %v1538 = vmul.f32 %v1468, %v1468
        %v1539 = vmul.f32 %v1473, %v1473
        %v1540 = vmul.f32 %v1478, %v1478
        %v1541 = vmul.f32 %v1483, %v1483
        %v1542 = vmul.f32 %v1488, %v1488
        %v1543 = vmul.f32 %v1493, %v1493
        %v1544 = vmul.f32 %v953, %v1258
        %v1545 = vmul.f32 %v958, %v1263
        %v1546 = vmul.f32 %v963, %v1268
        %v1547 = vmul.f32 %v968, %v1273
        %v1548 = vmul.f32 %v973, %v1278
        %v1549 = vmul.f32 %v978, %v1283
        %v1550 = vmul.f32 %v983, %v1288
        %v1551 = vmul.f32 %v988, %v1293
        %v1552 = vmul.f32 %v993, %v1298
        %v1553 = vmul.f32 %v998, %v1303
        %v1554 = vmul.f32 %v1003, %v1308
        %v1555 = vmul.f32 %v1008, %v1313
        %v1556 = vmul.f32 %v1013, %v1318
        %v1557 = vmul.f32 %v1018, %v1323
        %v1558 = vmul.f32 %v1023, %v1328
        %v1559 = vmul.f32 %v1028, %v1333
        %v1560 = vmul.f32 %v1033, %v1338
        %v1561 = vmul.f32 %v1038, %v1343
        %v1562 = vmul.f32 %v1043, %v1348
        %v1563 = vmul.f32 %v1048, %v1353
        %v1564 = vmul.f32 %v1053, %v1358
        %v1565 = vmul.f32 %v1058, %v1363
        %v1566 = vmul.f32 %v1063, %v1368
        %v1567 = vmul.f32 %v1068, %v1373
        %v1568 = vmul.f32 %v1073, %v1378
        %v1569 = vmul.f32 %v1078, %v1383
        %v1570 = vmul.f32 %v1083, %v1388
        %v1571 = vmul.f32 %v1088, %v1393
        %v1572 = vmul.f32 %v1093, %v1398
        %v1573 = vmul.f32 %v1098, %v1403
        %v1574 = vmul.f32 %v1103, %v1408
        %v1575 = vmul.f32 %v1108, %v1413
        %v1576 = vmul.f32 %v1113, %v1418
        %v1577 = vmul.f32 %v1118, %v1423
        %v1578 = vmul.f32 %v1123, %v1428
        %v1579 = vmul.f32 %v1128, %v1433
        %v1580 = vmul.f32 %v1133, %v1438
        %v1581 = vmul.f32 %v1138, %v1443
        %v1582 = vmul.f32 %v1143, %v1448
        %v1583 = vmul.f32 %v1148, %v1453
        %v1584 = vmul.f32 %v1153, %v1458
        %v1585 = vmul.f32 %v1158, %v1463
        %v1586 = vmul.f32 %v1163, %v1468
        %v1587 = vmul.f32 %v1168, %v1473
        %v1588 = vmul.f32 %v1173, %v1478
        %v1589 = vmul.f32 %v1178, %v1483
        %v1590 = vmul.f32 %v1183, %v1488
        %v1591 = vmul.f32 %v1188, %v1493
        %v1592 = vadd.f32 %v1496, %v1512
        %v1593 = vadd.f32 %v1497, %v1513
        %v1594 = vadd.f32 %v1498, %v1514
        %v1595 = vadd.f32 %v1499, %v1515
        %v1596 = vadd.f32 %v1500, %v1516
        %v1597 = vadd.f32 %v1501, %v1517
        %v1598 = vadd.f32 %v1502, %v1518
        %v1599 = vadd.f32 %v1503, %v1519
        %v1600 = vadd.f32 %v1504, %v1520
        %v1601 = vadd.f32 %v1505, %v1521
        %v1602 = vadd.f32 %v1506, %v1522
        %v1603 = vadd.f32 %v1507, %v1523
        %v1604 = vadd.f32 %v1508, %v1524
        %v1605 = vadd.f32 %v1509, %v1525
        %v1606 = vadd.f32 %v1510, %v1526
        %v1607 = vadd.f32 %v1511, %v1527
        %v1608 = vadd.f32 %v1592, %v1528
        %v1609 = vadd.f32 %v1593, %v1529
        %v1610 = vadd.f32 %v1594, %v1530
        %v1611 = vadd.f32 %v1595, %v1531
        %v1612 = vadd.f32 %v1596, %v1532
        %v1613 = vadd.f32 %v1597, %v1533
        %v1614 = vadd.f32 %v1598, %v1534
        %v1615 = vadd.f32 %v1599, %v1535
        %v1616 = vadd.f32 %v1600, %v1536
        %v1617 = vadd.f32 %v1601, %v1537
        %v1618 = vadd.f32 %v1602, %v1538
        %v1619 = vadd.f32 %v1603, %v1539
        %v1620 = vadd.f32 %v1604, %v1540
        %v1621 = vadd.f32 %v1605, %v1541
        %v1622 = vadd.f32 %v1606, %v1542
        %v1623 = vadd.f32 %v1607, %v1543
        %v1624 = vadd.f32 %v1544, %v1560
        %v1625 = vadd.f32 %v1545, %v1561
        %v1626 = vadd.f32 %v1546, %v1562
        %v1627 = vadd.f32 %v1547, %v1563
        %v1628 = vadd.f32 %v1548, %v1564
        %v1629 = vadd.f32 %v1549, %v1565
        %v1630 = vadd.f32 %v1550, %v1566
        %v1631 = vadd.f32 %v1551, %v1567
        %v1632 = vadd.f32 %v1552, %v1568
        %v1633 = vadd.f32 %v1553, %v1569
        %v1634 = vadd.f32 %v1554, %v1570
        %v1635 = vadd.f32 %v1555, %v1571
        %v1636 = vadd.f32 %v1556, %v1572
        %v1637 = vadd.f32 %v1557, %v1573
        %v1638 = vadd.f32 %v1558, %v1574
        %v1639 = vadd.f32 %v1559, %v1575
        %v1640 = vadd.f32 %v1624, %v1576
        %v1641 = vadd.f32 %v1625, %v1577
        %v1642 = vadd.f32 %v1626, %v1578
        %v1643 = vadd.f32 %v1627, %v1579
        %v1644 = vadd.f32 %v1628, %v1580
        %v1645 = vadd.f32 %v1629, %v1581
        %v1646 = vadd.f32 %v1630, %v1582
        %v1647 = vadd.f32 %v1631, %v1583
        %v1648 = vadd.f32 %v1632, %v1584
        %v1649 = vadd.f32 %v1633, %v1585
        %v1650 = vadd.f32 %v1634, %v1586
        %v1651 = vadd.f32 %v1635, %v1587
        %v1652 = vadd.f32 %v1636, %v1588
        %v1653 = vadd.f32 %v1637, %v1589
        %v1654 = vadd.f32 %v1638, %v1590
        %v1655 = vadd.f32 %v1639, %v1591
        %v1656 = vrsqrt.pop %v1608
        %v1657 = vmul.f32 %v1608, %v1656
        %vm1658 = vcmp.eq.f32.partialorder %v1608, inf
        %v1659 = vsel %vm1658, %v1608, %v1657
        %vm1660 = vcmp.eq.f32.partialorder %v1608, 0.0
        %v1661 = vand.u32 %v1608, 2147483648
        %v1662 = vsel %vm1660, %v1661, %v1659
        %v1663 = vrsqrt.pop %v1609
        %v1664 = vmul.f32 %v1609, %v1663
        %vm1665 = vcmp.eq.f32.partialorder %v1609, inf
        %v1666 = vsel %vm1665, %v1609, %v1664
        %vm1667 = vcmp.eq.f32.partialorder %v1609, 0.0
        %v1668 = vand.u32 %v1609, 2147483648
        %v1669 = vsel %vm1667, %v1668, %v1666
        %v1670 = vrsqrt.pop %v1610
        %v1671 = vmul.f32 %v1610, %v1670
        %vm1672 = vcmp.eq.f32.partialorder %v1610, inf
        %v1673 = vsel %vm1672, %v1610, %v1671
        %vm1674 = vcmp.eq.f32.partialorder %v1610, 0.0
        %v1675 = vand.u32 %v1610, 2147483648
        %v1676 = vsel %vm1674, %v1675, %v1673
        %v1677 = vrsqrt.pop %v1611
        %v1678 = vmul.f32 %v1611, %v1677
        %vm1679 = vcmp.eq.f32.partialorder %v1611, inf
        %v1680 = vsel %vm1679, %v1611, %v1678
        %vm1681 = vcmp.eq.f32.partialorder %v1611, 0.0
        %v1682 = vand.u32 %v1611, 2147483648
        %v1683 = vsel %vm1681, %v1682, %v1680
        %v1684 = vrsqrt.pop %v1612
        %v1685 = vmul.f32 %v1612, %v1684
        %vm1686 = vcmp.eq.f32.partialorder %v1612, inf
        %v1687 = vsel %vm1686, %v1612, %v1685
        %vm1688 = vcmp.eq.f32.partialorder %v1612, 0.0
        %v1689 = vand.u32 %v1612, 2147483648
        %v1690 = vsel %vm1688, %v1689, %v1687
        %v1691 = vrsqrt.pop %v1613
        %v1692 = vmul.f32 %v1613, %v1691
        %vm1693 = vcmp.eq.f32.partialorder %v1613, inf
        %v1694 = vsel %vm1693, %v1613, %v1692
        %vm1695 = vcmp.eq.f32.partialorder %v1613, 0.0
        %v1696 = vand.u32 %v1613, 2147483648
        %v1697 = vsel %vm1695, %v1696, %v1694
        %v1698 = vrsqrt.pop %v1614
        %v1699 = vmul.f32 %v1614, %v1698
        %vm1700 = vcmp.eq.f32.partialorder %v1614, inf
        %v1701 = vsel %vm1700, %v1614, %v1699
        %vm1702 = vcmp.eq.f32.partialorder %v1614, 0.0
        %v1703 = vand.u32 %v1614, 2147483648
        %v1704 = vsel %vm1702, %v1703, %v1701
        %v1705 = vrsqrt.pop %v1615
        %v1706 = vmul.f32 %v1615, %v1705
        %vm1707 = vcmp.eq.f32.partialorder %v1615, inf
        %v1708 = vsel %vm1707, %v1615, %v1706
        %vm1709 = vcmp.eq.f32.partialorder %v1615, 0.0
        %v1710 = vand.u32 %v1615, 2147483648
        %v1711 = vsel %vm1709, %v1710, %v1708
        %v1712 = vrsqrt.pop %v1616
        %v1713 = vmul.f32 %v1616, %v1712
        %vm1714 = vcmp.eq.f32.partialorder %v1616, inf
        %v1715 = vsel %vm1714, %v1616, %v1713
        %vm1716 = vcmp.eq.f32.partialorder %v1616, 0.0
        %v1717 = vand.u32 %v1616, 2147483648
        %v1718 = vsel %vm1716, %v1717, %v1715
        %v1719 = vrsqrt.pop %v1617
        %v1720 = vmul.f32 %v1617, %v1719
        %vm1721 = vcmp.eq.f32.partialorder %v1617, inf
        %v1722 = vsel %vm1721, %v1617, %v1720
        %vm1723 = vcmp.eq.f32.partialorder %v1617, 0.0
        %v1724 = vand.u32 %v1617, 2147483648
        %v1725 = vsel %vm1723, %v1724, %v1722
        %v1726 = vrsqrt.pop %v1618
        %v1727 = vmul.f32 %v1618, %v1726
        %vm1728 = vcmp.eq.f32.partialorder %v1618, inf
        %v1729 = vsel %vm1728, %v1618, %v1727
        %vm1730 = vcmp.eq.f32.partialorder %v1618, 0.0
        %v1731 = vand.u32 %v1618, 2147483648
        %v1732 = vsel %vm1730, %v1731, %v1729
        %v1733 = vrsqrt.pop %v1619
        %v1734 = vmul.f32 %v1619, %v1733
        %vm1735 = vcmp.eq.f32.partialorder %v1619, inf
        %v1736 = vsel %vm1735, %v1619, %v1734
        %vm1737 = vcmp.eq.f32.partialorder %v1619, 0.0
        %v1738 = vand.u32 %v1619, 2147483648
        %v1739 = vsel %vm1737, %v1738, %v1736
        %v1740 = vrsqrt.pop %v1620
        %v1741 = vmul.f32 %v1620, %v1740
        %vm1742 = vcmp.eq.f32.partialorder %v1620, inf
        %v1743 = vsel %vm1742, %v1620, %v1741
        %vm1744 = vcmp.eq.f32.partialorder %v1620, 0.0
        %v1745 = vand.u32 %v1620, 2147483648
        %v1746 = vsel %vm1744, %v1745, %v1743
        %v1747 = vrsqrt.pop %v1621
        %v1748 = vmul.f32 %v1621, %v1747
        %vm1749 = vcmp.eq.f32.partialorder %v1621, inf
        %v1750 = vsel %vm1749, %v1621, %v1748
        %vm1751 = vcmp.eq.f32.partialorder %v1621, 0.0
        %v1752 = vand.u32 %v1621, 2147483648
        %v1753 = vsel %vm1751, %v1752, %v1750
        %v1754 = vrsqrt.pop %v1622
        %v1755 = vmul.f32 %v1622, %v1754
        %vm1756 = vcmp.eq.f32.partialorder %v1622, inf
        %v1757 = vsel %vm1756, %v1622, %v1755
        %vm1758 = vcmp.eq.f32.partialorder %v1622, 0.0
        %v1759 = vand.u32 %v1622, 2147483648
        %v1760 = vsel %vm1758, %v1759, %v1757
        %v1761 = vrsqrt.pop %v1623
        %v1762 = vmul.f32 %v1623, %v1761
        %vm1763 = vcmp.eq.f32.partialorder %v1623, inf
        %v1764 = vsel %vm1763, %v1623, %v1762
        %vm1765 = vcmp.eq.f32.partialorder %v1623, 0.0
        %v1766 = vand.u32 %v1623, 2147483648
        %v1767 = vsel %vm1765, %v1766, %v1764
        %1784 = vrot.lane.b32.xlu0 %v1662, 32
        %v1785 = vpop.permute.xlu0 %1784
        %1786 = vrot.lane.b32.xlu0 %v1669, 32
        %v1787 = vpop.permute.xlu0 %1786
        %1788 = vrot.lane.b32.xlu0 %v1676, 32
        %v1789 = vpop.permute.xlu0 %1788
        %1790 = vrot.lane.b32.xlu0 %v1683, 32
        %v1791 = vpop.permute.xlu0 %1790
        %1792 = vrot.lane.b32.xlu0 %v1690, 32
        %v1793 = vpop.permute.xlu0 %1792
        %1794 = vrot.lane.b32.xlu0 %v1697, 32
        %v1795 = vpop.permute.xlu0 %1794
        %1796 = vrot.lane.b32.xlu0 %v1704, 32
        %v1797 = vpop.permute.xlu0 %1796
        %1798 = vrot.lane.b32.xlu0 %v1711, 32
        %v1799 = vpop.permute.xlu0 %1798
        %1800 = vrot.lane.b32.xlu0 %v1718, 32
        %v1801 = vpop.permute.xlu0 %1800
        %1802 = vrot.lane.b32.xlu0 %v1725, 32
        %v1803 = vpop.permute.xlu0 %1802
        %1804 = vrot.lane.b32.xlu0 %v1732, 32
        %v1805 = vpop.permute.xlu0 %1804
        %1806 = vrot.lane.b32.xlu0 %v1739, 32
        %v1807 = vpop.permute.xlu0 %1806
        %1808 = vrot.lane.b32.xlu0 %v1746, 32
        %v1809 = vpop.permute.xlu0 %1808
        %1810 = vrot.lane.b32.xlu0 %v1753, 32
        %v1811 = vpop.permute.xlu0 %1810
        %1812 = vrot.lane.b32.xlu0 %v1760, 32
        %v1813 = vpop.permute.xlu0 %1812
        %1814 = vrot.lane.b32.xlu0 %v1767, 32
        %v1815 = vpop.permute.xlu0 %1814
        %v1832 = vsel %vm741, %v661, %v1785
        %v1833 = vsel %vm741, %v662, %v1787
        %v1834 = vsel %vm741, %v663, %v1789
        %v1835 = vsel %vm741, %v664, %v1791
        %v1836 = vsel %vm741, %v665, %v1793
        %v1837 = vsel %vm741, %v666, %v1795
        %v1838 = vsel %vm741, %v667, %v1797
        %v1839 = vsel %vm741, %v668, %v1799
        %v1840 = vsel %vm741, %v669, %v1801
        %v1841 = vsel %vm741, %v670, %v1803
        %v1842 = vsel %vm741, %v671, %v1805
        %v1843 = vsel %vm741, %v672, %v1807
        %v1844 = vsel %vm741, %v673, %v1809
        %v1845 = vsel %vm741, %v674, %v1811
        %v1846 = vsel %vm741, %v675, %v1813
        %v1847 = vsel %vm741, %v676, %v1815
        %v1848 = vld [vmem:[%s4] sm:$0xf]
        %v1849 = vld [vmem:[%s4 + $0x4] sm:$0xf]
        %v1850 = vld [vmem:[%s4 + $0x8] sm:$0xf]
        %v1851 = vld [vmem:[%s4 + $0xc] sm:$0xf]
        %v1852 = vld [vmem:[%s4 + $0x10] sm:$0xf]
        %v1853 = vld [vmem:[%s4 + $0x14] sm:$0xf]
        %v1854 = vld [vmem:[%s4 + $0x18] sm:$0xf]
        %v1855 = vld [vmem:[%s4 + $0x1c] sm:$0xf]
        %v1856 = vunpack.c.l.bf16 %v1848
        %v1857 = vunpack.c.l.bf16 %v1849
        %v1858 = vunpack.c.l.bf16 %v1850
        %v1859 = vunpack.c.l.bf16 %v1851
        %v1860 = vunpack.c.l.bf16 %v1852
        %v1861 = vunpack.c.l.bf16 %v1853
        %v1862 = vunpack.c.l.bf16 %v1854
        %v1863 = vunpack.c.l.bf16 %v1855
        %v1864 = vld [vmem:[%s5] sm:$0x1]
        %v1865 = vunpack.c.l.bf16 %v1864
        %v1866 = vlaneseq
        %v1867 = vshrl.u32 %v1866, 7
        %v1868 = vsub.s32 0, %v1867
        %v1869 = vrot.slane %v1865, %v1868
        %vm1870 = vcmask 523264
        %v1872 = vsel %vm1870, %v1832, 0
        %v1875 = vsel %vm1870, %v1833, 0
        %v1878 = vsel %vm1870, %v1834, 0
        %v1881 = vsel %vm1870, %v1835, 0
        %v1884 = vsel %vm1870, %v1836, 0
        %v1887 = vsel %vm1870, %v1837, 0
        %v1890 = vsel %vm1870, %v1838, 0
        %v1893 = vsel %vm1870, %v1839, 0
        %v1896 = vsel %vm1870, %v1840, 0
        %v1899 = vsel %vm1870, %v1841, 0
        %v1902 = vsel %vm1870, %v1842, 0
        %v1905 = vsel %vm1870, %v1843, 0
        %v1908 = vsel %vm1870, %v1844, 0
        %v1911 = vsel %vm1870, %v1845, 0
        %v1914 = vsel %vm1870, %v1846, 0
        %v1917 = vsel %vm1870, %v1847, 0
        %1919 = vmatprep.subr.mxu0 0.0
        %1920 = vmatpush1.msra.mxu0 %v1856
        %1921 = vmatprep.subr.mxu0 0.0
        %1922 = vmatpush1.msra.mxu0 %v1857
        %1923 = vmatprep.subr.mxu0 0.0
        %1924 = vmatpush1.msra.mxu0 %v1858
        %1925 = vmatprep.subr.mxu0 0.0
        %1926 = vmatpush1.msra.mxu0 %v1859
        %1927 = vmatprep.subr.mxu0 0.0
        %1928 = vmatpush1.msra.mxu0 %v1860
        %1929 = vmatprep.subr.mxu0 0.0
        %1930 = vmatpush1.msra.mxu0 %v1861
        %1931 = vmatprep.subr.mxu0 0.0
        %1932 = vmatpush1.msra.mxu0 %v1862
        %1933 = vmatprep.subr.mxu0 0.0
        %1934 = vmatpush1.msra.mxu0 %v1863
        %1935 = vmatprep.subr.mxu0 0.0
        %1936 = vmatpush1.msra.mxu0 0.0
        %1937 = vmatprep.subr.mxu0 0.0
        %1938 = vmatpush1.msra.mxu0 0.0
        %1939 = vmatprep.subr.mxu0 0.0
        %1940 = vmatpush1.msra.mxu0 0.0
        %1941 = vmatprep.subr.mxu0 0.0
        %1942 = vmatpush1.msra.mxu0 0.0
        %1943 = vmatprep.subr.mxu0 0.0
        %1944 = vmatpush1.msra.mxu0 0.0
        %1945 = vmatprep.subr.mxu0 0.0
        %1946 = vmatpush1.msra.mxu0 0.0
        %1947 = vmatprep.subr.mxu0 0.0
        %1948 = vmatpush1.msra.mxu0 0.0
        %1949 = vmatprep.subr.mxu0 0.0
        %1950 = vmatpush1.msra.mxu0 0.0
        %1951 = vmatprep.subr.mxu0 0.0
        %1952 = vmatpush1.msra.mxu0 0.0
        %1953 = vmatprep.subr.mxu0 0.0
        %1954 = vmatpush1.msra.mxu0 0.0
        %1955 = vmatprep.subr.mxu0 0.0
        %1956 = vmatpush1.msra.mxu0 0.0
        %1957 = vmatprep.subr.mxu0 0.0
        %1958 = vmatpush1.msra.mxu0 0.0
        %1959 = vmatprep.subr.mxu0 0.0
        %1960 = vmatpush1.msra.mxu0 0.0
        %1961 = vmatprep.subr.mxu0 0.0
        %1962 = vmatpush1.msra.mxu0 0.0
        %1963 = vmatprep.subr.mxu0 0.0
        %1964 = vmatpush1.msra.mxu0 0.0
        %1965 = vmatprep.subr.mxu0 0.0
        %1966 = vmatpush1.msra.mxu0 0.0
        %1967 = vmatprep.subr.mxu0 0.0
        %1968 = vmatpush1.msra.mxu0 0.0
        %1969 = vmatprep.subr.mxu0 0.0
        %1970 = vmatpush1.msra.mxu0 0.0
        %1971 = vmatprep.subr.mxu0 0.0
        %1972 = vmatpush1.msra.mxu0 0.0
        %1973 = vmatprep.subr.mxu0 0.0
        %1974 = vmatpush1.msra.mxu0 0.0
        %1975 = vmatprep.subr.mxu0 0.0
        %1976 = vmatpush1.msra.mxu0 0.0
        %1977 = vmatprep.subr.mxu0 0.0
        %1978 = vmatpush1.msra.mxu0 0.0
        %1979 = vmatprep.subr.mxu0 0.0
        %1980 = vmatpush1.msra.mxu0 0.0
        %1981 = vmatprep.subr.mxu0 0.0
        %1982 = vmatpush1.msra.mxu0 0.0
        %1983 = vmatprep.mubr.f32.mxu0 0.0
        %1984 = vmatmul.mubr.f32.gmra.mrb[0].mxu0 %v1872
        %v1985 = vpop.f32.mrb[0].mxu0
        %v1986 = vadd.f32 %v1869, %v1985
        %v1987 = vpop.f32.mrb[0].mxu0
        %1988 = vmatprep.mubr.f32.mxu0 0.0
        %1989 = vmatmul.mubr.f32.gmra.mrb[0].mxu0 %v1875
        %v1990 = vpop.f32.mrb[0].mxu0
        %v1991 = vadd.f32 %v1869, %v1990
        %v1992 = vpop.f32.mrb[0].mxu0
        %1993 = vmatprep.mubr.f32.mxu0 0.0
        %1994 = vmatmul.mubr.f32.gmra.mrb[0].mxu0 %v1878
        %v1995 = vpop.f32.mrb[0].mxu0
        %v1996 = vadd.f32 %v1869, %v1995
        %v1997 = vpop.f32.mrb[0].mxu0
        %1998 = vmatprep.mubr.f32.mxu0 0.0
        %1999 = vmatmul.mubr.f32.gmra.mrb[0].mxu0 %v1881
        %v2000 = vpop.f32.mrb[0].mxu0
        %v2001 = vadd.f32 %v1869, %v2000
        %v2002 = vpop.f32.mrb[0].mxu0
        %2003 = vmatprep.mubr.f32.mxu0 0.0
        %2004 = vmatmul.mubr.f32.gmra.mrb[0].mxu0 %v1884
        %v2005 = vpop.f32.mrb[0].mxu0
        %v2006 = vadd.f32 %v1869, %v2005
        %v2007 = vpop.f32.mrb[0].mxu0
        %2008 = vmatprep.mubr.f32.mxu0 0.0
        %2009 = vmatmul.mubr.f32.gmra.mrb[0].mxu0 %v1887
        %v2010 = vpop.f32.mrb[0].mxu0
        %v2011 = vadd.f32 %v1869, %v2010
        %v2012 = vpop.f32.mrb[0].mxu0
        %2013 = vmatprep.mubr.f32.mxu0 0.0
        %2014 = vmatmul.mubr.f32.gmra.mrb[0].mxu0 %v1890
        %v2015 = vpop.f32.mrb[0].mxu0
        %v2016 = vadd.f32 %v1869, %v2015
        %v2017 = vpop.f32.mrb[0].mxu0
        %2018 = vmatprep.mubr.f32.mxu0 0.0
        %2019 = vmatmul.mubr.f32.gmra.mrb[0].mxu0 %v1893
        %v2020 = vpop.f32.mrb[0].mxu0
        %v2021 = vadd.f32 %v1869, %v2020
        %v2022 = vpop.f32.mrb[0].mxu0
        %2023 = vmatprep.mubr.f32.mxu0 0.0
        %2024 = vmatmul.mubr.f32.gmra.mrb[0].mxu0 %v1896
        %v2025 = vpop.f32.mrb[0].mxu0
        %v2026 = vadd.f32 %v1869, %v2025
        %v2027 = vpop.f32.mrb[0].mxu0
        %2028 = vmatprep.mubr.f32.mxu0 0.0
        %2029 = vmatmul.mubr.f32.gmra.mrb[0].mxu0 %v1899
        %v2030 = vpop.f32.mrb[0].mxu0
        %v2031 = vadd.f32 %v1869, %v2030
        %v2032 = vpop.f32.mrb[0].mxu0
        %2033 = vmatprep.mubr.f32.mxu0 0.0
        %2034 = vmatmul.mubr.f32.gmra.mrb[0].mxu0 %v1902
        %v2035 = vpop.f32.mrb[0].mxu0
        %v2036 = vadd.f32 %v1869, %v2035
        %v2037 = vpop.f32.mrb[0].mxu0
        %2038 = vmatprep.mubr.f32.mxu0 0.0
        %2039 = vmatmul.mubr.f32.gmra.mrb[0].mxu0 %v1905
        %v2040 = vpop.f32.mrb[0].mxu0
        %v2041 = vadd.f32 %v1869, %v2040
        %v2042 = vpop.f32.mrb[0].mxu0
        %2043 = vmatprep.mubr.f32.mxu0 0.0
        %2044 = vmatmul.mubr.f32.gmra.mrb[0].mxu0 %v1908
        %v2045 = vpop.f32.mrb[0].mxu0
        %v2046 = vadd.f32 %v1869, %v2045
        %v2047 = vpop.f32.mrb[0].mxu0
        %2048 = vmatprep.mubr.f32.mxu0 0.0
        %2049 = vmatmul.mubr.f32.gmra.mrb[0].mxu0 %v1911
        %v2050 = vpop.f32.mrb[0].mxu0
        %v2051 = vadd.f32 %v1869, %v2050
        %v2052 = vpop.f32.mrb[0].mxu0
        %2053 = vmatprep.mubr.f32.mxu0 0.0
        %2054 = vmatmul.mubr.f32.gmra.mrb[0].mxu0 %v1914
        %v2055 = vpop.f32.mrb[0].mxu0
        %v2056 = vadd.f32 %v1869, %v2055
        %v2057 = vpop.f32.mrb[0].mxu0
        %2058 = vmatprep.mubr.f32.mxu0 0.0
        %2059 = vmatmul.mubr.f32.gmra.mrb[0].mxu0 %v1917
        %v2060 = vpop.f32.mrb[0].mxu0
        %v2061 = vadd.f32 %v1869, %v2060
        %v2062 = vpop.f32.mrb[0].mxu0
        %2063 = vdwg.mxu0
        %v2064 = vxor.u32 %v1986, 2147483648
        %v2065 = vxor.u32 %v1991, 2147483648
        %v2066 = vxor.u32 %v1996, 2147483648
        %v2067 = vxor.u32 %v2001, 2147483648
        %v2068 = vxor.u32 %v2006, 2147483648
        %v2069 = vxor.u32 %v2011, 2147483648
        %v2070 = vxor.u32 %v2016, 2147483648
        %v2071 = vxor.u32 %v2021, 2147483648
        %v2072 = vxor.u32 %v2026, 2147483648
        %v2073 = vxor.u32 %v2031, 2147483648
        %v2074 = vxor.u32 %v2036, 2147483648
        %v2075 = vxor.u32 %v2041, 2147483648
        %v2076 = vxor.u32 %v2046, 2147483648
        %v2077 = vxor.u32 %v2051, 2147483648
        %v2078 = vxor.u32 %v2056, 2147483648
        %v2079 = vxor.u32 %v2061, 2147483648
        %v2080 = vmul.f32 %v2064, 1.442695
        %v2081 = vpow.pop %v2080
        %v2082 = vmul.f32 %v2065, 1.442695
        %v2083 = vpow.pop %v2082
        %v2084 = vmul.f32 %v2066, 1.442695
        %v2085 = vpow.pop %v2084
        %v2086 = vmul.f32 %v2067, 1.442695
        %v2087 = vpow.pop %v2086
        %v2088 = vmul.f32 %v2068, 1.442695
        %v2089 = vpow.pop %v2088
        %v2090 = vmul.f32 %v2069, 1.442695
        %v2091 = vpow.pop %v2090
        %v2092 = vmul.f32 %v2070, 1.442695
        %v2093 = vpow.pop %v2092
        %v2094 = vmul.f32 %v2071, 1.442695
        %v2095 = vpow.pop %v2094
        %v2096 = vmul.f32 %v2072, 1.442695
        %v2097 = vpow.pop %v2096
        %v2098 = vmul.f32 %v2073, 1.442695
        %v2099 = vpow.pop %v2098
        %v2100 = vmul.f32 %v2074, 1.442695
        %v2101 = vpow.pop %v2100
        %v2102 = vmul.f32 %v2075, 1.442695
        %v2103 = vpow.pop %v2102
        %v2104 = vmul.f32 %v2076, 1.442695
        %v2105 = vpow.pop %v2104
        %v2106 = vmul.f32 %v2077, 1.442695
        %v2107 = vpow.pop %v2106
        %v2108 = vmul.f32 %v2078, 1.442695
        %v2109 = vpow.pop %v2108
        %v2110 = vmul.f32 %v2079, 1.442695
        %v2111 = vpow.pop %v2110
        %v2112 = vadd.f32 %v2081, 1.0
        %v2113 = vadd.f32 %v2083, 1.0
        %v2114 = vadd.f32 %v2085, 1.0
        %v2115 = vadd.f32 %v2087, 1.0
        %v2116 = vadd.f32 %v2089, 1.0
        %v2117 = vadd.f32 %v2091, 1.0
        %v2118 = vadd.f32 %v2093, 1.0
        %v2119 = vadd.f32 %v2095, 1.0
        %v2120 = vadd.f32 %v2097, 1.0
        %v2121 = vadd.f32 %v2099, 1.0
        %v2122 = vadd.f32 %v2101, 1.0
        %v2123 = vadd.f32 %v2103, 1.0
        %v2124 = vadd.f32 %v2105, 1.0
        %v2125 = vadd.f32 %v2107, 1.0
        %v2126 = vadd.f32 %v2109, 1.0
        %v2127 = vadd.f32 %v2111, 1.0
        %v2128 = vrcp.pop %v2112
        %v2129 = vmul.f32 1.0, %v2128
        %v2130 = vrcp.pop %v2113
        %v2131 = vmul.f32 1.0, %v2130
        %v2132 = vrcp.pop %v2114
        %v2133 = vmul.f32 1.0, %v2132
        %v2134 = vrcp.pop %v2115
        %v2135 = vmul.f32 1.0, %v2134
        %v2136 = vrcp.pop %v2116
        %v2137 = vmul.f32 1.0, %v2136
        %v2138 = vrcp.pop %v2117
        %v2139 = vmul.f32 1.0, %v2138
        %v2140 = vrcp.pop %v2118
        %v2141 = vmul.f32 1.0, %v2140
        %v2142 = vrcp.pop %v2119
        %v2143 = vmul.f32 1.0, %v2142
        %v2144 = vrcp.pop %v2120
        %v2145 = vmul.f32 1.0, %v2144
        %v2146 = vrcp.pop %v2121
        %v2147 = vmul.f32 1.0, %v2146
        %v2148 = vrcp.pop %v2122
        %v2149 = vmul.f32 1.0, %v2148
        %v2150 = vrcp.pop %v2123
        %v2151 = vmul.f32 1.0, %v2150
        %v2152 = vrcp.pop %v2124
        %v2153 = vmul.f32 1.0, %v2152
        %v2154 = vrcp.pop %v2125
        %v2155 = vmul.f32 1.0, %v2154
        %v2156 = vrcp.pop %v2126
        %v2157 = vmul.f32 1.0, %v2156
        %v2158 = vrcp.pop %v2127
        %v2159 = vmul.f32 1.0, %v2158
        %v2160 = vmul.f32 %v1986, %v2129
        %v2161 = vmul.f32 %v1991, %v2131
        %v2162 = vmul.f32 %v1996, %v2133
        %v2163 = vmul.f32 %v2001, %v2135
        %v2164 = vmul.f32 %v2006, %v2137
        %v2165 = vmul.f32 %v2011, %v2139
        %v2166 = vmul.f32 %v2016, %v2141
        %v2167 = vmul.f32 %v2021, %v2143
        %v2168 = vmul.f32 %v2026, %v2145
        %v2169 = vmul.f32 %v2031, %v2147
        %v2170 = vmul.f32 %v2036, %v2149
        %v2171 = vmul.f32 %v2041, %v2151
        %v2172 = vmul.f32 %v2046, %v2153
        %v2173 = vmul.f32 %v2051, %v2155
        %v2174 = vmul.f32 %v2056, %v2157
        %v2175 = vmul.f32 %v2061, %v2159
        %v2176 = vld [vmem:[%s6] sm:$0xf]
        %v2177 = vld [vmem:[%s6 + $0x4] sm:$0xf]
        %v2178 = vld [vmem:[%s6 + $0x8] sm:$0xf]
        %v2179 = vld [vmem:[%s6 + $0xc] sm:$0xf]
        %v2180 = vunpack.c.l.bf16 %v2176
        %v2181 = vunpack.c.l.bf16 %v2177
        %v2182 = vunpack.c.l.bf16 %v2178
        %v2183 = vunpack.c.l.bf16 %v2179
        %v2184 = vld [vmem:[%s9] sm:$0x1]
        %v2185 = vunpack.c.l.bf16 %v2184
        %v2186 = vlaneseq
        %v2187 = vshrl.u32 %v2186, 7
        %v2188 = vsub.s32 0, %v2187
        %v2189 = vrot.slane %v2185, %v2188
        %v2191 = vsel %vm741, %v2160, 0
        %v2194 = vsel %vm741, %v2161, 0
        %v2197 = vsel %vm741, %v2162, 0
        %v2200 = vsel %vm741, %v2163, 0
        %v2203 = vsel %vm741, %v2164, 0
        %v2206 = vsel %vm741, %v2165, 0
        %v2209 = vsel %vm741, %v2166, 0
        %v2212 = vsel %vm741, %v2167, 0
        %v2215 = vsel %vm741, %v2168, 0
        %v2218 = vsel %vm741, %v2169, 0
        %v2221 = vsel %vm741, %v2170, 0
        %v2224 = vsel %vm741, %v2171, 0
        %v2227 = vsel %vm741, %v2172, 0
        %v2230 = vsel %vm741, %v2173, 0
        %v2233 = vsel %vm741, %v2174, 0
        %v2236 = vsel %vm741, %v2175, 0
        %2238 = vmatprep.subr.mxu0 0.0
        %2239 = vmatpush1.msra.mxu0 %v2180
        %2240 = vmatprep.subr.mxu0 0.0
        %2241 = vmatpush1.msra.mxu0 %v2181
        %2242 = vmatprep.subr.mxu0 0.0
        %2243 = vmatpush1.msra.mxu0 %v2182
        %2244 = vmatprep.subr.mxu0 0.0
        %2245 = vmatpush1.msra.mxu0 %v2183
        %2246 = vmatprep.subr.mxu0 0.0
        %2247 = vmatpush1.msra.mxu0 0.0
        %2248 = vmatprep.subr.mxu0 0.0
        %2249 = vmatpush1.msra.mxu0 0.0
        %2250 = vmatprep.subr.mxu0 0.0
        %2251 = vmatpush1.msra.mxu0 0.0
        %2252 = vmatprep.subr.mxu0 0.0
        %2253 = vmatpush1.msra.mxu0 0.0
        %2254 = vmatprep.subr.mxu0 0.0
        %2255 = vmatpush1.msra.mxu0 0.0
        %2256 = vmatprep.subr.mxu0 0.0
        %2257 = vmatpush1.msra.mxu0 0.0
        %2258 = vmatprep.subr.mxu0 0.0
        %2259 = vmatpush1.msra.mxu0 0.0
        %2260 = vmatprep.subr.mxu0 0.0
        %2261 = vmatpush1.msra.mxu0 0.0
        %2262 = vmatprep.subr.mxu0 0.0
        %2263 = vmatpush1.msra.mxu0 0.0
        %2264 = vmatprep.subr.mxu0 0.0
        %2265 = vmatpush1.msra.mxu0 0.0
        %2266 = vmatprep.subr.mxu0 0.0
        %2267 = vmatpush1.msra.mxu0 0.0
        %2268 = vmatprep.subr.mxu0 0.0
        %2269 = vmatpush1.msra.mxu0 0.0
        %2270 = vmatprep.subr.mxu0 0.0
        %2271 = vmatpush1.msra.mxu0 0.0
        %2272 = vmatprep.subr.mxu0 0.0
        %2273 = vmatpush1.msra.mxu0 0.0
        %2274 = vmatprep.subr.mxu0 0.0
        %2275 = vmatpush1.msra.mxu0 0.0
        %2276 = vmatprep.subr.mxu0 0.0
        %2277 = vmatpush1.msra.mxu0 0.0
        %2278 = vmatprep.subr.mxu0 0.0
        %2279 = vmatpush1.msra.mxu0 0.0
        %2280 = vmatprep.subr.mxu0 0.0
        %2281 = vmatpush1.msra.mxu0 0.0
        %2282 = vmatprep.subr.mxu0 0.0
        %2283 = vmatpush1.msra.mxu0 0.0
        %2284 = vmatprep.subr.mxu0 0.0
        %2285 = vmatpush1.msra.mxu0 0.0
        %2286 = vmatprep.subr.mxu0 0.0
        %2287 = vmatpush1.msra.mxu0 0.0
        %2288 = vmatprep.subr.mxu0 0.0
        %2289 = vmatpush1.msra.mxu0 0.0
        %2290 = vmatprep.subr.mxu0 0.0
        %2291 = vmatpush1.msra.mxu0 0.0
        %2292 = vmatprep.subr.mxu0 0.0
        %2293 = vmatpush1.msra.mxu0 0.0
        %2294 = vmatprep.subr.mxu0 0.0
        %2295 = vmatpush1.msra.mxu0 0.0
        %2296 = vmatprep.subr.mxu0 0.0
        %2297 = vmatpush1.msra.mxu0 0.0
        %2298 = vmatprep.subr.mxu0 0.0
        %2299 = vmatpush1.msra.mxu0 0.0
        %2300 = vmatprep.subr.mxu0 0.0
        %2301 = vmatpush1.msra.mxu0 0.0
        %2302 = vmatprep.mubr.f32.mxu0 0.0
        %2303 = vmatmul.mubr.f32.gmra.mrb[0].mxu0 %v2191
        %v2304 = vpop.f32.mrb[0].mxu0
        %v2305 = vadd.f32 %v2189, %v2304
        %v2306 = vpop.f32.mrb[0].mxu0
        %2307 = vmatprep.mubr.f32.mxu0 0.0
        %2308 = vmatmul.mubr.f32.gmra.mrb[0].mxu0 %v2194
        %v2309 = vpop.f32.mrb[0].mxu0
        %v2310 = vadd.f32 %v2189, %v2309
        %v2311 = vpop.f32.mrb[0].mxu0
        %2312 = vmatprep.mubr.f32.mxu0 0.0
        %2313 = vmatmul.mubr.f32.gmra.mrb[0].mxu0 %v2197
        %v2314 = vpop.f32.mrb[0].mxu0
        %v2315 = vadd.f32 %v2189, %v2314
        %v2316 = vpop.f32.mrb[0].mxu0
        %2317 = vmatprep.mubr.f32.mxu0 0.0
        %2318 = vmatmul.mubr.f32.gmra.mrb[0].mxu0 %v2200
        %v2319 = vpop.f32.mrb[0].mxu0
        %v2320 = vadd.f32 %v2189, %v2319
        %v2321 = vpop.f32.mrb[0].mxu0
        %2322 = vmatprep.mubr.f32.mxu0 0.0
        %2323 = vmatmul.mubr.f32.gmra.mrb[0].mxu0 %v2203
        %v2324 = vpop.f32.mrb[0].mxu0
        %v2325 = vadd.f32 %v2189, %v2324
        %v2326 = vpop.f32.mrb[0].mxu0
        %2327 = vmatprep.mubr.f32.mxu0 0.0
        %2328 = vmatmul.mubr.f32.gmra.mrb[0].mxu0 %v2206
        %v2329 = vpop.f32.mrb[0].mxu0
        %v2330 = vadd.f32 %v2189, %v2329
        %v2331 = vpop.f32.mrb[0].mxu0
        %2332 = vmatprep.mubr.f32.mxu0 0.0
        %2333 = vmatmul.mubr.f32.gmra.mrb[0].mxu0 %v2209
        %v2334 = vpop.f32.mrb[0].mxu0
        %v2335 = vadd.f32 %v2189, %v2334
        %v2336 = vpop.f32.mrb[0].mxu0
        %2337 = vmatprep.mubr.f32.mxu0 0.0
        %2338 = vmatmul.mubr.f32.gmra.mrb[0].mxu0 %v2212
        %v2339 = vpop.f32.mrb[0].mxu0
        %v2340 = vadd.f32 %v2189, %v2339
        %v2341 = vpop.f32.mrb[0].mxu0
        %2342 = vmatprep.mubr.f32.mxu0 0.0
        %2343 = vmatmul.mubr.f32.gmra.mrb[0].mxu0 %v2215
        %v2344 = vpop.f32.mrb[0].mxu0
        %v2345 = vadd.f32 %v2189, %v2344
        %v2346 = vpop.f32.mrb[0].mxu0
        %2347 = vmatprep.mubr.f32.mxu0 0.0
        %2348 = vmatmul.mubr.f32.gmra.mrb[0].mxu0 %v2218
        %v2349 = vpop.f32.mrb[0].mxu0
        %v2350 = vadd.f32 %v2189, %v2349
        %v2351 = vpop.f32.mrb[0].mxu0
        %2352 = vmatprep.mubr.f32.mxu0 0.0
        %2353 = vmatmul.mubr.f32.gmra.mrb[0].mxu0 %v2221
        %v2354 = vpop.f32.mrb[0].mxu0
        %v2355 = vadd.f32 %v2189, %v2354
        %v2356 = vpop.f32.mrb[0].mxu0
        %2357 = vmatprep.mubr.f32.mxu0 0.0
        %2358 = vmatmul.mubr.f32.gmra.mrb[0].mxu0 %v2224
        %v2359 = vpop.f32.mrb[0].mxu0
        %v2360 = vadd.f32 %v2189, %v2359
        %v2361 = vpop.f32.mrb[0].mxu0
        %2362 = vmatprep.mubr.f32.mxu0 0.0
        %2363 = vmatmul.mubr.f32.gmra.mrb[0].mxu0 %v2227
        %v2364 = vpop.f32.mrb[0].mxu0
        %v2365 = vadd.f32 %v2189, %v2364
        %v2366 = vpop.f32.mrb[0].mxu0
        %2367 = vmatprep.mubr.f32.mxu0 0.0
        %2368 = vmatmul.mubr.f32.gmra.mrb[0].mxu0 %v2230
        %v2369 = vpop.f32.mrb[0].mxu0
        %v2370 = vadd.f32 %v2189, %v2369
        %v2371 = vpop.f32.mrb[0].mxu0
        %2372 = vmatprep.mubr.f32.mxu0 0.0
        %2373 = vmatmul.mubr.f32.gmra.mrb[0].mxu0 %v2233
        %v2374 = vpop.f32.mrb[0].mxu0
        %v2375 = vadd.f32 %v2189, %v2374
        %v2376 = vpop.f32.mrb[0].mxu0
        %2377 = vmatprep.mubr.f32.mxu0 0.0
        %2378 = vmatmul.mubr.f32.gmra.mrb[0].mxu0 %v2236
        %v2379 = vpop.f32.mrb[0].mxu0
        %v2380 = vadd.f32 %v2189, %v2379
        %v2381 = vpop.f32.mrb[0].mxu0
        %2382 = vdwg.mxu0
        %v2383 = vld [vmem:[%s7] sm:$0xf]
        %v2384 = vld [vmem:[%s7 + $0x4] sm:$0xf]
        %v2385 = vld [vmem:[%s7 + $0x8] sm:$0xf]
        %v2386 = vld [vmem:[%s7 + $0xc] sm:$0xf]
        %v2387 = vunpack.c.l.bf16 %v2383
        %v2388 = vunpack.c.l.bf16 %v2384
        %v2389 = vunpack.c.l.bf16 %v2385
        %v2390 = vunpack.c.l.bf16 %v2386
        %v2391 = vld [vmem:[%s10] sm:$0x1]
        %v2392 = vunpack.c.l.bf16 %v2391
        %v2393 = vlaneseq
        %v2394 = vshrl.u32 %v2393, 7
        %v2395 = vsub.s32 0, %v2394
        %v2396 = vrot.slane %v2392, %v2395
        %2397 = vmatprep.subr.mxu0 0.0
        %2398 = vmatpush1.msra.mxu0 %v2387
        %2399 = vmatprep.subr.mxu0 0.0
        %2400 = vmatpush1.msra.mxu0 %v2388
        %2401 = vmatprep.subr.mxu0 0.0
        %2402 = vmatpush1.msra.mxu0 %v2389
        %2403 = vmatprep.subr.mxu0 0.0
        %2404 = vmatpush1.msra.mxu0 %v2390
        %2405 = vmatprep.subr.mxu0 0.0
        %2406 = vmatpush1.msra.mxu0 0.0
        %2407 = vmatprep.subr.mxu0 0.0
        %2408 = vmatpush1.msra.mxu0 0.0
        %2409 = vmatprep.subr.mxu0 0.0
        %2410 = vmatpush1.msra.mxu0 0.0
        %2411 = vmatprep.subr.mxu0 0.0
        %2412 = vmatpush1.msra.mxu0 0.0
        %2413 = vmatprep.subr.mxu0 0.0
        %2414 = vmatpush1.msra.mxu0 0.0
        %2415 = vmatprep.subr.mxu0 0.0
        %2416 = vmatpush1.msra.mxu0 0.0
        %2417 = vmatprep.subr.mxu0 0.0
        %2418 = vmatpush1.msra.mxu0 0.0
        %2419 = vmatprep.subr.mxu0 0.0
        %2420 = vmatpush1.msra.mxu0 0.0
        %2421 = vmatprep.subr.mxu0 0.0
        %2422 = vmatpush1.msra.mxu0 0.0
        %2423 = vmatprep.subr.mxu0 0.0
        %2424 = vmatpush1.msra.mxu0 0.0
        %2425 = vmatprep.subr.mxu0 0.0
        %2426 = vmatpush1.msra.mxu0 0.0
        %2427 = vmatprep.subr.mxu0 0.0
        %2428 = vmatpush1.msra.mxu0 0.0
        %2429 = vmatprep.subr.mxu0 0.0
        %2430 = vmatpush1.msra.mxu0 0.0
        %2431 = vmatprep.subr.mxu0 0.0
        %2432 = vmatpush1.msra.mxu0 0.0
        %2433 = vmatprep.subr.mxu0 0.0
        %2434 = vmatpush1.msra.mxu0 0.0
        %2435 = vmatprep.subr.mxu0 0.0
        %2436 = vmatpush1.msra.mxu0 0.0
        %2437 = vmatprep.subr.mxu0 0.0
        %2438 = vmatpush1.msra.mxu0 0.0
        %2439 = vmatprep.subr.mxu0 0.0
        %2440 = vmatpush1.msra.mxu0 0.0
        %2441 = vmatprep.subr.mxu0 0.0
        %2442 = vmatpush1.msra.mxu0 0.0
        %2443 = vmatprep.subr.mxu0 0.0
        %2444 = vmatpush1.msra.mxu0 0.0
        %2445 = vmatprep.subr.mxu0 0.0
        %2446 = vmatpush1.msra.mxu0 0.0
        %2447 = vmatprep.subr.mxu0 0.0
        %2448 = vmatpush1.msra.mxu0 0.0
        %2449 = vmatprep.subr.mxu0 0.0
        %2450 = vmatpush1.msra.mxu0 0.0
        %2451 = vmatprep.subr.mxu0 0.0
        %2452 = vmatpush1.msra.mxu0 0.0
        %2453 = vmatprep.subr.mxu0 0.0
        %2454 = vmatpush1.msra.mxu0 0.0
        %2455 = vmatprep.subr.mxu0 0.0
        %2456 = vmatpush1.msra.mxu0 0.0
        %2457 = vmatprep.subr.mxu0 0.0
        %2458 = vmatpush1.msra.mxu0 0.0
        %2459 = vmatprep.subr.mxu0 0.0
        %2460 = vmatpush1.msra.mxu0 0.0
        %2461 = vmatprep.mubr.f32.mxu0 0.0
        %2462 = vmatmul.mubr.f32.gmra.mrb[0].mxu0 %v2191
        %v2463 = vpop.f32.mrb[0].mxu0
        %v2464 = vadd.f32 %v2396, %v2463
        %v2465 = vpop.f32.mrb[0].mxu0
        %2466 = vmatprep.mubr.f32.mxu0 0.0
        %2467 = vmatmul.mubr.f32.gmra.mrb[0].mxu0 %v2194
        %v2468 = vpop.f32.mrb[0].mxu0
        %v2469 = vadd.f32 %v2396, %v2468
        %v2470 = vpop.f32.mrb[0].mxu0
        %2471 = vmatprep.mubr.f32.mxu0 0.0
        %2472 = vmatmul.mubr.f32.gmra.mrb[0].mxu0 %v2197
        %v2473 = vpop.f32.mrb[0].mxu0
        %v2474 = vadd.f32 %v2396, %v2473
        %v2475 = vpop.f32.mrb[0].mxu0
        %2476 = vmatprep.mubr.f32.mxu0 0.0
        %2477 = vmatmul.mubr.f32.gmra.mrb[0].mxu0 %v2200
        %v2478 = vpop.f32.mrb[0].mxu0
        %v2479 = vadd.f32 %v2396, %v2478
        %v2480 = vpop.f32.mrb[0].mxu0
        %2481 = vmatprep.mubr.f32.mxu0 0.0
        %2482 = vmatmul.mubr.f32.gmra.mrb[0].mxu0 %v2203
        %v2483 = vpop.f32.mrb[0].mxu0
        %v2484 = vadd.f32 %v2396, %v2483
        %v2485 = vpop.f32.mrb[0].mxu0
        %2486 = vmatprep.mubr.f32.mxu0 0.0
        %2487 = vmatmul.mubr.f32.gmra.mrb[0].mxu0 %v2206
        %v2488 = vpop.f32.mrb[0].mxu0
        %v2489 = vadd.f32 %v2396, %v2488
        %v2490 = vpop.f32.mrb[0].mxu0
        %2491 = vmatprep.mubr.f32.mxu0 0.0
        %2492 = vmatmul.mubr.f32.gmra.mrb[0].mxu0 %v2209
        %v2493 = vpop.f32.mrb[0].mxu0
        %v2494 = vadd.f32 %v2396, %v2493
        %v2495 = vpop.f32.mrb[0].mxu0
        %2496 = vmatprep.mubr.f32.mxu0 0.0
        %2497 = vmatmul.mubr.f32.gmra.mrb[0].mxu0 %v2212
        %v2498 = vpop.f32.mrb[0].mxu0
        %v2499 = vadd.f32 %v2396, %v2498
        %v2500 = vpop.f32.mrb[0].mxu0
        %2501 = vmatprep.mubr.f32.mxu0 0.0
        %2502 = vmatmul.mubr.f32.gmra.mrb[0].mxu0 %v2215
        %v2503 = vpop.f32.mrb[0].mxu0
        %v2504 = vadd.f32 %v2396, %v2503
        %v2505 = vpop.f32.mrb[0].mxu0
        %2506 = vmatprep.mubr.f32.mxu0 0.0
        %2507 = vmatmul.mubr.f32.gmra.mrb[0].mxu0 %v2218
        %v2508 = vpop.f32.mrb[0].mxu0
        %v2509 = vadd.f32 %v2396, %v2508
        %v2510 = vpop.f32.mrb[0].mxu0
        %2511 = vmatprep.mubr.f32.mxu0 0.0
        %2512 = vmatmul.mubr.f32.gmra.mrb[0].mxu0 %v2221
        %v2513 = vpop.f32.mrb[0].mxu0
        %v2514 = vadd.f32 %v2396, %v2513
        %v2515 = vpop.f32.mrb[0].mxu0
        %2516 = vmatprep.mubr.f32.mxu0 0.0
        %2517 = vmatmul.mubr.f32.gmra.mrb[0].mxu0 %v2224
        %v2518 = vpop.f32.mrb[0].mxu0
        %v2519 = vadd.f32 %v2396, %v2518
        %v2520 = vpop.f32.mrb[0].mxu0
        %2521 = vmatprep.mubr.f32.mxu0 0.0
        %2522 = vmatmul.mubr.f32.gmra.mrb[0].mxu0 %v2227
        %v2523 = vpop.f32.mrb[0].mxu0
        %v2524 = vadd.f32 %v2396, %v2523
        %v2525 = vpop.f32.mrb[0].mxu0
        %2526 = vmatprep.mubr.f32.mxu0 0.0
        %2527 = vmatmul.mubr.f32.gmra.mrb[0].mxu0 %v2230
        %v2528 = vpop.f32.mrb[0].mxu0
        %v2529 = vadd.f32 %v2396, %v2528
        %v2530 = vpop.f32.mrb[0].mxu0
        %2531 = vmatprep.mubr.f32.mxu0 0.0
        %2532 = vmatmul.mubr.f32.gmra.mrb[0].mxu0 %v2233
        %v2533 = vpop.f32.mrb[0].mxu0
        %v2534 = vadd.f32 %v2396, %v2533
        %v2535 = vpop.f32.mrb[0].mxu0
        %2536 = vmatprep.mubr.f32.mxu0 0.0
        %2537 = vmatmul.mubr.f32.gmra.mrb[0].mxu0 %v2236
        %v2538 = vpop.f32.mrb[0].mxu0
        %v2539 = vadd.f32 %v2396, %v2538
        %v2540 = vpop.f32.mrb[0].mxu0
        %2541 = vdwg.mxu0
        %v2542 = vld [vmem:[%s8] sm:$0xf]
        %v2543 = vld [vmem:[%s8 + $0x4] sm:$0xf]
        %v2544 = vld [vmem:[%s8 + $0x8] sm:$0xf]
        %v2545 = vld [vmem:[%s8 + $0xc] sm:$0xf]
        %v2546 = vunpack.c.l.bf16 %v2542
        %v2547 = vunpack.c.l.bf16 %v2543
        %v2548 = vunpack.c.l.bf16 %v2544
        %v2549 = vunpack.c.l.bf16 %v2545
        %v2550 = vld [vmem:[%s11] sm:$0x1]
        %v2551 = vunpack.c.l.bf16 %v2550
        %v2552 = vlaneseq
        %v2553 = vshrl.u32 %v2552, 7
        %v2554 = vsub.s32 0, %v2553
        %v2555 = vrot.slane %v2551, %v2554
        %2556 = vmatprep.subr.mxu0 0.0
        %2557 = vmatpush1.msra.mxu0 %v2546
        %2558 = vmatprep.subr.mxu0 0.0
        %2559 = vmatpush1.msra.mxu0 %v2547
        %2560 = vmatprep.subr.mxu0 0.0
        %2561 = vmatpush1.msra.mxu0 %v2548
        %2562 = vmatprep.subr.mxu0 0.0
        %2563 = vmatpush1.msra.mxu0 %v2549
        %2564 = vmatprep.subr.mxu0 0.0
        %2565 = vmatpush1.msra.mxu0 0.0
        %2566 = vmatprep.subr.mxu0 0.0
        %2567 = vmatpush1.msra.mxu0 0.0
        %2568 = vmatprep.subr.mxu0 0.0
        %2569 = vmatpush1.msra.mxu0 0.0
        %2570 = vmatprep.subr.mxu0 0.0
        %2571 = vmatpush1.msra.mxu0 0.0
        %2572 = vmatprep.subr.mxu0 0.0
        %2573 = vmatpush1.msra.mxu0 0.0
        %2574 = vmatprep.subr.mxu0 0.0
        %2575 = vmatpush1.msra.mxu0 0.0
        %2576 = vmatprep.subr.mxu0 0.0
        %2577 = vmatpush1.msra.mxu0 0.0
        %2578 = vmatprep.subr.mxu0 0.0
        %2579 = vmatpush1.msra.mxu0 0.0
        %2580 = vmatprep.subr.mxu0 0.0
        %2581 = vmatpush1.msra.mxu0 0.0
        %2582 = vmatprep.subr.mxu0 0.0
        %2583 = vmatpush1.msra.mxu0 0.0
        %2584 = vmatprep.subr.mxu0 0.0
        %2585 = vmatpush1.msra.mxu0 0.0
        %2586 = vmatprep.subr.mxu0 0.0
        %2587 = vmatpush1.msra.mxu0 0.0
        %2588 = vmatprep.subr.mxu0 0.0
        %2589 = vmatpush1.msra.mxu0 0.0
        %2590 = vmatprep.subr.mxu0 0.0
        %2591 = vmatpush1.msra.mxu0 0.0
        %2592 = vmatprep.subr.mxu0 0.0
        %2593 = vmatpush1.msra.mxu0 0.0
        %2594 = vmatprep.subr.mxu0 0.0
        %2595 = vmatpush1.msra.mxu0 0.0
        %2596 = vmatprep.subr.mxu0 0.0
        %2597 = vmatpush1.msra.mxu0 0.0
        %2598 = vmatprep.subr.mxu0 0.0
        %2599 = vmatpush1.msra.mxu0 0.0
        %2600 = vmatprep.subr.mxu0 0.0
        %2601 = vmatpush1.msra.mxu0 0.0
        %2602 = vmatprep.subr.mxu0 0.0
        %2603 = vmatpush1.msra.mxu0 0.0
        %2604 = vmatprep.subr.mxu0 0.0
        %2605 = vmatpush1.msra.mxu0 0.0
        %2606 = vmatprep.subr.mxu0 0.0
        %2607 = vmatpush1.msra.mxu0 0.0
        %2608 = vmatprep.subr.mxu0 0.0
        %2609 = vmatpush1.msra.mxu0 0.0
        %2610 = vmatprep.subr.mxu0 0.0
        %2611 = vmatpush1.msra.mxu0 0.0
        %2612 = vmatprep.subr.mxu0 0.0
        %2613 = vmatpush1.msra.mxu0 0.0
        %2614 = vmatprep.subr.mxu0 0.0
        %2615 = vmatpush1.msra.mxu0 0.0
        %2616 = vmatprep.subr.mxu0 0.0
        %2617 = vmatpush1.msra.mxu0 0.0
        %2618 = vmatprep.subr.mxu0 0.0
        %2619 = vmatpush1.msra.mxu0 0.0
        %2620 = vmatprep.mubr.f32.mxu0 0.0
        %2621 = vmatmul.mubr.f32.gmra.mrb[0].mxu0 %v2191
        %v2622 = vpop.f32.mrb[0].mxu0
        %v2623 = vadd.f32 %v2555, %v2622
        %v2624 = vpop.f32.mrb[0].mxu0
        %2625 = vmatprep.mubr.f32.mxu0 0.0
        %2626 = vmatmul.mubr.f32.gmra.mrb[0].mxu0 %v2194
        %v2627 = vpop.f32.mrb[0].mxu0
        %v2628 = vadd.f32 %v2555, %v2627
        %v2629 = vpop.f32.mrb[0].mxu0
        %2630 = vmatprep.mubr.f32.mxu0 0.0
        %2631 = vmatmul.mubr.f32.gmra.mrb[0].mxu0 %v2197
        %v2632 = vpop.f32.mrb[0].mxu0
        %v2633 = vadd.f32 %v2555, %v2632
        %v2634 = vpop.f32.mrb[0].mxu0
        %2635 = vmatprep.mubr.f32.mxu0 0.0
        %2636 = vmatmul.mubr.f32.gmra.mrb[0].mxu0 %v2200
        %v2637 = vpop.f32.mrb[0].mxu0
        %v2638 = vadd.f32 %v2555, %v2637
        %v2639 = vpop.f32.mrb[0].mxu0
        %2640 = vmatprep.mubr.f32.mxu0 0.0
        %2641 = vmatmul.mubr.f32.gmra.mrb[0].mxu0 %v2203
        %v2642 = vpop.f32.mrb[0].mxu0
        %v2643 = vadd.f32 %v2555, %v2642
        %v2644 = vpop.f32.mrb[0].mxu0
        %2645 = vmatprep.mubr.f32.mxu0 0.0
        %2646 = vmatmul.mubr.f32.gmra.mrb[0].mxu0 %v2206
        %v2647 = vpop.f32.mrb[0].mxu0
        %v2648 = vadd.f32 %v2555, %v2647
        %v2649 = vpop.f32.mrb[0].mxu0
        %2650 = vmatprep.mubr.f32.mxu0 0.0
        %2651 = vmatmul.mubr.f32.gmra.mrb[0].mxu0 %v2209
        %v2652 = vpop.f32.mrb[0].mxu0
        %v2653 = vadd.f32 %v2555, %v2652
        %v2654 = vpop.f32.mrb[0].mxu0
        %2655 = vmatprep.mubr.f32.mxu0 0.0
        %2656 = vmatmul.mubr.f32.gmra.mrb[0].mxu0 %v2212
        %v2657 = vpop.f32.mrb[0].mxu0
        %v2658 = vadd.f32 %v2555, %v2657
        %v2659 = vpop.f32.mrb[0].mxu0
        %2660 = vmatprep.mubr.f32.mxu0 0.0
        %2661 = vmatmul.mubr.f32.gmra.mrb[0].mxu0 %v2215
        %v2662 = vpop.f32.mrb[0].mxu0
        %v2663 = vadd.f32 %v2555, %v2662
        %v2664 = vpop.f32.mrb[0].mxu0
        %2665 = vmatprep.mubr.f32.mxu0 0.0
        %2666 = vmatmul.mubr.f32.gmra.mrb[0].mxu0 %v2218
        %v2667 = vpop.f32.mrb[0].mxu0
        %v2668 = vadd.f32 %v2555, %v2667
        %v2669 = vpop.f32.mrb[0].mxu0
        %2670 = vmatprep.mubr.f32.mxu0 0.0
        %2671 = vmatmul.mubr.f32.gmra.mrb[0].mxu0 %v2221
        %v2672 = vpop.f32.mrb[0].mxu0
        %v2673 = vadd.f32 %v2555, %v2672
        %v2674 = vpop.f32.mrb[0].mxu0
        %2675 = vmatprep.mubr.f32.mxu0 0.0
        %2676 = vmatmul.mubr.f32.gmra.mrb[0].mxu0 %v2224
        %v2677 = vpop.f32.mrb[0].mxu0
        %v2678 = vadd.f32 %v2555, %v2677
        %v2679 = vpop.f32.mrb[0].mxu0
        %2680 = vmatprep.mubr.f32.mxu0 0.0
        %2681 = vmatmul.mubr.f32.gmra.mrb[0].mxu0 %v2227
        %v2682 = vpop.f32.mrb[0].mxu0
        %v2683 = vadd.f32 %v2555, %v2682
        %v2684 = vpop.f32.mrb[0].mxu0
        %2685 = vmatprep.mubr.f32.mxu0 0.0
        %2686 = vmatmul.mubr.f32.gmra.mrb[0].mxu0 %v2230
        %v2687 = vpop.f32.mrb[0].mxu0
        %v2688 = vadd.f32 %v2555, %v2687
        %v2689 = vpop.f32.mrb[0].mxu0
        %2690 = vmatprep.mubr.f32.mxu0 0.0
        %2691 = vmatmul.mubr.f32.gmra.mrb[0].mxu0 %v2233
        %v2692 = vpop.f32.mrb[0].mxu0
        %v2693 = vadd.f32 %v2555, %v2692
        %v2694 = vpop.f32.mrb[0].mxu0
        %2695 = vmatprep.mubr.f32.mxu0 0.0
        %2696 = vmatmul.mubr.f32.gmra.mrb[0].mxu0 %v2236
        %v2697 = vpop.f32.mrb[0].mxu0
        %v2698 = vadd.f32 %v2555, %v2697
        %v2699 = vpop.f32.mrb[0].mxu0
        %2700 = vdwg.mxu0
        %v2701 = vadd.f32 %v661, %v2623
        %v2702 = vadd.f32 %v662, %v2628
        %v2703 = vadd.f32 %v663, %v2633
        %v2704 = vadd.f32 %v664, %v2638
        %v2705 = vadd.f32 %v665, %v2643
        %v2706 = vadd.f32 %v666, %v2648
        %v2707 = vadd.f32 %v667, %v2653
        %v2708 = vadd.f32 %v668, %v2658
        %v2709 = vadd.f32 %v669, %v2663
        %v2710 = vadd.f32 %v670, %v2668
        %v2711 = vadd.f32 %v671, %v2673
        %v2712 = vadd.f32 %v672, %v2678
        %v2713 = vadd.f32 %v673, %v2683
        %v2714 = vadd.f32 %v674, %v2688
        %v2715 = vadd.f32 %v675, %v2693
        %v2716 = vadd.f32 %v676, %v2698
        %v2717 = vmul.f32 %v2464, %v1640
        %v2718 = vmul.f32 %v2469, %v1641
        %v2719 = vmul.f32 %v2474, %v1642
        %v2720 = vmul.f32 %v2479, %v1643
        %v2721 = vmul.f32 %v2484, %v1644
        %v2722 = vmul.f32 %v2489, %v1645
        %v2723 = vmul.f32 %v2494, %v1646
        %v2724 = vmul.f32 %v2499, %v1647
        %v2725 = vmul.f32 %v2504, %v1648
        %v2726 = vmul.f32 %v2509, %v1649
        %v2727 = vmul.f32 %v2514, %v1650
        %v2728 = vmul.f32 %v2519, %v1651
        %v2729 = vmul.f32 %v2524, %v1652
        %v2730 = vmul.f32 %v2529, %v1653
        %v2731 = vmul.f32 %v2534, %v1654
        %v2732 = vmul.f32 %v2539, %v1655
        %v2733 = vadd.f32 %v2701, %v2717
        %v2734 = vadd.f32 %v2702, %v2718
        %v2735 = vadd.f32 %v2703, %v2719
        %v2736 = vadd.f32 %v2704, %v2720
        %v2737 = vadd.f32 %v2705, %v2721
        %v2738 = vadd.f32 %v2706, %v2722
        %v2739 = vadd.f32 %v2707, %v2723
        %v2740 = vadd.f32 %v2708, %v2724
        %v2741 = vadd.f32 %v2709, %v2725
        %v2742 = vadd.f32 %v2710, %v2726
        %v2743 = vadd.f32 %v2711, %v2727
        %v2744 = vadd.f32 %v2712, %v2728
        %v2745 = vadd.f32 %v2713, %v2729
        %v2746 = vadd.f32 %v2714, %v2730
        %v2747 = vadd.f32 %v2715, %v2731
        %v2748 = vadd.f32 %v2716, %v2732
        %v2749 = vmul.f32 %v2305, %v953
        %v2750 = vmul.f32 %v2310, %v958
        %v2751 = vmul.f32 %v2315, %v963
        %v2752 = vmul.f32 %v2320, %v968
        %v2753 = vmul.f32 %v2325, %v973
        %v2754 = vmul.f32 %v2330, %v978
        %v2755 = vmul.f32 %v2335, %v983
        %v2756 = vmul.f32 %v2340, %v988
        %v2757 = vmul.f32 %v2345, %v993
        %v2758 = vmul.f32 %v2350, %v998
        %v2759 = vmul.f32 %v2355, %v1003
        %v2760 = vmul.f32 %v2360, %v1008
        %v2761 = vmul.f32 %v2365, %v1013
        %v2762 = vmul.f32 %v2370, %v1018
        %v2763 = vmul.f32 %v2375, %v1023
        %v2764 = vmul.f32 %v2380, %v1028
        %v2765 = vadd.f32 %v677, %v2749
        %v2766 = vadd.f32 %v678, %v2750
        %v2767 = vadd.f32 %v679, %v2751
        %v2768 = vadd.f32 %v680, %v2752
        %v2769 = vadd.f32 %v681, %v2753
        %v2770 = vadd.f32 %v682, %v2754
        %v2771 = vadd.f32 %v683, %v2755
        %v2772 = vadd.f32 %v684, %v2756
        %v2773 = vadd.f32 %v685, %v2757
        %v2774 = vadd.f32 %v686, %v2758
        %v2775 = vadd.f32 %v687, %v2759
        %v2776 = vadd.f32 %v688, %v2760
        %v2777 = vadd.f32 %v689, %v2761
        %v2778 = vadd.f32 %v690, %v2762
        %v2779 = vadd.f32 %v691, %v2763
        %v2780 = vadd.f32 %v692, %v2764
        %v2781 = vmul.f32 %v2305, %v1033
        %v2782 = vmul.f32 %v2310, %v1038
        %v2783 = vmul.f32 %v2315, %v1043
        %v2784 = vmul.f32 %v2320, %v1048
        %v2785 = vmul.f32 %v2325, %v1053
        %v2786 = vmul.f32 %v2330, %v1058
        %v2787 = vmul.f32 %v2335, %v1063
        %v2788 = vmul.f32 %v2340, %v1068
        %v2789 = vmul.f32 %v2345, %v1073
        %v2790 = vmul.f32 %v2350, %v1078
        %v2791 = vmul.f32 %v2355, %v1083
        %v2792 = vmul.f32 %v2360, %v1088
        %v2793 = vmul.f32 %v2365, %v1093
        %v2794 = vmul.f32 %v2370, %v1098
        %v2795 = vmul.f32 %v2375, %v1103
        %v2796 = vmul.f32 %v2380, %v1108
        %v2797 = vadd.f32 %v693, %v2781
        %v2798 = vadd.f32 %v694, %v2782
        %v2799 = vadd.f32 %v695, %v2783
        %v2800 = vadd.f32 %v696, %v2784
        %v2801 = vadd.f32 %v697, %v2785
        %v2802 = vadd.f32 %v698, %v2786
        %v2803 = vadd.f32 %v699, %v2787
        %v2804 = vadd.f32 %v700, %v2788
        %v2805 = vadd.f32 %v701, %v2789
        %v2806 = vadd.f32 %v702, %v2790
        %v2807 = vadd.f32 %v703, %v2791
        %v2808 = vadd.f32 %v704, %v2792
        %v2809 = vadd.f32 %v705, %v2793
        %v2810 = vadd.f32 %v706, %v2794
        %v2811 = vadd.f32 %v707, %v2795
        %v2812 = vadd.f32 %v708, %v2796
        %v2813 = vmul.f32 %v2305, %v1113
        %v2814 = vmul.f32 %v2310, %v1118
        %v2815 = vmul.f32 %v2315, %v1123
        %v2816 = vmul.f32 %v2320, %v1128
        %v2817 = vmul.f32 %v2325, %v1133
        %v2818 = vmul.f32 %v2330, %v1138
        %v2819 = vmul.f32 %v2335, %v1143
        %v2820 = vmul.f32 %v2340, %v1148
        %v2821 = vmul.f32 %v2345, %v1153
        %v2822 = vmul.f32 %v2350, %v1158
        %v2823 = vmul.f32 %v2355, %v1163
        %v2824 = vmul.f32 %v2360, %v1168
        %v2825 = vmul.f32 %v2365, %v1173
        %v2826 = vmul.f32 %v2370, %v1178
        %v2827 = vmul.f32 %v2375, %v1183
        %v2828 = vmul.f32 %v2380, %v1188
        %v2829 = vadd.f32 %v709, %v2813
        %v2830 = vadd.f32 %v710, %v2814
        %v2831 = vadd.f32 %v711, %v2815
        %v2832 = vadd.f32 %v712, %v2816
        %v2833 = vadd.f32 %v713, %v2817
        %v2834 = vadd.f32 %v714, %v2818
        %v2835 = vadd.f32 %v715, %v2819
        %v2836 = vadd.f32 %v716, %v2820
        %v2837 = vadd.f32 %v717, %v2821
        %v2838 = vadd.f32 %v718, %v2822
        %v2839 = vadd.f32 %v719, %v2823
        %v2840 = vadd.f32 %v720, %v2824
        %v2841 = vadd.f32 %v721, %v2825
        %v2842 = vadd.f32 %v722, %v2826
        %v2843 = vadd.f32 %v723, %v2827
        %v2844 = vadd.f32 %v724, %v2828
        %2861 = vrot.lane.b32.xlu0 %v2765, 32
        %v2862 = vpop.permute.xlu0 %2861
        %2863 = vrot.lane.b32.xlu0 %v2766, 32
        %v2864 = vpop.permute.xlu0 %2863
        %2865 = vrot.lane.b32.xlu0 %v2767, 32
        %v2866 = vpop.permute.xlu0 %2865
        %2867 = vrot.lane.b32.xlu0 %v2768, 32
        %v2868 = vpop.permute.xlu0 %2867
        %2869 = vrot.lane.b32.xlu0 %v2769, 32
        %v2870 = vpop.permute.xlu0 %2869
        %2871 = vrot.lane.b32.xlu0 %v2770, 32
        %v2872 = vpop.permute.xlu0 %2871
        %2873 = vrot.lane.b32.xlu0 %v2771, 32
        %v2874 = vpop.permute.xlu0 %2873
        %2875 = vrot.lane.b32.xlu0 %v2772, 32
        %v2876 = vpop.permute.xlu0 %2875
        %2877 = vrot.lane.b32.xlu0 %v2773, 32
        %v2878 = vpop.permute.xlu0 %2877
        %2879 = vrot.lane.b32.xlu0 %v2774, 32
        %v2880 = vpop.permute.xlu0 %2879
        %2881 = vrot.lane.b32.xlu0 %v2775, 32
        %v2882 = vpop.permute.xlu0 %2881
        %2883 = vrot.lane.b32.xlu0 %v2776, 32
        %v2884 = vpop.permute.xlu0 %2883
        %2885 = vrot.lane.b32.xlu0 %v2777, 32
        %v2886 = vpop.permute.xlu0 %2885
        %2887 = vrot.lane.b32.xlu0 %v2778, 32
        %v2888 = vpop.permute.xlu0 %2887
        %2889 = vrot.lane.b32.xlu0 %v2779, 32
        %v2890 = vpop.permute.xlu0 %2889
        %2891 = vrot.lane.b32.xlu0 %v2780, 32
        %v2892 = vpop.permute.xlu0 %2891
        %2925 = vrot.lane.b32.xlu0 %v2797, 64
        %v2926 = vpop.permute.xlu0 %2925
        %2927 = vrot.lane.b32.xlu0 %v2798, 64
        %v2928 = vpop.permute.xlu0 %2927
        %2929 = vrot.lane.b32.xlu0 %v2799, 64
        %v2930 = vpop.permute.xlu0 %2929
        %2931 = vrot.lane.b32.xlu0 %v2800, 64
        %v2932 = vpop.permute.xlu0 %2931
        %2933 = vrot.lane.b32.xlu0 %v2801, 64
        %v2934 = vpop.permute.xlu0 %2933
        %2935 = vrot.lane.b32.xlu0 %v2802, 64
        %v2936 = vpop.permute.xlu0 %2935
        %2937 = vrot.lane.b32.xlu0 %v2803, 64
        %v2938 = vpop.permute.xlu0 %2937
        %2939 = vrot.lane.b32.xlu0 %v2804, 64
        %v2940 = vpop.permute.xlu0 %2939
        %2941 = vrot.lane.b32.xlu0 %v2805, 64
        %v2942 = vpop.permute.xlu0 %2941
        %2943 = vrot.lane.b32.xlu0 %v2806, 64
        %v2944 = vpop.permute.xlu0 %2943
        %2945 = vrot.lane.b32.xlu0 %v2807, 64
        %v2946 = vpop.permute.xlu0 %2945
        %2947 = vrot.lane.b32.xlu0 %v2808, 64
        %v2948 = vpop.permute.xlu0 %2947
        %2949 = vrot.lane.b32.xlu0 %v2809, 64
        %v2950 = vpop.permute.xlu0 %2949
        %2951 = vrot.lane.b32.xlu0 %v2810, 64
        %v2952 = vpop.permute.xlu0 %2951
        %2953 = vrot.lane.b32.xlu0 %v2811, 64
        %v2954 = vpop.permute.xlu0 %2953
        %2955 = vrot.lane.b32.xlu0 %v2812, 64
        %v2956 = vpop.permute.xlu0 %2955
        %2989 = vrot.lane.b32.xlu0 %v2829, 96
        %v2990 = vpop.permute.xlu0 %2989
        %2991 = vrot.lane.b32.xlu0 %v2830, 96
        %v2992 = vpop.permute.xlu0 %2991
        %2993 = vrot.lane.b32.xlu0 %v2831, 96
        %v2994 = vpop.permute.xlu0 %2993
        %2995 = vrot.lane.b32.xlu0 %v2832, 96
        %v2996 = vpop.permute.xlu0 %2995
        %2997 = vrot.lane.b32.xlu0 %v2833, 96
        %v2998 = vpop.permute.xlu0 %2997
        %2999 = vrot.lane.b32.xlu0 %v2834, 96
        %v3000 = vpop.permute.xlu0 %2999
        %3001 = vrot.lane.b32.xlu0 %v2835, 96
        %v3002 = vpop.permute.xlu0 %3001
        %3003 = vrot.lane.b32.xlu0 %v2836, 96
        %v3004 = vpop.permute.xlu0 %3003
        %3005 = vrot.lane.b32.xlu0 %v2837, 96
        %v3006 = vpop.permute.xlu0 %3005
        %3007 = vrot.lane.b32.xlu0 %v2838, 96
        %v3008 = vpop.permute.xlu0 %3007
        %3009 = vrot.lane.b32.xlu0 %v2839, 96
        %v3010 = vpop.permute.xlu0 %3009
        %3011 = vrot.lane.b32.xlu0 %v2840, 96
        %v3012 = vpop.permute.xlu0 %3011
        %3013 = vrot.lane.b32.xlu0 %v2841, 96
        %v3014 = vpop.permute.xlu0 %3013
        %3015 = vrot.lane.b32.xlu0 %v2842, 96
        %v3016 = vpop.permute.xlu0 %3015
        %3017 = vrot.lane.b32.xlu0 %v2843, 96
        %v3018 = vpop.permute.xlu0 %3017
        %3019 = vrot.lane.b32.xlu0 %v2844, 96
        %v3020 = vpop.permute.xlu0 %3019
        %v3037 = vsel %vm741, %v2733, %v2862
        %v3038 = vsel %vm741, %v2734, %v2864
        %v3039 = vsel %vm741, %v2735, %v2866
        %v3040 = vsel %vm741, %v2736, %v2868
        %v3041 = vsel %vm741, %v2737, %v2870
        %v3042 = vsel %vm741, %v2738, %v2872
        %v3043 = vsel %vm741, %v2739, %v2874
        %v3044 = vsel %vm741, %v2740, %v2876
        %v3045 = vsel %vm741, %v2741, %v2878
        %v3046 = vsel %vm741, %v2742, %v2880
        %v3047 = vsel %vm741, %v2743, %v2882
        %v3048 = vsel %vm741, %v2744, %v2884
        %v3049 = vsel %vm741, %v2745, %v2886
        %v3050 = vsel %vm741, %v2746, %v2888
        %v3051 = vsel %vm741, %v2747, %v2890
        %v3052 = vsel %vm741, %v2748, %v2892
        %v3053 = vsel %vm1870, %v3037, %v2926
        %v3054 = vsel %vm1870, %v3038, %v2928
        %v3055 = vsel %vm1870, %v3039, %v2930
        %v3056 = vsel %vm1870, %v3040, %v2932
        %v3057 = vsel %vm1870, %v3041, %v2934
        %v3058 = vsel %vm1870, %v3042, %v2936
        %v3059 = vsel %vm1870, %v3043, %v2938
        %v3060 = vsel %vm1870, %v3044, %v2940
        %v3061 = vsel %vm1870, %v3045, %v2942
        %v3062 = vsel %vm1870, %v3046, %v2944
        %v3063 = vsel %vm1870, %v3047, %v2946
        %v3064 = vsel %vm1870, %v3048, %v2948
        %v3065 = vsel %vm1870, %v3049, %v2950
        %v3066 = vsel %vm1870, %v3050, %v2952
        %v3067 = vsel %vm1870, %v3051, %v2954
        %v3068 = vsel %vm1870, %v3052, %v2956
        %vm3069 = vcmask 785408
        %v3070 = vsel %vm3069, %v3053, %v2990
        %v3071 = vsel %vm3069, %v3054, %v2992
        %v3072 = vsel %vm3069, %v3055, %v2994
        %v3073 = vsel %vm3069, %v3056, %v2996
        %v3074 = vsel %vm3069, %v3057, %v2998
        %v3075 = vsel %vm3069, %v3058, %v3000
        %v3076 = vsel %vm3069, %v3059, %v3002
        %v3077 = vsel %vm3069, %v3060, %v3004
        %v3078 = vsel %vm3069, %v3061, %v3006
        %v3079 = vsel %vm3069, %v3062, %v3008
        %v3080 = vsel %vm3069, %v3063, %v3010
        %v3081 = vsel %vm3069, %v3064, %v3012
        %v3082 = vsel %vm3069, %v3065, %v3014
        %v3083 = vsel %vm3069, %v3066, %v3016
        %v3084 = vsel %vm3069, %v3067, %v3018
        %v3085 = vsel %vm3069, %v3068, %v3020
        %3086 = vst [vmem:[%s659] sm:$0xff] %v3070
        %3087 = vst [vmem:[%s659 + $0x8] sm:$0xff] %v3071
        %3088 = vst [vmem:[%s659 + $0x10] sm:$0xff] %v3072
        %3089 = vst [vmem:[%s659 + $0x18] sm:$0xff] %v3073
        %3090 = vst [vmem:[%s659 + $0x20] sm:$0xff] %v3074
        %3091 = vst [vmem:[%s659 + $0x28] sm:$0xff] %v3075
        %3092 = vst [vmem:[%s659 + $0x30] sm:$0xff] %v3076
        %3093 = vst [vmem:[%s659 + $0x38] sm:$0xff] %v3077
        %3094 = vst [vmem:[%s659 + $0x40] sm:$0xff] %v3078
        %3095 = vst [vmem:[%s659 + $0x48] sm:$0xff] %v3079
        %3096 = vst [vmem:[%s659 + $0x50] sm:$0xff] %v3080
        %3097 = vst [vmem:[%s659 + $0x58] sm:$0xff] %v3081
        %3098 = vst [vmem:[%s659 + $0x60] sm:$0xff] %v3082
        %3099 = vst [vmem:[%s659 + $0x68] sm:$0xff] %v3083
        %3100 = vst [vmem:[%s659 + $0x70] sm:$0xff] %v3084
        %3101 = vst [vmem:[%s659 + $0x78] sm:$0xff] %v3085
        %s3102 = smul.u32 16, %s23
        %p3103 = scmp.lt.s32.totalorder %s3102, 63
        %s3104 = scalar_select %p3103, %s3102, 63
        %s3105 = smul.addr %s3104, 8
        %s3106 = scalar_lea.vmem %s12, %s3105
        // Predicated region
        $region107: #{update_block.1} parent=101 // pred_check
          %p3107 = pneg %p303
        $region108: #{update_block.1} parent=101 // pred_check_branch
          %3109 = sbr.rel (%p3107) target = $region110
        $region109: #{update_block.1} parent=101 // pred_region
          %s3110 = smul.u32 16, %s23
        $region110: #{update_block.1} parent=101 // pred_fallthru
          _
      $region102: #{update_block.1} parent=5 // pred_fallthru
        _
      %p3111 = scmp.le.s32.totalorder 2, %s18
      // Predicated region
      $region111: #{update_block.1} parent=5 // pred_check
        %p3112 = pneg %p3111
      $region112: #{update_block.1} parent=5 // pred_check_branch
        %3114 = sbr.rel (%p3112) target = $region114
      $region113: #{update_block.1} parent=5 // pred_region
        %s3115 = ssub.s32 %s18, 2
        // Predicated region
        $region115: #{update_block.1} parent=113 // pred_check
          %p3116 = pneg %p309
        $region116: #{update_block.1} parent=113 // pred_check_branch
          %3118 = sbr.rel (%p3116) target = $region118
        $region117: #{update_block.1} parent=113 // pred_region
          %s3119 = smul.u32 16, %s24
          %p3120 = scmp.lt.s32.totalorder %s3119, 63
          %s3121 = scalar_select %p3120, %s3119, 63
          %s3122 = smul.addr %s3121, 8
          %s3123 = scalar_lea.vmem %s12, %s3122
        $region118: #{update_block.1} parent=113 // pred_fallthru
          _
      $region114: #{update_block.1} parent=5 // pred_fallthru
        _
    $region6: #{update_block.1} parent=1 // loop_footer
      %s22 = sadd.s32 1, %s18
    $region7: #{update_block.1} parent=1 // loop_footer_branch
      %17 = sbr.rel target = $region3
    $region8: #{update_block.1} parent=1 // loop_exit
      _

</llo_original>
